<compile_context>
chip_gen: v5e
topology: v5e:2x2
jax: 0.10.0
libtpu: 0.0.40
codegen_flags: <defaults>
</compile_context>

<pallas_src>
import functools
import math

import jax
import jax.numpy as jnp
from jax.experimental import pallas as pl
from jax.experimental.pallas import tpu as pltpu


# ------------------------------ fused kernel -------------------------------

def _block_kernel(tgt_ref, mem_ref, qp_ref, pe_ref,
                  ln_ref,
                  sw_ref, sb_ref, swo_ref, sbo_ref,
                  cw_ref, cb_ref, cwo_ref, cbo_ref,
                  f1w_ref, f1b_ref, f2w_ref, f2b_ref,
                  fn_ref,
                  out_ref, *, num_heads, num_layers, eps):
    x = tgt_ref[0].astype(jnp.float32)    # (Lq, C)   carried activation (stays in registers/VMEM)
    mem = mem_ref[0].astype(jnp.float32)  # (Lm, C)
    qp = qp_ref[0].astype(jnp.float32)    # (Lq, C)
    pe = pe_ref[0].astype(jnp.float32)    # (Lm, C)

    Lq, C = x.shape
    Dh = C // num_heads
    scale = 1.0 / math.sqrt(Dh)

    def ln(v, g, b):
        mu = jnp.mean(v, axis=-1, keepdims=True)
        var = jnp.mean(jnp.square(v - mu), axis=-1, keepdims=True)
        return (v - mu) * jax.lax.rsqrt(var + eps) * g + b

    def softmax(s):
        s = s - jnp.max(s, axis=-1, keepdims=True)
        p = jnp.exp(s)
        denom = jnp.sum(p, axis=-1, keepdims=True)
        return p * pl.reciprocal(denom, approx=True)   # divide on the EUP slot

    def attend(q, k, v):
        # q: (Lq, C), k/v: (Lk, C) already projected; all heads handled in-kernel.
        outs = []
        for h in range(num_heads):
            lo, hi = h * Dh, (h + 1) * Dh
            qh = q[:, lo:hi]
            kh = k[:, lo:hi]
            vh = v[:, lo:hi]
            s = jax.lax.dot_general(qh, kh, (((1,), (1,)), ((), ())),
                                    preferred_element_type=jnp.float32) * scale
            p = softmax(s)
            outs.append(jnp.dot(p, vh, preferred_element_type=jnp.float32))
        return jnp.concatenate(outs, axis=-1)          # (Lq, C)

    for l in range(num_layers):          # static unroll; weights indexed once per layer
        lnp = ln_ref[l].astype(jnp.float32)            # (8, C): g/b for the 4 layernorms

        # ---------------- self-attention (pre-norm) ----------------
        n1 = ln(x, lnp[0:1], lnp[1:2])
        a = n1 + qp                                    # query == key input
        w_in = sw_ref[l].astype(jnp.float32)           # (C, 3C) = [Wq | Wk | Wv]
        b_in = sb_ref[l].astype(jnp.float32)           # (1, 3C)
        qk = jnp.dot(a, w_in[:, :2 * C], preferred_element_type=jnp.float32) + b_in[:, :2 * C]
        v = jnp.dot(n1, w_in[:, 2 * C:], preferred_element_type=jnp.float32) + b_in[:, 2 * C:]
        o = attend(qk[:, :C], qk[:, C:], v)
        o = jnp.dot(o, swo_ref[l].astype(jnp.float32),
                    preferred_element_type=jnp.float32) + sbo_ref[l].astype(jnp.float32)
        x = x + o

        # ------- cross-attention (pre-norm, query vs. zx_feat memory) -------
        n2q = ln(x, lnp[2:3], lnp[3:4])
        n2m = ln(mem, lnp[4:5], lnp[5:6])
        cw = cw_ref[l].astype(jnp.float32)             # (C, 3C) = [Wq | Wk | Wv]
        cb = cb_ref[l].astype(jnp.float32)             # (1, 3C)
        q = jnp.dot(n2q + qp, cw[:, :C], preferred_element_type=jnp.float32) + cb[:, :C]
        k = jnp.dot(n2m + pe, cw[:, C:2 * C], preferred_element_type=jnp.float32) + cb[:, C:2 * C]
        v = jnp.dot(n2m, cw[:, 2 * C:], preferred_element_type=jnp.float32) + cb[:, 2 * C:]
        o = attend(q, k, v)
        o = jnp.dot(o, cwo_ref[l].astype(jnp.float32),
                    preferred_element_type=jnp.float32) + cbo_ref[l].astype(jnp.float32)
        x = x + o

        # ---------------------------- MLP ----------------------------
        n3 = ln(x, lnp[6:7], lnp[7:8])
        h = jnp.dot(n3, f1w_ref[l].astype(jnp.float32),
                    preferred_element_type=jnp.float32) + f1b_ref[l].astype(jnp.float32)
        h = 0.5 * h * (1.0 + jax.lax.erf(h * 0.7071067811865476))   # exact (erf) GELU
        h = jnp.dot(h, f2w_ref[l].astype(jnp.float32),
                    preferred_element_type=jnp.float32) + f2b_ref[l].astype(jnp.float32)
        x = x + h

    # ------------------------- final LayerNorm -------------------------
    fn = fn_ref[...].astype(jnp.float32)               # (2, C)
    x = ln(x, fn[0:1], fn[1:2])
    out_ref[0] = x.astype(out_ref.dtype)


# ------------------------------ Python wrapper ------------------------------

def target_query_decoder_block(tgt, zx_feat, pos_embed_total, query_pos, params, num_heads):
    B, Lq, C = tgt.shape
    num_layers = params["ln"].shape[0]

    kernel = functools.partial(_block_kernel, num_heads=num_heads,
                               num_layers=num_layers, eps=1e-5)

    def batch_spec(a):                       # one batch element per grid step
        return pl.BlockSpec((1,) + a.shape[1:], lambda b: (b, 0, 0))

    def resident_spec(a):                    # constant block index -> weights stay in VMEM
        nd = a.ndim

        def idx(b):
            return (0,) * nd
        return pl.BlockSpec(a.shape, idx)

    weights = [
        params["ln"],
        params["self_w_in"], params["self_b_in"], params["self_wo"], params["self_bo"],
        params["cross_w_in"], params["cross_b_in"], params["cross_wo"], params["cross_bo"],
        params["fc1_w"], params["fc1_b"], params["fc2_w"], params["fc2_b"],
        params["norm"],
    ]

    in_specs = ([batch_spec(tgt), batch_spec(zx_feat), batch_spec(query_pos),
                 batch_spec(pos_embed_total)]
                + [resident_spec(w) for w in weights])

    return pl.pallas_call(
        kernel,
        out_shape=jax.ShapeDtypeStruct((B, Lq, C), tgt.dtype),
        grid=(B,),
        in_specs=in_specs,
        out_specs=pl.BlockSpec((1, Lq, C), lambda b: (b, 0, 0)),
        compiler_params=pltpu.CompilerParams(dimension_semantics=("parallel",)),
    )(tgt, zx_feat, query_pos, pos_embed_total, *weights)


# ----------------------------- pure-JAX reference ----------------------------

def _reference(tgt, zx_feat, pos_embed_total, query_pos, params, num_heads, eps=1e-5):
    C = tgt.shape[-1]

    def ln(v, g, b):
        mu = jnp.mean(v, -1, keepdims=True)
        var = jnp.mean(jnp.square(v - mu), -1, keepdims=True)
        return (v - mu) * jax.lax.rsqrt(var + eps) * g + b

    def mha(q_in, k_in, v_in, wq, bq, wk, bk, wv, bv, wo, bo, H):
        B, Lq, _ = q_in.shape
        Lk = k_in.shape[1]
        Dh = C // H
        q = (q_in @ wq + bq).reshape(B, Lq, H, Dh).transpose(0, 2, 1, 3)
        k = (k_in @ wk + bk).reshape(B, Lk, H, Dh).transpose(0, 2, 1, 3)
        v = (v_in @ wv + bv).reshape(B, Lk, H, Dh).transpose(0, 2, 1, 3)
        s = jnp.einsum("bhqd,bhkd->bhqk", q, k) / math.sqrt(Dh)
        p = jax.nn.softmax(s, axis=-1)
        o = jnp.einsum("bhqk,bhkd->bhqd", p, v).transpose(0, 2, 1, 3).reshape(B, Lq, C)
        return o @ wo + bo

    x = tgt
    for l in range(params["ln"].shape[0]):
        lnp = params["ln"][l]
        n1 = ln(x, lnp[0], lnp[1])
        a = n1 + query_pos
        sw, sb = params["self_w_in"][l], params["self_b_in"][l][0]
        x = x + mha(a, a, n1,
                    sw[:, :C], sb[:C], sw[:, C:2 * C], sb[C:2 * C], sw[:, 2 * C:], sb[2 * C:],
                    params["self_wo"][l], params["self_bo"][l][0], num_heads)
        n2q = ln(x, lnp[2], lnp[3])
        n2m = ln(zx_feat, lnp[4], lnp[5])
        cw, cb = params["cross_w_in"][l], params["cross_b_in"][l][0]
        x = x + mha(n2q + query_pos, n2m + pos_embed_total, n2m,
                    cw[:, :C], cb[:C], cw[:, C:2 * C], cb[C:2 * C], cw[:, 2 * C:], cb[2 * C:],
                    params["cross_wo"][l], params["cross_bo"][l][0], num_heads)
        n3 = ln(x, lnp[6], lnp[7])
        h = n3 @ params["fc1_w"][l] + params["fc1_b"][l][0]
        h = 0.5 * h * (1.0 + jax.lax.erf(h * 0.7071067811865476))
        x = x + (h @ params["fc2_w"][l] + params["fc2_b"][l][0])
    return ln(x, params["norm"][0], params["norm"][1])


# --------------------------- deterministic params ---------------------------

def init_params(key, dim, num_layers, mlp_ratio=4):
    L, hid, s = num_layers, dim * mlp_ratio, 0.02
    ks = jax.random.split(key, 14)
    g = 1.0 + 0.1 * jax.random.normal(ks[0], (L, 4, dim), jnp.float32)   # 4 layernorm gains
    b = 0.1 * jax.random.normal(ks[1], (L, 4, dim), jnp.float32)         # 4 layernorm biases
    ln = jnp.stack([g[:, 0], b[:, 0], g[:, 1], b[:, 1],
                    g[:, 2], b[:, 2], g[:, 3], b[:, 3]], axis=1)         # (L, 8, dim)
    fg = 1.0 + 0.1 * jax.random.normal(ks[2], (dim,), jnp.float32)
    fb = 0.1 * jax.random.normal(ks[3], (dim,), jnp.float32)
    return {
        "ln": ln,
        "self_w_in": jax.random.normal(ks[4], (L, dim, 3 * dim), jnp.float32) * s,
        "self_b_in": jax.random.normal(ks[5], (L, 1, 3 * dim), jnp.float32) * s,
        "self_wo": jax.random.normal(ks[6], (L, dim, dim), jnp.float32) * s,
        "self_bo": jax.random.normal(ks[7], (L, 1, dim), jnp.float32) * s,
        "cross_w_in": jax.random.normal(ks[8], (L, dim, 3 * dim), jnp.float32) * s,
        "cross_b_in": jax.random.normal(ks[9], (L, 1, 3 * dim), jnp.float32) * s,
        "cross_wo": jax.random.normal(ks[10], (L, dim, dim), jnp.float32) * s,
        "cross_bo": jax.random.normal(ks[11], (L, 1, dim), jnp.float32) * s,
        "fc1_w": jax.random.normal(ks[12], (L, dim, hid), jnp.float32) * s,
        "fc1_b": jnp.zeros((L, 1, hid), jnp.float32),
        "fc2_w": jax.random.normal(ks[13], (L, hid, dim), jnp.float32) * s,
        "fc2_b": jnp.zeros((L, 1, dim), jnp.float32),
        "norm": jnp.stack([fg, fb]),
    }


# ---------------------------------- main ------------------------------------

if __name__ == "__main__":
    B, Lq, Lm, C = 2, 8, 16, 32      # batch, num queries, memory tokens, dim
    num_heads = 4
    num_layers = 2

    root = jax.random.PRNGKey(0)
    k_tgt, k_mem, k_qp, k_pe, k_par = jax.random.split(root, 5)

    tgt = jax.random.normal(k_tgt, (B, Lq, C), jnp.float32)
    zx_feat = jax.random.normal(k_mem, (B, Lm, C), jnp.float32)
    query_pos = jax.random.normal(k_qp, (B, Lq, C), jnp.float32)
    pos_embed_total = jax.random.normal(k_pe, (B, Lm, C), jnp.float32)
    params = init_params(k_par, C, num_layers)

    out = target_query_decoder_block(
        tgt, zx_feat, pos_embed_total, query_pos, params, num_heads
    )
    out = jax.block_until_ready(out)

    assert out.shape == (B, Lq, C) and out.dtype == jnp.float32
    assert bool(jnp.all(jnp.isfinite(out)))
    ref = _reference(tgt, zx_feat, pos_embed_total, query_pos, params, num_heads)
    err = float(jnp.max(jnp.abs(out - ref)))
    assert err < 1e-2, f"max abs err vs reference: {err}"
    print("KERNEL_OK")
</pallas_src>

<mosaic_0001>
module attributes {stable_mosaic.version = 11 : i64} {
  func.func @_block_kernel(%arg0: i32, %arg1: memref<1x8x32xf32, #tpu.memory_space<vmem>>, %arg2: memref<1x16x32xf32, #tpu.memory_space<vmem>>, %arg3: memref<1x8x32xf32, #tpu.memory_space<vmem>>, %arg4: memref<1x16x32xf32, #tpu.memory_space<vmem>>, %arg5: memref<2x8x32xf32, #tpu.memory_space<vmem>>, %arg6: memref<2x32x96xf32, #tpu.memory_space<vmem>>, %arg7: memref<2x1x96xf32, #tpu.memory_space<vmem>>, %arg8: memref<2x32x32xf32, #tpu.memory_space<vmem>>, %arg9: memref<2x1x32xf32, #tpu.memory_space<vmem>>, %arg10: memref<2x32x96xf32, #tpu.memory_space<vmem>>, %arg11: memref<2x1x96xf32, #tpu.memory_space<vmem>>, %arg12: memref<2x32x32xf32, #tpu.memory_space<vmem>>, %arg13: memref<2x1x32xf32, #tpu.memory_space<vmem>>, %arg14: memref<2x32x128xf32, #tpu.memory_space<vmem>>, %arg15: memref<2x1x128xf32, #tpu.memory_space<vmem>>, %arg16: memref<2x128x32xf32, #tpu.memory_space<vmem>>, %arg17: memref<2x1x32xf32, #tpu.memory_space<vmem>>, %arg18: memref<2x32xf32, #tpu.memory_space<vmem>>, %arg19: memref<1x8x32xf32, #tpu.memory_space<vmem>>) attributes {dimension_semantics = [#tpu.dimension_semantics<parallel>], iteration_bounds = array<i64: 2>, scalar_prefetch = 0 : i64, scratch_operands = 0 : i64, tpu.core_type = #tpu.core_type<tc>, window_params = [{transform_indices = @transform_0, window_bounds = array<i64: 1, 8, 32>}, {transform_indices = @transform_1, window_bounds = array<i64: 1, 16, 32>}, {transform_indices = @transform_2, window_bounds = array<i64: 1, 8, 32>}, {transform_indices = @transform_3, window_bounds = array<i64: 1, 16, 32>}, {pipeline_mode = #tpu.pipeline_mode<synchronous>, transform_indices = @transform_4, window_bounds = array<i64: 2, 8, 32>}, {pipeline_mode = #tpu.pipeline_mode<synchronous>, transform_indices = @transform_5, window_bounds = array<i64: 2, 32, 96>}, {pipeline_mode = #tpu.pipeline_mode<synchronous>, transform_indices = @transform_6, window_bounds = array<i64: 2, 1, 96>}, {pipeline_mode = #tpu.pipeline_mode<synchronous>, transform_indices = @transform_7, window_bounds = array<i64: 2, 32, 32>}, {pipeline_mode = #tpu.pipeline_mode<synchronous>, transform_indices = @transform_8, window_bounds = array<i64: 2, 1, 32>}, {pipeline_mode = #tpu.pipeline_mode<synchronous>, transform_indices = @transform_9, window_bounds = array<i64: 2, 32, 96>}, {pipeline_mode = #tpu.pipeline_mode<synchronous>, transform_indices = @transform_10, window_bounds = array<i64: 2, 1, 96>}, {pipeline_mode = #tpu.pipeline_mode<synchronous>, transform_indices = @transform_11, window_bounds = array<i64: 2, 32, 32>}, {pipeline_mode = #tpu.pipeline_mode<synchronous>, transform_indices = @transform_12, window_bounds = array<i64: 2, 1, 32>}, {pipeline_mode = #tpu.pipeline_mode<synchronous>, transform_indices = @transform_13, window_bounds = array<i64: 2, 32, 128>}, {pipeline_mode = #tpu.pipeline_mode<synchronous>, transform_indices = @transform_14, window_bounds = array<i64: 2, 1, 128>}, {pipeline_mode = #tpu.pipeline_mode<synchronous>, transform_indices = @transform_15, window_bounds = array<i64: 2, 128, 32>}, {pipeline_mode = #tpu.pipeline_mode<synchronous>, transform_indices = @transform_16, window_bounds = array<i64: 2, 1, 32>}, {pipeline_mode = #tpu.pipeline_mode<synchronous>, transform_indices = @transform_17, window_bounds = array<i64: 2, 32>}, {transform_indices = @transform_18, window_bounds = array<i64: 1, 8, 32>}]} {
    %c0 = arith.constant 0 : index
    %c0_0 = arith.constant 0 : index
    %c0_1 = arith.constant 0 : index
    %0 = vector.load %arg1[%c0, %c0_0, %c0_1] : memref<1x8x32xf32, #tpu.memory_space<vmem>>, vector<1x8x32xf32>
    %1 = vector.shape_cast %0 : vector<1x8x32xf32> to vector<8x32xf32>
    %c0_2 = arith.constant 0 : index
    %c0_3 = arith.constant 0 : index
    %c0_4 = arith.constant 0 : index
    %2 = vector.load %arg2[%c0_2, %c0_3, %c0_4] : memref<1x16x32xf32, #tpu.memory_space<vmem>>, vector<1x16x32xf32>
    %3 = vector.shape_cast %2 : vector<1x16x32xf32> to vector<16x32xf32>
    %c0_5 = arith.constant 0 : index
    %c0_6 = arith.constant 0 : index
    %c0_7 = arith.constant 0 : index
    %4 = vector.load %arg3[%c0_5, %c0_6, %c0_7] : memref<1x8x32xf32, #tpu.memory_space<vmem>>, vector<1x8x32xf32>
    %5 = vector.shape_cast %4 : vector<1x8x32xf32> to vector<8x32xf32>
    %c0_8 = arith.constant 0 : index
    %c0_9 = arith.constant 0 : index
    %c0_10 = arith.constant 0 : index
    %6 = vector.load %arg4[%c0_8, %c0_9, %c0_10] : memref<1x16x32xf32, #tpu.memory_space<vmem>>, vector<1x16x32xf32>
    %7 = vector.shape_cast %6 : vector<1x16x32xf32> to vector<16x32xf32>
    %c0_11 = arith.constant 0 : index
    %c0_12 = arith.constant 0 : index
    %c0_13 = arith.constant 0 : index
    %8 = vector.load %arg5[%c0_11, %c0_12, %c0_13] : memref<2x8x32xf32, #tpu.memory_space<vmem>>, vector<1x8x32xf32>
    %9 = vector.shape_cast %8 : vector<1x8x32xf32> to vector<8x32xf32>
    %10 = vector.extract_strided_slice %9 {offsets = [0, 0], sizes = [1, 32], strides = [1, 1]} : vector<8x32xf32> to vector<1x32xf32>
    %11 = vector.extract_strided_slice %9 {offsets = [1, 0], sizes = [1, 32], strides = [1, 1]} : vector<8x32xf32> to vector<1x32xf32>
    %cst = arith.constant dense<0.000000e+00> : vector<8xf32>
    %12 = vector.multi_reduction <add>, %1, %cst [1] : vector<8x32xf32> to vector<8xf32>
    %13 = vector.shape_cast %12 : vector<8xf32> to vector<8x1xf32>
    %cst_14 = arith.constant 3.200000e+01 : f32
    %14 = vector.broadcast %cst_14 : f32 to vector<8x1xf32>
    %15 = arith.divf %13, %14 : vector<8x1xf32>
    %16 = vector.broadcast %15 : vector<8x1xf32> to vector<8x32xf32>
    %17 = arith.subf %1, %16 : vector<8x32xf32>
    %18 = arith.mulf %17, %17 : vector<8x32xf32>
    %cst_15 = arith.constant dense<0.000000e+00> : vector<8xf32>
    %19 = vector.multi_reduction <add>, %18, %cst_15 [1] : vector<8x32xf32> to vector<8xf32>
    %20 = vector.shape_cast %19 : vector<8xf32> to vector<8x1xf32>
    %cst_16 = arith.constant 3.200000e+01 : f32
    %21 = vector.broadcast %cst_16 : f32 to vector<8x1xf32>
    %22 = arith.divf %20, %21 : vector<8x1xf32>
    %23 = vector.broadcast %15 : vector<8x1xf32> to vector<8x32xf32>
    %24 = arith.subf %1, %23 : vector<8x32xf32>
    %cst_17 = arith.constant 9.99999974E-6 : f32
    %25 = vector.broadcast %cst_17 : f32 to vector<8x1xf32>
    %26 = arith.addf %22, %25 : vector<8x1xf32>
    %27 = math.rsqrt %26 : vector<8x1xf32>
    %28 = vector.broadcast %27 : vector<8x1xf32> to vector<8x32xf32>
    %29 = arith.mulf %24, %28 : vector<8x32xf32>
    %30 = vector.broadcast %10 : vector<1x32xf32> to vector<8x32xf32>
    %31 = arith.mulf %29, %30 : vector<8x32xf32>
    %32 = vector.broadcast %11 : vector<1x32xf32> to vector<8x32xf32>
    %33 = arith.addf %31, %32 : vector<8x32xf32>
    %34 = arith.addf %33, %5 : vector<8x32xf32>
    %c0_18 = arith.constant 0 : index
    %c0_19 = arith.constant 0 : index
    %c0_20 = arith.constant 0 : index
    %35 = vector.load %arg6[%c0_18, %c0_19, %c0_20] : memref<2x32x96xf32, #tpu.memory_space<vmem>>, vector<1x32x96xf32>
    %36 = vector.shape_cast %35 : vector<1x32x96xf32> to vector<32x96xf32>
    %c0_21 = arith.constant 0 : index
    %c0_22 = arith.constant 0 : index
    %c0_23 = arith.constant 0 : index
    %37 = vector.load %arg7[%c0_21, %c0_22, %c0_23] : memref<2x1x96xf32, #tpu.memory_space<vmem>>, vector<1x1x96xf32>
    %38 = vector.shape_cast %37 : vector<1x1x96xf32> to vector<1x96xf32>
    %39 = vector.extract_strided_slice %36 {offsets = [0, 0], sizes = [32, 64], strides = [1, 1]} : vector<32x96xf32> to vector<32x64xf32>
    %cst_24 = arith.constant dense<0.000000e+00> : vector<8x64xf32>
    %40 = tpu.matmul %34, %39, %cst_24 {dimension_numbers = #tpu.dot_dimension_numbers<[1], [0], [0], [1], [0, 0, 1, 1], [], []>} : vector<8x32xf32>, vector<32x64xf32>, vector<8x64xf32> -> vector<8x64xf32>
    %41 = vector.extract_strided_slice %38 {offsets = [0, 0], sizes = [1, 64], strides = [1, 1]} : vector<1x96xf32> to vector<1x64xf32>
    %42 = vector.broadcast %41 : vector<1x64xf32> to vector<8x64xf32>
    %43 = arith.addf %40, %42 : vector<8x64xf32>
    %44 = vector.extract_strided_slice %36 {offsets = [0, 64], sizes = [32, 32], strides = [1, 1]} : vector<32x96xf32> to vector<32x32xf32>
    %cst_25 = arith.constant dense<0.000000e+00> : vector<8x32xf32>
    %45 = tpu.matmul %33, %44, %cst_25 {dimension_numbers = #tpu.dot_dimension_numbers<[1], [0], [0], [1], [0, 0, 1, 1], [], []>} : vector<8x32xf32>, vector<32x32xf32>, vector<8x32xf32> -> vector<8x32xf32>
    %46 = vector.extract_strided_slice %38 {offsets = [0, 64], sizes = [1, 32], strides = [1, 1]} : vector<1x96xf32> to vector<1x32xf32>
    %47 = vector.broadcast %46 : vector<1x32xf32> to vector<8x32xf32>
    %48 = arith.addf %45, %47 : vector<8x32xf32>
    %49 = vector.extract_strided_slice %43 {offsets = [0, 0], sizes = [8, 32], strides = [1, 1]} : vector<8x64xf32> to vector<8x32xf32>
    %50 = vector.extract_strided_slice %43 {offsets = [0, 32], sizes = [8, 32], strides = [1, 1]} : vector<8x64xf32> to vector<8x32xf32>
    %51 = vector.extract_strided_slice %49 {offsets = [0, 0], sizes = [8, 8], strides = [1, 1]} : vector<8x32xf32> to vector<8x8xf32>
    %52 = vector.extract_strided_slice %50 {offsets = [0, 0], sizes = [8, 8], strides = [1, 1]} : vector<8x32xf32> to vector<8x8xf32>
    %53 = vector.extract_strided_slice %48 {offsets = [0, 0], sizes = [8, 8], strides = [1, 1]} : vector<8x32xf32> to vector<8x8xf32>
    %cst_26 = arith.constant dense<0.000000e+00> : vector<8x8xf32>
    %54 = tpu.matmul %51, %52, %cst_26 {dimension_numbers = #tpu.dot_dimension_numbers<[1], [1], [0], [0], [0, 0, 1, 0], [], []>} : vector<8x8xf32>, vector<8x8xf32>, vector<8x8xf32> -> vector<8x8xf32>
    %cst_27 = arith.constant 0.353553385 : f32
    %55 = vector.broadcast %cst_27 : f32 to vector<8x8xf32>
    %56 = arith.mulf %54, %55 : vector<8x8xf32>
    %cst_28 = arith.constant dense<0xFF800000> : vector<8xf32>
    %57 = vector.multi_reduction <maximumf>, %56, %cst_28 [1] : vector<8x8xf32> to vector<8xf32>
    %58 = vector.shape_cast %57 : vector<8xf32> to vector<8x1xf32>
    %59 = vector.broadcast %58 : vector<8x1xf32> to vector<8x8xf32>
    %60 = arith.subf %56, %59 : vector<8x8xf32>
    %61 = math.exp %60 : vector<8x8xf32>
    %cst_29 = arith.constant dense<0.000000e+00> : vector<8xf32>
    %62 = vector.multi_reduction <add>, %61, %cst_29 [1] : vector<8x8xf32> to vector<8xf32>
    %63 = vector.shape_cast %62 : vector<8xf32> to vector<8x1xf32>
    %64 = tpu.reciprocal %63 {approx = true} : vector<8x1xf32> -> vector<8x1xf32>
    %65 = vector.broadcast %64 : vector<8x1xf32> to vector<8x8xf32>
    %66 = arith.mulf %61, %65 : vector<8x8xf32>
    %cst_30 = arith.constant dense<0.000000e+00> : vector<8x8xf32>
    %67 = tpu.matmul %66, %53, %cst_30 {dimension_numbers = #tpu.dot_dimension_numbers<[1], [0], [0], [1], [0, 0, 1, 1], [], []>} : vector<8x8xf32>, vector<8x8xf32>, vector<8x8xf32> -> vector<8x8xf32>
    %68 = vector.extract_strided_slice %49 {offsets = [0, 8], sizes = [8, 8], strides = [1, 1]} : vector<8x32xf32> to vector<8x8xf32>
    %69 = vector.extract_strided_slice %50 {offsets = [0, 8], sizes = [8, 8], strides = [1, 1]} : vector<8x32xf32> to vector<8x8xf32>
    %70 = vector.extract_strided_slice %48 {offsets = [0, 8], sizes = [8, 8], strides = [1, 1]} : vector<8x32xf32> to vector<8x8xf32>
    %cst_31 = arith.constant dense<0.000000e+00> : vector<8x8xf32>
    %71 = tpu.matmul %68, %69, %cst_31 {dimension_numbers = #tpu.dot_dimension_numbers<[1], [1], [0], [0], [0, 0, 1, 0], [], []>} : vector<8x8xf32>, vector<8x8xf32>, vector<8x8xf32> -> vector<8x8xf32>
    %cst_32 = arith.constant 0.353553385 : f32
    %72 = vector.broadcast %cst_32 : f32 to vector<8x8xf32>
    %73 = arith.mulf %71, %72 : vector<8x8xf32>
    %cst_33 = arith.constant dense<0xFF800000> : vector<8xf32>
    %74 = vector.multi_reduction <maximumf>, %73, %cst_33 [1] : vector<8x8xf32> to vector<8xf32>
    %75 = vector.shape_cast %74 : vector<8xf32> to vector<8x1xf32>
    %76 = vector.broadcast %75 : vector<8x1xf32> to vector<8x8xf32>
    %77 = arith.subf %73, %76 : vector<8x8xf32>
    %78 = math.exp %77 : vector<8x8xf32>
    %cst_34 = arith.constant dense<0.000000e+00> : vector<8xf32>
    %79 = vector.multi_reduction <add>, %78, %cst_34 [1] : vector<8x8xf32> to vector<8xf32>
    %80 = vector.shape_cast %79 : vector<8xf32> to vector<8x1xf32>
    %81 = tpu.reciprocal %80 {approx = true} : vector<8x1xf32> -> vector<8x1xf32>
    %82 = vector.broadcast %81 : vector<8x1xf32> to vector<8x8xf32>
    %83 = arith.mulf %78, %82 : vector<8x8xf32>
    %cst_35 = arith.constant dense<0.000000e+00> : vector<8x8xf32>
    %84 = tpu.matmul %83, %70, %cst_35 {dimension_numbers = #tpu.dot_dimension_numbers<[1], [0], [0], [1], [0, 0, 1, 1], [], []>} : vector<8x8xf32>, vector<8x8xf32>, vector<8x8xf32> -> vector<8x8xf32>
    %85 = vector.extract_strided_slice %49 {offsets = [0, 16], sizes = [8, 8], strides = [1, 1]} : vector<8x32xf32> to vector<8x8xf32>
    %86 = vector.extract_strided_slice %50 {offsets = [0, 16], sizes = [8, 8], strides = [1, 1]} : vector<8x32xf32> to vector<8x8xf32>
    %87 = vector.extract_strided_slice %48 {offsets = [0, 16], sizes = [8, 8], strides = [1, 1]} : vector<8x32xf32> to vector<8x8xf32>
    %cst_36 = arith.constant dense<0.000000e+00> : vector<8x8xf32>
    %88 = tpu.matmul %85, %86, %cst_36 {dimension_numbers = #tpu.dot_dimension_numbers<[1], [1], [0], [0], [0, 0, 1, 0], [], []>} : vector<8x8xf32>, vector<8x8xf32>, vector<8x8xf32> -> vector<8x8xf32>
    %cst_37 = arith.constant 0.353553385 : f32
    %89 = vector.broadcast %cst_37 : f32 to vector<8x8xf32>
    %90 = arith.mulf %88, %89 : vector<8x8xf32>
    %cst_38 = arith.constant dense<0xFF800000> : vector<8xf32>
    %91 = vector.multi_reduction <maximumf>, %90, %cst_38 [1] : vector<8x8xf32> to vector<8xf32>
    %92 = vector.shape_cast %91 : vector<8xf32> to vector<8x1xf32>
    %93 = vector.broadcast %92 : vector<8x1xf32> to vector<8x8xf32>
    %94 = arith.subf %90, %93 : vector<8x8xf32>
    %95 = math.exp %94 : vector<8x8xf32>
    %cst_39 = arith.constant dense<0.000000e+00> : vector<8xf32>
    %96 = vector.multi_reduction <add>, %95, %cst_39 [1] : vector<8x8xf32> to vector<8xf32>
    %97 = vector.shape_cast %96 : vector<8xf32> to vector<8x1xf32>
    %98 = tpu.reciprocal %97 {approx = true} : vector<8x1xf32> -> vector<8x1xf32>
    %99 = vector.broadcast %98 : vector<8x1xf32> to vector<8x8xf32>
    %100 = arith.mulf %95, %99 : vector<8x8xf32>
    %cst_40 = arith.constant dense<0.000000e+00> : vector<8x8xf32>
    %101 = tpu.matmul %100, %87, %cst_40 {dimension_numbers = #tpu.dot_dimension_numbers<[1], [0], [0], [1], [0, 0, 1, 1], [], []>} : vector<8x8xf32>, vector<8x8xf32>, vector<8x8xf32> -> vector<8x8xf32>
    %102 = vector.extract_strided_slice %49 {offsets = [0, 24], sizes = [8, 8], strides = [1, 1]} : vector<8x32xf32> to vector<8x8xf32>
    %103 = vector.extract_strided_slice %50 {offsets = [0, 24], sizes = [8, 8], strides = [1, 1]} : vector<8x32xf32> to vector<8x8xf32>
    %104 = vector.extract_strided_slice %48 {offsets = [0, 24], sizes = [8, 8], strides = [1, 1]} : vector<8x32xf32> to vector<8x8xf32>
    %cst_41 = arith.constant dense<0.000000e+00> : vector<8x8xf32>
    %105 = tpu.matmul %102, %103, %cst_41 {dimension_numbers = #tpu.dot_dimension_numbers<[1], [1], [0], [0], [0, 0, 1, 0], [], []>} : vector<8x8xf32>, vector<8x8xf32>, vector<8x8xf32> -> vector<8x8xf32>
    %cst_42 = arith.constant 0.353553385 : f32
    %106 = vector.broadcast %cst_42 : f32 to vector<8x8xf32>
    %107 = arith.mulf %105, %106 : vector<8x8xf32>
    %cst_43 = arith.constant dense<0xFF800000> : vector<8xf32>
    %108 = vector.multi_reduction <maximumf>, %107, %cst_43 [1] : vector<8x8xf32> to vector<8xf32>
    %109 = vector.shape_cast %108 : vector<8xf32> to vector<8x1xf32>
    %110 = vector.broadcast %109 : vector<8x1xf32> to vector<8x8xf32>
    %111 = arith.subf %107, %110 : vector<8x8xf32>
    %112 = math.exp %111 : vector<8x8xf32>
    %cst_44 = arith.constant dense<0.000000e+00> : vector<8xf32>
    %113 = vector.multi_reduction <add>, %112, %cst_44 [1] : vector<8x8xf32> to vector<8xf32>
    %114 = vector.shape_cast %113 : vector<8xf32> to vector<8x1xf32>
    %115 = tpu.reciprocal %114 {approx = true} : vector<8x1xf32> -> vector<8x1xf32>
    %116 = vector.broadcast %115 : vector<8x1xf32> to vector<8x8xf32>
    %117 = arith.mulf %112, %116 : vector<8x8xf32>
    %cst_45 = arith.constant dense<0.000000e+00> : vector<8x8xf32>
    %118 = tpu.matmul %117, %104, %cst_45 {dimension_numbers = #tpu.dot_dimension_numbers<[1], [0], [0], [1], [0, 0, 1, 1], [], []>} : vector<8x8xf32>, vector<8x8xf32>, vector<8x8xf32> -> vector<8x8xf32>
    %119 = tpu.concatenate %67, %84, %101, %118 in 1 : vector<8x8xf32>, vector<8x8xf32>, vector<8x8xf32>, vector<8x8xf32> -> vector<8x32xf32>
    %c0_46 = arith.constant 0 : index
    %c0_47 = arith.constant 0 : index
    %c0_48 = arith.constant 0 : index
    %120 = vector.load %arg8[%c0_46, %c0_47, %c0_48] : memref<2x32x32xf32, #tpu.memory_space<vmem>>, vector<1x32x32xf32>
    %121 = vector.shape_cast %120 : vector<1x32x32xf32> to vector<32x32xf32>
    %cst_49 = arith.constant dense<0.000000e+00> : vector<8x32xf32>
    %122 = tpu.matmul %119, %121, %cst_49 {dimension_numbers = #tpu.dot_dimension_numbers<[1], [0], [0], [1], [0, 0, 1, 1], [], []>} : vector<8x32xf32>, vector<32x32xf32>, vector<8x32xf32> -> vector<8x32xf32>
    %c0_50 = arith.constant 0 : index
    %c0_51 = arith.constant 0 : index
    %c0_52 = arith.constant 0 : index
    %123 = vector.load %arg9[%c0_50, %c0_51, %c0_52] : memref<2x1x32xf32, #tpu.memory_space<vmem>>, vector<1x1x32xf32>
    %124 = vector.shape_cast %123 : vector<1x1x32xf32> to vector<1x32xf32>
    %125 = vector.broadcast %124 : vector<1x32xf32> to vector<8x32xf32>
    %126 = arith.addf %122, %125 : vector<8x32xf32>
    %127 = arith.addf %1, %126 : vector<8x32xf32>
    %128 = vector.extract_strided_slice %9 {offsets = [2, 0], sizes = [1, 32], strides = [1, 1]} : vector<8x32xf32> to vector<1x32xf32>
    %129 = vector.extract_strided_slice %9 {offsets = [3, 0], sizes = [1, 32], strides = [1, 1]} : vector<8x32xf32> to vector<1x32xf32>
    %cst_53 = arith.constant dense<0.000000e+00> : vector<8xf32>
    %130 = vector.multi_reduction <add>, %127, %cst_53 [1] : vector<8x32xf32> to vector<8xf32>
    %131 = vector.shape_cast %130 : vector<8xf32> to vector<8x1xf32>
    %cst_54 = arith.constant 3.200000e+01 : f32
    %132 = vector.broadcast %cst_54 : f32 to vector<8x1xf32>
    %133 = arith.divf %131, %132 : vector<8x1xf32>
    %134 = vector.broadcast %133 : vector<8x1xf32> to vector<8x32xf32>
    %135 = arith.subf %127, %134 : vector<8x32xf32>
    %136 = arith.mulf %135, %135 : vector<8x32xf32>
    %cst_55 = arith.constant dense<0.000000e+00> : vector<8xf32>
    %137 = vector.multi_reduction <add>, %136, %cst_55 [1] : vector<8x32xf32> to vector<8xf32>
    %138 = vector.shape_cast %137 : vector<8xf32> to vector<8x1xf32>
    %cst_56 = arith.constant 3.200000e+01 : f32
    %139 = vector.broadcast %cst_56 : f32 to vector<8x1xf32>
    %140 = arith.divf %138, %139 : vector<8x1xf32>
    %141 = vector.broadcast %133 : vector<8x1xf32> to vector<8x32xf32>
    %142 = arith.subf %127, %141 : vector<8x32xf32>
    %cst_57 = arith.constant 9.99999974E-6 : f32
    %143 = vector.broadcast %cst_57 : f32 to vector<8x1xf32>
    %144 = arith.addf %140, %143 : vector<8x1xf32>
    %145 = math.rsqrt %144 : vector<8x1xf32>
    %146 = vector.broadcast %145 : vector<8x1xf32> to vector<8x32xf32>
    %147 = arith.mulf %142, %146 : vector<8x32xf32>
    %148 = vector.broadcast %128 : vector<1x32xf32> to vector<8x32xf32>
    %149 = arith.mulf %147, %148 : vector<8x32xf32>
    %150 = vector.broadcast %129 : vector<1x32xf32> to vector<8x32xf32>
    %151 = arith.addf %149, %150 : vector<8x32xf32>
    %152 = vector.extract_strided_slice %9 {offsets = [4, 0], sizes = [1, 32], strides = [1, 1]} : vector<8x32xf32> to vector<1x32xf32>
    %153 = vector.extract_strided_slice %9 {offsets = [5, 0], sizes = [1, 32], strides = [1, 1]} : vector<8x32xf32> to vector<1x32xf32>
    %cst_58 = arith.constant dense<0.000000e+00> : vector<16xf32>
    %154 = vector.multi_reduction <add>, %3, %cst_58 [1] : vector<16x32xf32> to vector<16xf32>
    %155 = vector.shape_cast %154 : vector<16xf32> to vector<16x1xf32>
    %cst_59 = arith.constant 3.200000e+01 : f32
    %156 = vector.broadcast %cst_59 : f32 to vector<16x1xf32>
    %157 = arith.divf %155, %156 : vector<16x1xf32>
    %158 = vector.broadcast %157 : vector<16x1xf32> to vector<16x32xf32>
    %159 = arith.subf %3, %158 : vector<16x32xf32>
    %160 = arith.mulf %159, %159 : vector<16x32xf32>
    %cst_60 = arith.constant dense<0.000000e+00> : vector<16xf32>
    %161 = vector.multi_reduction <add>, %160, %cst_60 [1] : vector<16x32xf32> to vector<16xf32>
    %162 = vector.shape_cast %161 : vector<16xf32> to vector<16x1xf32>
    %cst_61 = arith.constant 3.200000e+01 : f32
    %163 = vector.broadcast %cst_61 : f32 to vector<16x1xf32>
    %164 = arith.divf %162, %163 : vector<16x1xf32>
    %165 = vector.broadcast %157 : vector<16x1xf32> to vector<16x32xf32>
    %166 = arith.subf %3, %165 : vector<16x32xf32>
    %cst_62 = arith.constant 9.99999974E-6 : f32
    %167 = vector.broadcast %cst_62 : f32 to vector<16x1xf32>
    %168 = arith.addf %164, %167 : vector<16x1xf32>
    %169 = math.rsqrt %168 : vector<16x1xf32>
    %170 = vector.broadcast %169 : vector<16x1xf32> to vector<16x32xf32>
    %171 = arith.mulf %166, %170 : vector<16x32xf32>
    %172 = vector.broadcast %152 : vector<1x32xf32> to vector<16x32xf32>
    %173 = arith.mulf %171, %172 : vector<16x32xf32>
    %174 = vector.broadcast %153 : vector<1x32xf32> to vector<16x32xf32>
    %175 = arith.addf %173, %174 : vector<16x32xf32>
    %c0_63 = arith.constant 0 : index
    %c0_64 = arith.constant 0 : index
    %c0_65 = arith.constant 0 : index
    %176 = vector.load %arg10[%c0_63, %c0_64, %c0_65] : memref<2x32x96xf32, #tpu.memory_space<vmem>>, vector<1x32x96xf32>
    %177 = vector.shape_cast %176 : vector<1x32x96xf32> to vector<32x96xf32>
    %c0_66 = arith.constant 0 : index
    %c0_67 = arith.constant 0 : index
    %c0_68 = arith.constant 0 : index
    %178 = vector.load %arg11[%c0_66, %c0_67, %c0_68] : memref<2x1x96xf32, #tpu.memory_space<vmem>>, vector<1x1x96xf32>
    %179 = vector.shape_cast %178 : vector<1x1x96xf32> to vector<1x96xf32>
    %180 = arith.addf %151, %5 : vector<8x32xf32>
    %181 = vector.extract_strided_slice %177 {offsets = [0, 0], sizes = [32, 32], strides = [1, 1]} : vector<32x96xf32> to vector<32x32xf32>
    %cst_69 = arith.constant dense<0.000000e+00> : vector<8x32xf32>
    %182 = tpu.matmul %180, %181, %cst_69 {dimension_numbers = #tpu.dot_dimension_numbers<[1], [0], [0], [1], [0, 0, 1, 1], [], []>} : vector<8x32xf32>, vector<32x32xf32>, vector<8x32xf32> -> vector<8x32xf32>
    %183 = vector.extract_strided_slice %179 {offsets = [0, 0], sizes = [1, 32], strides = [1, 1]} : vector<1x96xf32> to vector<1x32xf32>
    %184 = vector.broadcast %183 : vector<1x32xf32> to vector<8x32xf32>
    %185 = arith.addf %182, %184 : vector<8x32xf32>
    %186 = arith.addf %175, %7 : vector<16x32xf32>
    %187 = vector.extract_strided_slice %177 {offsets = [0, 32], sizes = [32, 32], strides = [1, 1]} : vector<32x96xf32> to vector<32x32xf32>
    %cst_70 = arith.constant dense<0.000000e+00> : vector<16x32xf32>
    %188 = tpu.matmul %186, %187, %cst_70 {dimension_numbers = #tpu.dot_dimension_numbers<[1], [0], [0], [1], [0, 0, 1, 1], [], []>} : vector<16x32xf32>, vector<32x32xf32>, vector<16x32xf32> -> vector<16x32xf32>
    %189 = vector.extract_strided_slice %179 {offsets = [0, 32], sizes = [1, 32], strides = [1, 1]} : vector<1x96xf32> to vector<1x32xf32>
    %190 = vector.broadcast %189 : vector<1x32xf32> to vector<16x32xf32>
    %191 = arith.addf %188, %190 : vector<16x32xf32>
    %192 = vector.extract_strided_slice %177 {offsets = [0, 64], sizes = [32, 32], strides = [1, 1]} : vector<32x96xf32> to vector<32x32xf32>
    %cst_71 = arith.constant dense<0.000000e+00> : vector<16x32xf32>
    %193 = tpu.matmul %175, %192, %cst_71 {dimension_numbers = #tpu.dot_dimension_numbers<[1], [0], [0], [1], [0, 0, 1, 1], [], []>} : vector<16x32xf32>, vector<32x32xf32>, vector<16x32xf32> -> vector<16x32xf32>
    %194 = vector.extract_strided_slice %179 {offsets = [0, 64], sizes = [1, 32], strides = [1, 1]} : vector<1x96xf32> to vector<1x32xf32>
    %195 = vector.broadcast %194 : vector<1x32xf32> to vector<16x32xf32>
    %196 = arith.addf %193, %195 : vector<16x32xf32>
    %197 = vector.extract_strided_slice %185 {offsets = [0, 0], sizes = [8, 8], strides = [1, 1]} : vector<8x32xf32> to vector<8x8xf32>
    %198 = vector.extract_strided_slice %191 {offsets = [0, 0], sizes = [16, 8], strides = [1, 1]} : vector<16x32xf32> to vector<16x8xf32>
    %199 = vector.extract_strided_slice %196 {offsets = [0, 0], sizes = [16, 8], strides = [1, 1]} : vector<16x32xf32> to vector<16x8xf32>
    %cst_72 = arith.constant dense<0.000000e+00> : vector<8x16xf32>
    %200 = tpu.matmul %197, %198, %cst_72 {dimension_numbers = #tpu.dot_dimension_numbers<[1], [1], [0], [0], [0, 0, 1, 0], [], []>} : vector<8x8xf32>, vector<16x8xf32>, vector<8x16xf32> -> vector<8x16xf32>
    %cst_73 = arith.constant 0.353553385 : f32
    %201 = vector.broadcast %cst_73 : f32 to vector<8x16xf32>
    %202 = arith.mulf %200, %201 : vector<8x16xf32>
    %cst_74 = arith.constant dense<0xFF800000> : vector<8xf32>
    %203 = vector.multi_reduction <maximumf>, %202, %cst_74 [1] : vector<8x16xf32> to vector<8xf32>
    %204 = vector.shape_cast %203 : vector<8xf32> to vector<8x1xf32>
    %205 = vector.broadcast %204 : vector<8x1xf32> to vector<8x16xf32>
    %206 = arith.subf %202, %205 : vector<8x16xf32>
    %207 = math.exp %206 : vector<8x16xf32>
    %cst_75 = arith.constant dense<0.000000e+00> : vector<8xf32>
    %208 = vector.multi_reduction <add>, %207, %cst_75 [1] : vector<8x16xf32> to vector<8xf32>
    %209 = vector.shape_cast %208 : vector<8xf32> to vector<8x1xf32>
    %210 = tpu.reciprocal %209 {approx = true} : vector<8x1xf32> -> vector<8x1xf32>
    %211 = vector.broadcast %210 : vector<8x1xf32> to vector<8x16xf32>
    %212 = arith.mulf %207, %211 : vector<8x16xf32>
    %cst_76 = arith.constant dense<0.000000e+00> : vector<8x8xf32>
    %213 = tpu.matmul %212, %199, %cst_76 {dimension_numbers = #tpu.dot_dimension_numbers<[1], [0], [0], [1], [0, 0, 1, 1], [], []>} : vector<8x16xf32>, vector<16x8xf32>, vector<8x8xf32> -> vector<8x8xf32>
    %214 = vector.extract_strided_slice %185 {offsets = [0, 8], sizes = [8, 8], strides = [1, 1]} : vector<8x32xf32> to vector<8x8xf32>
    %215 = vector.extract_strided_slice %191 {offsets = [0, 8], sizes = [16, 8], strides = [1, 1]} : vector<16x32xf32> to vector<16x8xf32>
    %216 = vector.extract_strided_slice %196 {offsets = [0, 8], sizes = [16, 8], strides = [1, 1]} : vector<16x32xf32> to vector<16x8xf32>
    %cst_77 = arith.constant dense<0.000000e+00> : vector<8x16xf32>
    %217 = tpu.matmul %214, %215, %cst_77 {dimension_numbers = #tpu.dot_dimension_numbers<[1], [1], [0], [0], [0, 0, 1, 0], [], []>} : vector<8x8xf32>, vector<16x8xf32>, vector<8x16xf32> -> vector<8x16xf32>
    %cst_78 = arith.constant 0.353553385 : f32
    %218 = vector.broadcast %cst_78 : f32 to vector<8x16xf32>
    %219 = arith.mulf %217, %218 : vector<8x16xf32>
    %cst_79 = arith.constant dense<0xFF800000> : vector<8xf32>
    %220 = vector.multi_reduction <maximumf>, %219, %cst_79 [1] : vector<8x16xf32> to vector<8xf32>
    %221 = vector.shape_cast %220 : vector<8xf32> to vector<8x1xf32>
    %222 = vector.broadcast %221 : vector<8x1xf32> to vector<8x16xf32>
    %223 = arith.subf %219, %222 : vector<8x16xf32>
    %224 = math.exp %223 : vector<8x16xf32>
    %cst_80 = arith.constant dense<0.000000e+00> : vector<8xf32>
    %225 = vector.multi_reduction <add>, %224, %cst_80 [1] : vector<8x16xf32> to vector<8xf32>
    %226 = vector.shape_cast %225 : vector<8xf32> to vector<8x1xf32>
    %227 = tpu.reciprocal %226 {approx = true} : vector<8x1xf32> -> vector<8x1xf32>
    %228 = vector.broadcast %227 : vector<8x1xf32> to vector<8x16xf32>
    %229 = arith.mulf %224, %228 : vector<8x16xf32>
    %cst_81 = arith.constant dense<0.000000e+00> : vector<8x8xf32>
    %230 = tpu.matmul %229, %216, %cst_81 {dimension_numbers = #tpu.dot_dimension_numbers<[1], [0], [0], [1], [0, 0, 1, 1], [], []>} : vector<8x16xf32>, vector<16x8xf32>, vector<8x8xf32> -> vector<8x8xf32>
    %231 = vector.extract_strided_slice %185 {offsets = [0, 16], sizes = [8, 8], strides = [1, 1]} : vector<8x32xf32> to vector<8x8xf32>
    %232 = vector.extract_strided_slice %191 {offsets = [0, 16], sizes = [16, 8], strides = [1, 1]} : vector<16x32xf32> to vector<16x8xf32>
    %233 = vector.extract_strided_slice %196 {offsets = [0, 16], sizes = [16, 8], strides = [1, 1]} : vector<16x32xf32> to vector<16x8xf32>
    %cst_82 = arith.constant dense<0.000000e+00> : vector<8x16xf32>
    %234 = tpu.matmul %231, %232, %cst_82 {dimension_numbers = #tpu.dot_dimension_numbers<[1], [1], [0], [0], [0, 0, 1, 0], [], []>} : vector<8x8xf32>, vector<16x8xf32>, vector<8x16xf32> -> vector<8x16xf32>
    %cst_83 = arith.constant 0.353553385 : f32
    %235 = vector.broadcast %cst_83 : f32 to vector<8x16xf32>
    %236 = arith.mulf %234, %235 : vector<8x16xf32>
    %cst_84 = arith.constant dense<0xFF800000> : vector<8xf32>
    %237 = vector.multi_reduction <maximumf>, %236, %cst_84 [1] : vector<8x16xf32> to vector<8xf32>
    %238 = vector.shape_cast %237 : vector<8xf32> to vector<8x1xf32>
    %239 = vector.broadcast %238 : vector<8x1xf32> to vector<8x16xf32>
    %240 = arith.subf %236, %239 : vector<8x16xf32>
    %241 = math.exp %240 : vector<8x16xf32>
    %cst_85 = arith.constant dense<0.000000e+00> : vector<8xf32>
    %242 = vector.multi_reduction <add>, %241, %cst_85 [1] : vector<8x16xf32> to vector<8xf32>
    %243 = vector.shape_cast %242 : vector<8xf32> to vector<8x1xf32>
    %244 = tpu.reciprocal %243 {approx = true} : vector<8x1xf32> -> vector<8x1xf32>
    %245 = vector.broadcast %244 : vector<8x1xf32> to vector<8x16xf32>
    %246 = arith.mulf %241, %245 : vector<8x16xf32>
    %cst_86 = arith.constant dense<0.000000e+00> : vector<8x8xf32>
    %247 = tpu.matmul %246, %233, %cst_86 {dimension_numbers = #tpu.dot_dimension_numbers<[1], [0], [0], [1], [0, 0, 1, 1], [], []>} : vector<8x16xf32>, vector<16x8xf32>, vector<8x8xf32> -> vector<8x8xf32>
    %248 = vector.extract_strided_slice %185 {offsets = [0, 24], sizes = [8, 8], strides = [1, 1]} : vector<8x32xf32> to vector<8x8xf32>
    %249 = vector.extract_strided_slice %191 {offsets = [0, 24], sizes = [16, 8], strides = [1, 1]} : vector<16x32xf32> to vector<16x8xf32>
    %250 = vector.extract_strided_slice %196 {offsets = [0, 24], sizes = [16, 8], strides = [1, 1]} : vector<16x32xf32> to vector<16x8xf32>
    %cst_87 = arith.constant dense<0.000000e+00> : vector<8x16xf32>
    %251 = tpu.matmul %248, %249, %cst_87 {dimension_numbers = #tpu.dot_dimension_numbers<[1], [1], [0], [0], [0, 0, 1, 0], [], []>} : vector<8x8xf32>, vector<16x8xf32>, vector<8x16xf32> -> vector<8x16xf32>
    %cst_88 = arith.constant 0.353553385 : f32
    %252 = vector.broadcast %cst_88 : f32 to vector<8x16xf32>
    %253 = arith.mulf %251, %252 : vector<8x16xf32>
    %cst_89 = arith.constant dense<0xFF800000> : vector<8xf32>
    %254 = vector.multi_reduction <maximumf>, %253, %cst_89 [1] : vector<8x16xf32> to vector<8xf32>
    %255 = vector.shape_cast %254 : vector<8xf32> to vector<8x1xf32>
    %256 = vector.broadcast %255 : vector<8x1xf32> to vector<8x16xf32>
    %257 = arith.subf %253, %256 : vector<8x16xf32>
    %258 = math.exp %257 : vector<8x16xf32>
    %cst_90 = arith.constant dense<0.000000e+00> : vector<8xf32>
    %259 = vector.multi_reduction <add>, %258, %cst_90 [1] : vector<8x16xf32> to vector<8xf32>
    %260 = vector.shape_cast %259 : vector<8xf32> to vector<8x1xf32>
    %261 = tpu.reciprocal %260 {approx = true} : vector<8x1xf32> -> vector<8x1xf32>
    %262 = vector.broadcast %261 : vector<8x1xf32> to vector<8x16xf32>
    %263 = arith.mulf %258, %262 : vector<8x16xf32>
    %cst_91 = arith.constant dense<0.000000e+00> : vector<8x8xf32>
    %264 = tpu.matmul %263, %250, %cst_91 {dimension_numbers = #tpu.dot_dimension_numbers<[1], [0], [0], [1], [0, 0, 1, 1], [], []>} : vector<8x16xf32>, vector<16x8xf32>, vector<8x8xf32> -> vector<8x8xf32>
    %265 = tpu.concatenate %213, %230, %247, %264 in 1 : vector<8x8xf32>, vector<8x8xf32>, vector<8x8xf32>, vector<8x8xf32> -> vector<8x32xf32>
    %c0_92 = arith.constant 0 : index
    %c0_93 = arith.constant 0 : index
    %c0_94 = arith.constant 0 : index
    %266 = vector.load %arg12[%c0_92, %c0_93, %c0_94] : memref<2x32x32xf32, #tpu.memory_space<vmem>>, vector<1x32x32xf32>
    %267 = vector.shape_cast %266 : vector<1x32x32xf32> to vector<32x32xf32>
    %cst_95 = arith.constant dense<0.000000e+00> : vector<8x32xf32>
    %268 = tpu.matmul %265, %267, %cst_95 {dimension_numbers = #tpu.dot_dimension_numbers<[1], [0], [0], [1], [0, 0, 1, 1], [], []>} : vector<8x32xf32>, vector<32x32xf32>, vector<8x32xf32> -> vector<8x32xf32>
    %c0_96 = arith.constant 0 : index
    %c0_97 = arith.constant 0 : index
    %c0_98 = arith.constant 0 : index
    %269 = vector.load %arg13[%c0_96, %c0_97, %c0_98] : memref<2x1x32xf32, #tpu.memory_space<vmem>>, vector<1x1x32xf32>
    %270 = vector.shape_cast %269 : vector<1x1x32xf32> to vector<1x32xf32>
    %271 = vector.broadcast %270 : vector<1x32xf32> to vector<8x32xf32>
    %272 = arith.addf %268, %271 : vector<8x32xf32>
    %273 = arith.addf %127, %272 : vector<8x32xf32>
    %274 = vector.extract_strided_slice %9 {offsets = [6, 0], sizes = [1, 32], strides = [1, 1]} : vector<8x32xf32> to vector<1x32xf32>
    %275 = vector.extract_strided_slice %9 {offsets = [7, 0], sizes = [1, 32], strides = [1, 1]} : vector<8x32xf32> to vector<1x32xf32>
    %cst_99 = arith.constant dense<0.000000e+00> : vector<8xf32>
    %276 = vector.multi_reduction <add>, %273, %cst_99 [1] : vector<8x32xf32> to vector<8xf32>
    %277 = vector.shape_cast %276 : vector<8xf32> to vector<8x1xf32>
    %cst_100 = arith.constant 3.200000e+01 : f32
    %278 = vector.broadcast %cst_100 : f32 to vector<8x1xf32>
    %279 = arith.divf %277, %278 : vector<8x1xf32>
    %280 = vector.broadcast %279 : vector<8x1xf32> to vector<8x32xf32>
    %281 = arith.subf %273, %280 : vector<8x32xf32>
    %282 = arith.mulf %281, %281 : vector<8x32xf32>
    %cst_101 = arith.constant dense<0.000000e+00> : vector<8xf32>
    %283 = vector.multi_reduction <add>, %282, %cst_101 [1] : vector<8x32xf32> to vector<8xf32>
    %284 = vector.shape_cast %283 : vector<8xf32> to vector<8x1xf32>
    %cst_102 = arith.constant 3.200000e+01 : f32
    %285 = vector.broadcast %cst_102 : f32 to vector<8x1xf32>
    %286 = arith.divf %284, %285 : vector<8x1xf32>
    %287 = vector.broadcast %279 : vector<8x1xf32> to vector<8x32xf32>
    %288 = arith.subf %273, %287 : vector<8x32xf32>
    %cst_103 = arith.constant 9.99999974E-6 : f32
    %289 = vector.broadcast %cst_103 : f32 to vector<8x1xf32>
    %290 = arith.addf %286, %289 : vector<8x1xf32>
    %291 = math.rsqrt %290 : vector<8x1xf32>
    %292 = vector.broadcast %291 : vector<8x1xf32> to vector<8x32xf32>
    %293 = arith.mulf %288, %292 : vector<8x32xf32>
    %294 = vector.broadcast %274 : vector<1x32xf32> to vector<8x32xf32>
    %295 = arith.mulf %293, %294 : vector<8x32xf32>
    %296 = vector.broadcast %275 : vector<1x32xf32> to vector<8x32xf32>
    %297 = arith.addf %295, %296 : vector<8x32xf32>
    %c0_104 = arith.constant 0 : index
    %c0_105 = arith.constant 0 : index
    %c0_106 = arith.constant 0 : index
    %298 = vector.load %arg14[%c0_104, %c0_105, %c0_106] : memref<2x32x128xf32, #tpu.memory_space<vmem>>, vector<1x32x128xf32>
    %299 = vector.shape_cast %298 : vector<1x32x128xf32> to vector<32x128xf32>
    %cst_107 = arith.constant dense<0.000000e+00> : vector<8x128xf32>
    %300 = tpu.matmul %297, %299, %cst_107 {dimension_numbers = #tpu.dot_dimension_numbers<[1], [0], [0], [1], [0, 0, 1, 1], [], []>} : vector<8x32xf32>, vector<32x128xf32>, vector<8x128xf32> -> vector<8x128xf32>
    %c0_108 = arith.constant 0 : index
    %c0_109 = arith.constant 0 : index
    %c0_110 = arith.constant 0 : index
    %301 = vector.load %arg15[%c0_108, %c0_109, %c0_110] : memref<2x1x128xf32, #tpu.memory_space<vmem>>, vector<1x1x128xf32>
    %302 = vector.shape_cast %301 : vector<1x1x128xf32> to vector<1x128xf32>
    %303 = vector.broadcast %302 : vector<1x128xf32> to vector<8x128xf32>
    %304 = arith.addf %300, %303 : vector<8x128xf32>
    %cst_111 = arith.constant 5.000000e-01 : f32
    %305 = vector.broadcast %cst_111 : f32 to vector<8x128xf32>
    %306 = arith.mulf %305, %304 : vector<8x128xf32>
    %cst_112 = arith.constant 0.707106769 : f32
    %307 = vector.broadcast %cst_112 : f32 to vector<8x128xf32>
    %308 = arith.mulf %304, %307 : vector<8x128xf32>
    %309 = math.erf %308 : vector<8x128xf32>
    %cst_113 = arith.constant 1.000000e+00 : f32
    %310 = vector.broadcast %cst_113 : f32 to vector<8x128xf32>
    %311 = arith.addf %310, %309 : vector<8x128xf32>
    %312 = arith.mulf %306, %311 : vector<8x128xf32>
    %c0_114 = arith.constant 0 : index
    %c0_115 = arith.constant 0 : index
    %c0_116 = arith.constant 0 : index
    %313 = vector.load %arg16[%c0_114, %c0_115, %c0_116] : memref<2x128x32xf32, #tpu.memory_space<vmem>>, vector<1x128x32xf32>
    %314 = vector.shape_cast %313 : vector<1x128x32xf32> to vector<128x32xf32>
    %cst_117 = arith.constant dense<0.000000e+00> : vector<8x32xf32>
    %315 = tpu.matmul %312, %314, %cst_117 {dimension_numbers = #tpu.dot_dimension_numbers<[1], [0], [0], [1], [0, 0, 1, 1], [], []>} : vector<8x128xf32>, vector<128x32xf32>, vector<8x32xf32> -> vector<8x32xf32>
    %c0_118 = arith.constant 0 : index
    %c0_119 = arith.constant 0 : index
    %c0_120 = arith.constant 0 : index
    %316 = vector.load %arg17[%c0_118, %c0_119, %c0_120] : memref<2x1x32xf32, #tpu.memory_space<vmem>>, vector<1x1x32xf32>
    %317 = vector.shape_cast %316 : vector<1x1x32xf32> to vector<1x32xf32>
    %318 = vector.broadcast %317 : vector<1x32xf32> to vector<8x32xf32>
    %319 = arith.addf %315, %318 : vector<8x32xf32>
    %320 = arith.addf %273, %319 : vector<8x32xf32>
    %c1 = arith.constant 1 : index
    %c0_121 = arith.constant 0 : index
    %c0_122 = arith.constant 0 : index
    %321 = vector.load %arg5[%c1, %c0_121, %c0_122] : memref<2x8x32xf32, #tpu.memory_space<vmem>>, vector<1x8x32xf32>
    %322 = vector.shape_cast %321 : vector<1x8x32xf32> to vector<8x32xf32>
    %323 = vector.extract_strided_slice %322 {offsets = [0, 0], sizes = [1, 32], strides = [1, 1]} : vector<8x32xf32> to vector<1x32xf32>
    %324 = vector.extract_strided_slice %322 {offsets = [1, 0], sizes = [1, 32], strides = [1, 1]} : vector<8x32xf32> to vector<1x32xf32>
    %cst_123 = arith.constant dense<0.000000e+00> : vector<8xf32>
    %325 = vector.multi_reduction <add>, %320, %cst_123 [1] : vector<8x32xf32> to vector<8xf32>
    %326 = vector.shape_cast %325 : vector<8xf32> to vector<8x1xf32>
    %cst_124 = arith.constant 3.200000e+01 : f32
    %327 = vector.broadcast %cst_124 : f32 to vector<8x1xf32>
    %328 = arith.divf %326, %327 : vector<8x1xf32>
    %329 = vector.broadcast %328 : vector<8x1xf32> to vector<8x32xf32>
    %330 = arith.subf %320, %329 : vector<8x32xf32>
    %331 = arith.mulf %330, %330 : vector<8x32xf32>
    %cst_125 = arith.constant dense<0.000000e+00> : vector<8xf32>
    %332 = vector.multi_reduction <add>, %331, %cst_125 [1] : vector<8x32xf32> to vector<8xf32>
    %333 = vector.shape_cast %332 : vector<8xf32> to vector<8x1xf32>
    %cst_126 = arith.constant 3.200000e+01 : f32
    %334 = vector.broadcast %cst_126 : f32 to vector<8x1xf32>
    %335 = arith.divf %333, %334 : vector<8x1xf32>
    %336 = vector.broadcast %328 : vector<8x1xf32> to vector<8x32xf32>
    %337 = arith.subf %320, %336 : vector<8x32xf32>
    %cst_127 = arith.constant 9.99999974E-6 : f32
    %338 = vector.broadcast %cst_127 : f32 to vector<8x1xf32>
    %339 = arith.addf %335, %338 : vector<8x1xf32>
    %340 = math.rsqrt %339 : vector<8x1xf32>
    %341 = vector.broadcast %340 : vector<8x1xf32> to vector<8x32xf32>
    %342 = arith.mulf %337, %341 : vector<8x32xf32>
    %343 = vector.broadcast %323 : vector<1x32xf32> to vector<8x32xf32>
    %344 = arith.mulf %342, %343 : vector<8x32xf32>
    %345 = vector.broadcast %324 : vector<1x32xf32> to vector<8x32xf32>
    %346 = arith.addf %344, %345 : vector<8x32xf32>
    %347 = arith.addf %346, %5 : vector<8x32xf32>
    %c1_128 = arith.constant 1 : index
    %c0_129 = arith.constant 0 : index
    %c0_130 = arith.constant 0 : index
    %348 = vector.load %arg6[%c1_128, %c0_129, %c0_130] : memref<2x32x96xf32, #tpu.memory_space<vmem>>, vector<1x32x96xf32>
    %349 = vector.shape_cast %348 : vector<1x32x96xf32> to vector<32x96xf32>
    %c1_131 = arith.constant 1 : index
    %c0_132 = arith.constant 0 : index
    %c0_133 = arith.constant 0 : index
    %350 = vector.load %arg7[%c1_131, %c0_132, %c0_133] : memref<2x1x96xf32, #tpu.memory_space<vmem>>, vector<1x1x96xf32>
    %351 = vector.shape_cast %350 : vector<1x1x96xf32> to vector<1x96xf32>
    %352 = vector.extract_strided_slice %349 {offsets = [0, 0], sizes = [32, 64], strides = [1, 1]} : vector<32x96xf32> to vector<32x64xf32>
    %cst_134 = arith.constant dense<0.000000e+00> : vector<8x64xf32>
    %353 = tpu.matmul %347, %352, %cst_134 {dimension_numbers = #tpu.dot_dimension_numbers<[1], [0], [0], [1], [0, 0, 1, 1], [], []>} : vector<8x32xf32>, vector<32x64xf32>, vector<8x64xf32> -> vector<8x64xf32>
    %354 = vector.extract_strided_slice %351 {offsets = [0, 0], sizes = [1, 64], strides = [1, 1]} : vector<1x96xf32> to vector<1x64xf32>
    %355 = vector.broadcast %354 : vector<1x64xf32> to vector<8x64xf32>
    %356 = arith.addf %353, %355 : vector<8x64xf32>
    %357 = vector.extract_strided_slice %349 {offsets = [0, 64], sizes = [32, 32], strides = [1, 1]} : vector<32x96xf32> to vector<32x32xf32>
    %cst_135 = arith.constant dense<0.000000e+00> : vector<8x32xf32>
    %358 = tpu.matmul %346, %357, %cst_135 {dimension_numbers = #tpu.dot_dimension_numbers<[1], [0], [0], [1], [0, 0, 1, 1], [], []>} : vector<8x32xf32>, vector<32x32xf32>, vector<8x32xf32> -> vector<8x32xf32>
    %359 = vector.extract_strided_slice %351 {offsets = [0, 64], sizes = [1, 32], strides = [1, 1]} : vector<1x96xf32> to vector<1x32xf32>
    %360 = vector.broadcast %359 : vector<1x32xf32> to vector<8x32xf32>
    %361 = arith.addf %358, %360 : vector<8x32xf32>
    %362 = vector.extract_strided_slice %356 {offsets = [0, 0], sizes = [8, 32], strides = [1, 1]} : vector<8x64xf32> to vector<8x32xf32>
    %363 = vector.extract_strided_slice %356 {offsets = [0, 32], sizes = [8, 32], strides = [1, 1]} : vector<8x64xf32> to vector<8x32xf32>
    %364 = vector.extract_strided_slice %362 {offsets = [0, 0], sizes = [8, 8], strides = [1, 1]} : vector<8x32xf32> to vector<8x8xf32>
    %365 = vector.extract_strided_slice %363 {offsets = [0, 0], sizes = [8, 8], strides = [1, 1]} : vector<8x32xf32> to vector<8x8xf32>
    %366 = vector.extract_strided_slice %361 {offsets = [0, 0], sizes = [8, 8], strides = [1, 1]} : vector<8x32xf32> to vector<8x8xf32>
    %cst_136 = arith.constant dense<0.000000e+00> : vector<8x8xf32>
    %367 = tpu.matmul %364, %365, %cst_136 {dimension_numbers = #tpu.dot_dimension_numbers<[1], [1], [0], [0], [0, 0, 1, 0], [], []>} : vector<8x8xf32>, vector<8x8xf32>, vector<8x8xf32> -> vector<8x8xf32>
    %cst_137 = arith.constant 0.353553385 : f32
    %368 = vector.broadcast %cst_137 : f32 to vector<8x8xf32>
    %369 = arith.mulf %367, %368 : vector<8x8xf32>
    %cst_138 = arith.constant dense<0xFF800000> : vector<8xf32>
    %370 = vector.multi_reduction <maximumf>, %369, %cst_138 [1] : vector<8x8xf32> to vector<8xf32>
    %371 = vector.shape_cast %370 : vector<8xf32> to vector<8x1xf32>
    %372 = vector.broadcast %371 : vector<8x1xf32> to vector<8x8xf32>
    %373 = arith.subf %369, %372 : vector<8x8xf32>
    %374 = math.exp %373 : vector<8x8xf32>
    %cst_139 = arith.constant dense<0.000000e+00> : vector<8xf32>
    %375 = vector.multi_reduction <add>, %374, %cst_139 [1] : vector<8x8xf32> to vector<8xf32>
    %376 = vector.shape_cast %375 : vector<8xf32> to vector<8x1xf32>
    %377 = tpu.reciprocal %376 {approx = true} : vector<8x1xf32> -> vector<8x1xf32>
    %378 = vector.broadcast %377 : vector<8x1xf32> to vector<8x8xf32>
    %379 = arith.mulf %374, %378 : vector<8x8xf32>
    %cst_140 = arith.constant dense<0.000000e+00> : vector<8x8xf32>
    %380 = tpu.matmul %379, %366, %cst_140 {dimension_numbers = #tpu.dot_dimension_numbers<[1], [0], [0], [1], [0, 0, 1, 1], [], []>} : vector<8x8xf32>, vector<8x8xf32>, vector<8x8xf32> -> vector<8x8xf32>
    %381 = vector.extract_strided_slice %362 {offsets = [0, 8], sizes = [8, 8], strides = [1, 1]} : vector<8x32xf32> to vector<8x8xf32>
    %382 = vector.extract_strided_slice %363 {offsets = [0, 8], sizes = [8, 8], strides = [1, 1]} : vector<8x32xf32> to vector<8x8xf32>
    %383 = vector.extract_strided_slice %361 {offsets = [0, 8], sizes = [8, 8], strides = [1, 1]} : vector<8x32xf32> to vector<8x8xf32>
    %cst_141 = arith.constant dense<0.000000e+00> : vector<8x8xf32>
    %384 = tpu.matmul %381, %382, %cst_141 {dimension_numbers = #tpu.dot_dimension_numbers<[1], [1], [0], [0], [0, 0, 1, 0], [], []>} : vector<8x8xf32>, vector<8x8xf32>, vector<8x8xf32> -> vector<8x8xf32>
    %cst_142 = arith.constant 0.353553385 : f32
    %385 = vector.broadcast %cst_142 : f32 to vector<8x8xf32>
    %386 = arith.mulf %384, %385 : vector<8x8xf32>
    %cst_143 = arith.constant dense<0xFF800000> : vector<8xf32>
    %387 = vector.multi_reduction <maximumf>, %386, %cst_143 [1] : vector<8x8xf32> to vector<8xf32>
    %388 = vector.shape_cast %387 : vector<8xf32> to vector<8x1xf32>
    %389 = vector.broadcast %388 : vector<8x1xf32> to vector<8x8xf32>
    %390 = arith.subf %386, %389 : vector<8x8xf32>
    %391 = math.exp %390 : vector<8x8xf32>
    %cst_144 = arith.constant dense<0.000000e+00> : vector<8xf32>
    %392 = vector.multi_reduction <add>, %391, %cst_144 [1] : vector<8x8xf32> to vector<8xf32>
    %393 = vector.shape_cast %392 : vector<8xf32> to vector<8x1xf32>
    %394 = tpu.reciprocal %393 {approx = true} : vector<8x1xf32> -> vector<8x1xf32>
    %395 = vector.broadcast %394 : vector<8x1xf32> to vector<8x8xf32>
    %396 = arith.mulf %391, %395 : vector<8x8xf32>
    %cst_145 = arith.constant dense<0.000000e+00> : vector<8x8xf32>
    %397 = tpu.matmul %396, %383, %cst_145 {dimension_numbers = #tpu.dot_dimension_numbers<[1], [0], [0], [1], [0, 0, 1, 1], [], []>} : vector<8x8xf32>, vector<8x8xf32>, vector<8x8xf32> -> vector<8x8xf32>
    %398 = vector.extract_strided_slice %362 {offsets = [0, 16], sizes = [8, 8], strides = [1, 1]} : vector<8x32xf32> to vector<8x8xf32>
    %399 = vector.extract_strided_slice %363 {offsets = [0, 16], sizes = [8, 8], strides = [1, 1]} : vector<8x32xf32> to vector<8x8xf32>
    %400 = vector.extract_strided_slice %361 {offsets = [0, 16], sizes = [8, 8], strides = [1, 1]} : vector<8x32xf32> to vector<8x8xf32>
    %cst_146 = arith.constant dense<0.000000e+00> : vector<8x8xf32>
    %401 = tpu.matmul %398, %399, %cst_146 {dimension_numbers = #tpu.dot_dimension_numbers<[1], [1], [0], [0], [0, 0, 1, 0], [], []>} : vector<8x8xf32>, vector<8x8xf32>, vector<8x8xf32> -> vector<8x8xf32>
    %cst_147 = arith.constant 0.353553385 : f32
    %402 = vector.broadcast %cst_147 : f32 to vector<8x8xf32>
    %403 = arith.mulf %401, %402 : vector<8x8xf32>
    %cst_148 = arith.constant dense<0xFF800000> : vector<8xf32>
    %404 = vector.multi_reduction <maximumf>, %403, %cst_148 [1] : vector<8x8xf32> to vector<8xf32>
    %405 = vector.shape_cast %404 : vector<8xf32> to vector<8x1xf32>
    %406 = vector.broadcast %405 : vector<8x1xf32> to vector<8x8xf32>
    %407 = arith.subf %403, %406 : vector<8x8xf32>
    %408 = math.exp %407 : vector<8x8xf32>
    %cst_149 = arith.constant dense<0.000000e+00> : vector<8xf32>
    %409 = vector.multi_reduction <add>, %408, %cst_149 [1] : vector<8x8xf32> to vector<8xf32>
    %410 = vector.shape_cast %409 : vector<8xf32> to vector<8x1xf32>
    %411 = tpu.reciprocal %410 {approx = true} : vector<8x1xf32> -> vector<8x1xf32>
    %412 = vector.broadcast %411 : vector<8x1xf32> to vector<8x8xf32>
    %413 = arith.mulf %408, %412 : vector<8x8xf32>
    %cst_150 = arith.constant dense<0.000000e+00> : vector<8x8xf32>
    %414 = tpu.matmul %413, %400, %cst_150 {dimension_numbers = #tpu.dot_dimension_numbers<[1], [0], [0], [1], [0, 0, 1, 1], [], []>} : vector<8x8xf32>, vector<8x8xf32>, vector<8x8xf32> -> vector<8x8xf32>
    %415 = vector.extract_strided_slice %362 {offsets = [0, 24], sizes = [8, 8], strides = [1, 1]} : vector<8x32xf32> to vector<8x8xf32>
    %416 = vector.extract_strided_slice %363 {offsets = [0, 24], sizes = [8, 8], strides = [1, 1]} : vector<8x32xf32> to vector<8x8xf32>
    %417 = vector.extract_strided_slice %361 {offsets = [0, 24], sizes = [8, 8], strides = [1, 1]} : vector<8x32xf32> to vector<8x8xf32>
    %cst_151 = arith.constant dense<0.000000e+00> : vector<8x8xf32>
    %418 = tpu.matmul %415, %416, %cst_151 {dimension_numbers = #tpu.dot_dimension_numbers<[1], [1], [0], [0], [0, 0, 1, 0], [], []>} : vector<8x8xf32>, vector<8x8xf32>, vector<8x8xf32> -> vector<8x8xf32>
    %cst_152 = arith.constant 0.353553385 : f32
    %419 = vector.broadcast %cst_152 : f32 to vector<8x8xf32>
    %420 = arith.mulf %418, %419 : vector<8x8xf32>
    %cst_153 = arith.constant dense<0xFF800000> : vector<8xf32>
    %421 = vector.multi_reduction <maximumf>, %420, %cst_153 [1] : vector<8x8xf32> to vector<8xf32>
    %422 = vector.shape_cast %421 : vector<8xf32> to vector<8x1xf32>
    %423 = vector.broadcast %422 : vector<8x1xf32> to vector<8x8xf32>
    %424 = arith.subf %420, %423 : vector<8x8xf32>
    %425 = math.exp %424 : vector<8x8xf32>
    %cst_154 = arith.constant dense<0.000000e+00> : vector<8xf32>
    %426 = vector.multi_reduction <add>, %425, %cst_154 [1] : vector<8x8xf32> to vector<8xf32>
    %427 = vector.shape_cast %426 : vector<8xf32> to vector<8x1xf32>
    %428 = tpu.reciprocal %427 {approx = true} : vector<8x1xf32> -> vector<8x1xf32>
    %429 = vector.broadcast %428 : vector<8x1xf32> to vector<8x8xf32>
    %430 = arith.mulf %425, %429 : vector<8x8xf32>
    %cst_155 = arith.constant dense<0.000000e+00> : vector<8x8xf32>
    %431 = tpu.matmul %430, %417, %cst_155 {dimension_numbers = #tpu.dot_dimension_numbers<[1], [0], [0], [1], [0, 0, 1, 1], [], []>} : vector<8x8xf32>, vector<8x8xf32>, vector<8x8xf32> -> vector<8x8xf32>
    %432 = tpu.concatenate %380, %397, %414, %431 in 1 : vector<8x8xf32>, vector<8x8xf32>, vector<8x8xf32>, vector<8x8xf32> -> vector<8x32xf32>
    %c1_156 = arith.constant 1 : index
    %c0_157 = arith.constant 0 : index
    %c0_158 = arith.constant 0 : index
    %433 = vector.load %arg8[%c1_156, %c0_157, %c0_158] : memref<2x32x32xf32, #tpu.memory_space<vmem>>, vector<1x32x32xf32>
    %434 = vector.shape_cast %433 : vector<1x32x32xf32> to vector<32x32xf32>
    %cst_159 = arith.constant dense<0.000000e+00> : vector<8x32xf32>
    %435 = tpu.matmul %432, %434, %cst_159 {dimension_numbers = #tpu.dot_dimension_numbers<[1], [0], [0], [1], [0, 0, 1, 1], [], []>} : vector<8x32xf32>, vector<32x32xf32>, vector<8x32xf32> -> vector<8x32xf32>
    %c1_160 = arith.constant 1 : index
    %c0_161 = arith.constant 0 : index
    %c0_162 = arith.constant 0 : index
    %436 = vector.load %arg9[%c1_160, %c0_161, %c0_162] : memref<2x1x32xf32, #tpu.memory_space<vmem>>, vector<1x1x32xf32>
    %437 = vector.shape_cast %436 : vector<1x1x32xf32> to vector<1x32xf32>
    %438 = vector.broadcast %437 : vector<1x32xf32> to vector<8x32xf32>
    %439 = arith.addf %435, %438 : vector<8x32xf32>
    %440 = arith.addf %320, %439 : vector<8x32xf32>
    %441 = vector.extract_strided_slice %322 {offsets = [2, 0], sizes = [1, 32], strides = [1, 1]} : vector<8x32xf32> to vector<1x32xf32>
    %442 = vector.extract_strided_slice %322 {offsets = [3, 0], sizes = [1, 32], strides = [1, 1]} : vector<8x32xf32> to vector<1x32xf32>
    %cst_163 = arith.constant dense<0.000000e+00> : vector<8xf32>
    %443 = vector.multi_reduction <add>, %440, %cst_163 [1] : vector<8x32xf32> to vector<8xf32>
    %444 = vector.shape_cast %443 : vector<8xf32> to vector<8x1xf32>
    %cst_164 = arith.constant 3.200000e+01 : f32
    %445 = vector.broadcast %cst_164 : f32 to vector<8x1xf32>
    %446 = arith.divf %444, %445 : vector<8x1xf32>
    %447 = vector.broadcast %446 : vector<8x1xf32> to vector<8x32xf32>
    %448 = arith.subf %440, %447 : vector<8x32xf32>
    %449 = arith.mulf %448, %448 : vector<8x32xf32>
    %cst_165 = arith.constant dense<0.000000e+00> : vector<8xf32>
    %450 = vector.multi_reduction <add>, %449, %cst_165 [1] : vector<8x32xf32> to vector<8xf32>
    %451 = vector.shape_cast %450 : vector<8xf32> to vector<8x1xf32>
    %cst_166 = arith.constant 3.200000e+01 : f32
    %452 = vector.broadcast %cst_166 : f32 to vector<8x1xf32>
    %453 = arith.divf %451, %452 : vector<8x1xf32>
    %454 = vector.broadcast %446 : vector<8x1xf32> to vector<8x32xf32>
    %455 = arith.subf %440, %454 : vector<8x32xf32>
    %cst_167 = arith.constant 9.99999974E-6 : f32
    %456 = vector.broadcast %cst_167 : f32 to vector<8x1xf32>
    %457 = arith.addf %453, %456 : vector<8x1xf32>
    %458 = math.rsqrt %457 : vector<8x1xf32>
    %459 = vector.broadcast %458 : vector<8x1xf32> to vector<8x32xf32>
    %460 = arith.mulf %455, %459 : vector<8x32xf32>
    %461 = vector.broadcast %441 : vector<1x32xf32> to vector<8x32xf32>
    %462 = arith.mulf %460, %461 : vector<8x32xf32>
    %463 = vector.broadcast %442 : vector<1x32xf32> to vector<8x32xf32>
    %464 = arith.addf %462, %463 : vector<8x32xf32>
    %465 = vector.extract_strided_slice %322 {offsets = [4, 0], sizes = [1, 32], strides = [1, 1]} : vector<8x32xf32> to vector<1x32xf32>
    %466 = vector.extract_strided_slice %322 {offsets = [5, 0], sizes = [1, 32], strides = [1, 1]} : vector<8x32xf32> to vector<1x32xf32>
    %cst_168 = arith.constant dense<0.000000e+00> : vector<16xf32>
    %467 = vector.multi_reduction <add>, %3, %cst_168 [1] : vector<16x32xf32> to vector<16xf32>
    %468 = vector.shape_cast %467 : vector<16xf32> to vector<16x1xf32>
    %cst_169 = arith.constant 3.200000e+01 : f32
    %469 = vector.broadcast %cst_169 : f32 to vector<16x1xf32>
    %470 = arith.divf %468, %469 : vector<16x1xf32>
    %471 = vector.broadcast %470 : vector<16x1xf32> to vector<16x32xf32>
    %472 = arith.subf %3, %471 : vector<16x32xf32>
    %473 = arith.mulf %472, %472 : vector<16x32xf32>
    %cst_170 = arith.constant dense<0.000000e+00> : vector<16xf32>
    %474 = vector.multi_reduction <add>, %473, %cst_170 [1] : vector<16x32xf32> to vector<16xf32>
    %475 = vector.shape_cast %474 : vector<16xf32> to vector<16x1xf32>
    %cst_171 = arith.constant 3.200000e+01 : f32
    %476 = vector.broadcast %cst_171 : f32 to vector<16x1xf32>
    %477 = arith.divf %475, %476 : vector<16x1xf32>
    %478 = vector.broadcast %470 : vector<16x1xf32> to vector<16x32xf32>
    %479 = arith.subf %3, %478 : vector<16x32xf32>
    %cst_172 = arith.constant 9.99999974E-6 : f32
    %480 = vector.broadcast %cst_172 : f32 to vector<16x1xf32>
    %481 = arith.addf %477, %480 : vector<16x1xf32>
    %482 = math.rsqrt %481 : vector<16x1xf32>
    %483 = vector.broadcast %482 : vector<16x1xf32> to vector<16x32xf32>
    %484 = arith.mulf %479, %483 : vector<16x32xf32>
    %485 = vector.broadcast %465 : vector<1x32xf32> to vector<16x32xf32>
    %486 = arith.mulf %484, %485 : vector<16x32xf32>
    %487 = vector.broadcast %466 : vector<1x32xf32> to vector<16x32xf32>
    %488 = arith.addf %486, %487 : vector<16x32xf32>
    %c1_173 = arith.constant 1 : index
    %c0_174 = arith.constant 0 : index
    %c0_175 = arith.constant 0 : index
    %489 = vector.load %arg10[%c1_173, %c0_174, %c0_175] : memref<2x32x96xf32, #tpu.memory_space<vmem>>, vector<1x32x96xf32>
    %490 = vector.shape_cast %489 : vector<1x32x96xf32> to vector<32x96xf32>
    %c1_176 = arith.constant 1 : index
    %c0_177 = arith.constant 0 : index
    %c0_178 = arith.constant 0 : index
    %491 = vector.load %arg11[%c1_176, %c0_177, %c0_178] : memref<2x1x96xf32, #tpu.memory_space<vmem>>, vector<1x1x96xf32>
    %492 = vector.shape_cast %491 : vector<1x1x96xf32> to vector<1x96xf32>
    %493 = arith.addf %464, %5 : vector<8x32xf32>
    %494 = vector.extract_strided_slice %490 {offsets = [0, 0], sizes = [32, 32], strides = [1, 1]} : vector<32x96xf32> to vector<32x32xf32>
    %cst_179 = arith.constant dense<0.000000e+00> : vector<8x32xf32>
    %495 = tpu.matmul %493, %494, %cst_179 {dimension_numbers = #tpu.dot_dimension_numbers<[1], [0], [0], [1], [0, 0, 1, 1], [], []>} : vector<8x32xf32>, vector<32x32xf32>, vector<8x32xf32> -> vector<8x32xf32>
    %496 = vector.extract_strided_slice %492 {offsets = [0, 0], sizes = [1, 32], strides = [1, 1]} : vector<1x96xf32> to vector<1x32xf32>
    %497 = vector.broadcast %496 : vector<1x32xf32> to vector<8x32xf32>
    %498 = arith.addf %495, %497 : vector<8x32xf32>
    %499 = arith.addf %488, %7 : vector<16x32xf32>
    %500 = vector.extract_strided_slice %490 {offsets = [0, 32], sizes = [32, 32], strides = [1, 1]} : vector<32x96xf32> to vector<32x32xf32>
    %cst_180 = arith.constant dense<0.000000e+00> : vector<16x32xf32>
    %501 = tpu.matmul %499, %500, %cst_180 {dimension_numbers = #tpu.dot_dimension_numbers<[1], [0], [0], [1], [0, 0, 1, 1], [], []>} : vector<16x32xf32>, vector<32x32xf32>, vector<16x32xf32> -> vector<16x32xf32>
    %502 = vector.extract_strided_slice %492 {offsets = [0, 32], sizes = [1, 32], strides = [1, 1]} : vector<1x96xf32> to vector<1x32xf32>
    %503 = vector.broadcast %502 : vector<1x32xf32> to vector<16x32xf32>
    %504 = arith.addf %501, %503 : vector<16x32xf32>
    %505 = vector.extract_strided_slice %490 {offsets = [0, 64], sizes = [32, 32], strides = [1, 1]} : vector<32x96xf32> to vector<32x32xf32>
    %cst_181 = arith.constant dense<0.000000e+00> : vector<16x32xf32>
    %506 = tpu.matmul %488, %505, %cst_181 {dimension_numbers = #tpu.dot_dimension_numbers<[1], [0], [0], [1], [0, 0, 1, 1], [], []>} : vector<16x32xf32>, vector<32x32xf32>, vector<16x32xf32> -> vector<16x32xf32>
    %507 = vector.extract_strided_slice %492 {offsets = [0, 64], sizes = [1, 32], strides = [1, 1]} : vector<1x96xf32> to vector<1x32xf32>
    %508 = vector.broadcast %507 : vector<1x32xf32> to vector<16x32xf32>
    %509 = arith.addf %506, %508 : vector<16x32xf32>
    %510 = vector.extract_strided_slice %498 {offsets = [0, 0], sizes = [8, 8], strides = [1, 1]} : vector<8x32xf32> to vector<8x8xf32>
    %511 = vector.extract_strided_slice %504 {offsets = [0, 0], sizes = [16, 8], strides = [1, 1]} : vector<16x32xf32> to vector<16x8xf32>
    %512 = vector.extract_strided_slice %509 {offsets = [0, 0], sizes = [16, 8], strides = [1, 1]} : vector<16x32xf32> to vector<16x8xf32>
    %cst_182 = arith.constant dense<0.000000e+00> : vector<8x16xf32>
    %513 = tpu.matmul %510, %511, %cst_182 {dimension_numbers = #tpu.dot_dimension_numbers<[1], [1], [0], [0], [0, 0, 1, 0], [], []>} : vector<8x8xf32>, vector<16x8xf32>, vector<8x16xf32> -> vector<8x16xf32>
    %cst_183 = arith.constant 0.353553385 : f32
    %514 = vector.broadcast %cst_183 : f32 to vector<8x16xf32>
    %515 = arith.mulf %513, %514 : vector<8x16xf32>
    %cst_184 = arith.constant dense<0xFF800000> : vector<8xf32>
    %516 = vector.multi_reduction <maximumf>, %515, %cst_184 [1] : vector<8x16xf32> to vector<8xf32>
    %517 = vector.shape_cast %516 : vector<8xf32> to vector<8x1xf32>
    %518 = vector.broadcast %517 : vector<8x1xf32> to vector<8x16xf32>
    %519 = arith.subf %515, %518 : vector<8x16xf32>
    %520 = math.exp %519 : vector<8x16xf32>
    %cst_185 = arith.constant dense<0.000000e+00> : vector<8xf32>
    %521 = vector.multi_reduction <add>, %520, %cst_185 [1] : vector<8x16xf32> to vector<8xf32>
    %522 = vector.shape_cast %521 : vector<8xf32> to vector<8x1xf32>
    %523 = tpu.reciprocal %522 {approx = true} : vector<8x1xf32> -> vector<8x1xf32>
    %524 = vector.broadcast %523 : vector<8x1xf32> to vector<8x16xf32>
    %525 = arith.mulf %520, %524 : vector<8x16xf32>
    %cst_186 = arith.constant dense<0.000000e+00> : vector<8x8xf32>
    %526 = tpu.matmul %525, %512, %cst_186 {dimension_numbers = #tpu.dot_dimension_numbers<[1], [0], [0], [1], [0, 0, 1, 1], [], []>} : vector<8x16xf32>, vector<16x8xf32>, vector<8x8xf32> -> vector<8x8xf32>
    %527 = vector.extract_strided_slice %498 {offsets = [0, 8], sizes = [8, 8], strides = [1, 1]} : vector<8x32xf32> to vector<8x8xf32>
    %528 = vector.extract_strided_slice %504 {offsets = [0, 8], sizes = [16, 8], strides = [1, 1]} : vector<16x32xf32> to vector<16x8xf32>
    %529 = vector.extract_strided_slice %509 {offsets = [0, 8], sizes = [16, 8], strides = [1, 1]} : vector<16x32xf32> to vector<16x8xf32>
    %cst_187 = arith.constant dense<0.000000e+00> : vector<8x16xf32>
    %530 = tpu.matmul %527, %528, %cst_187 {dimension_numbers = #tpu.dot_dimension_numbers<[1], [1], [0], [0], [0, 0, 1, 0], [], []>} : vector<8x8xf32>, vector<16x8xf32>, vector<8x16xf32> -> vector<8x16xf32>
    %cst_188 = arith.constant 0.353553385 : f32
    %531 = vector.broadcast %cst_188 : f32 to vector<8x16xf32>
    %532 = arith.mulf %530, %531 : vector<8x16xf32>
    %cst_189 = arith.constant dense<0xFF800000> : vector<8xf32>
    %533 = vector.multi_reduction <maximumf>, %532, %cst_189 [1] : vector<8x16xf32> to vector<8xf32>
    %534 = vector.shape_cast %533 : vector<8xf32> to vector<8x1xf32>
    %535 = vector.broadcast %534 : vector<8x1xf32> to vector<8x16xf32>
    %536 = arith.subf %532, %535 : vector<8x16xf32>
    %537 = math.exp %536 : vector<8x16xf32>
    %cst_190 = arith.constant dense<0.000000e+00> : vector<8xf32>
    %538 = vector.multi_reduction <add>, %537, %cst_190 [1] : vector<8x16xf32> to vector<8xf32>
    %539 = vector.shape_cast %538 : vector<8xf32> to vector<8x1xf32>
    %540 = tpu.reciprocal %539 {approx = true} : vector<8x1xf32> -> vector<8x1xf32>
    %541 = vector.broadcast %540 : vector<8x1xf32> to vector<8x16xf32>
    %542 = arith.mulf %537, %541 : vector<8x16xf32>
    %cst_191 = arith.constant dense<0.000000e+00> : vector<8x8xf32>
    %543 = tpu.matmul %542, %529, %cst_191 {dimension_numbers = #tpu.dot_dimension_numbers<[1], [0], [0], [1], [0, 0, 1, 1], [], []>} : vector<8x16xf32>, vector<16x8xf32>, vector<8x8xf32> -> vector<8x8xf32>
    %544 = vector.extract_strided_slice %498 {offsets = [0, 16], sizes = [8, 8], strides = [1, 1]} : vector<8x32xf32> to vector<8x8xf32>
    %545 = vector.extract_strided_slice %504 {offsets = [0, 16], sizes = [16, 8], strides = [1, 1]} : vector<16x32xf32> to vector<16x8xf32>
    %546 = vector.extract_strided_slice %509 {offsets = [0, 16], sizes = [16, 8], strides = [1, 1]} : vector<16x32xf32> to vector<16x8xf32>
    %cst_192 = arith.constant dense<0.000000e+00> : vector<8x16xf32>
    %547 = tpu.matmul %544, %545, %cst_192 {dimension_numbers = #tpu.dot_dimension_numbers<[1], [1], [0], [0], [0, 0, 1, 0], [], []>} : vector<8x8xf32>, vector<16x8xf32>, vector<8x16xf32> -> vector<8x16xf32>
    %cst_193 = arith.constant 0.353553385 : f32
    %548 = vector.broadcast %cst_193 : f32 to vector<8x16xf32>
    %549 = arith.mulf %547, %548 : vector<8x16xf32>
    %cst_194 = arith.constant dense<0xFF800000> : vector<8xf32>
    %550 = vector.multi_reduction <maximumf>, %549, %cst_194 [1] : vector<8x16xf32> to vector<8xf32>
    %551 = vector.shape_cast %550 : vector<8xf32> to vector<8x1xf32>
    %552 = vector.broadcast %551 : vector<8x1xf32> to vector<8x16xf32>
    %553 = arith.subf %549, %552 : vector<8x16xf32>
    %554 = math.exp %553 : vector<8x16xf32>
    %cst_195 = arith.constant dense<0.000000e+00> : vector<8xf32>
    %555 = vector.multi_reduction <add>, %554, %cst_195 [1] : vector<8x16xf32> to vector<8xf32>
    %556 = vector.shape_cast %555 : vector<8xf32> to vector<8x1xf32>
    %557 = tpu.reciprocal %556 {approx = true} : vector<8x1xf32> -> vector<8x1xf32>
    %558 = vector.broadcast %557 : vector<8x1xf32> to vector<8x16xf32>
    %559 = arith.mulf %554, %558 : vector<8x16xf32>
    %cst_196 = arith.constant dense<0.000000e+00> : vector<8x8xf32>
    %560 = tpu.matmul %559, %546, %cst_196 {dimension_numbers = #tpu.dot_dimension_numbers<[1], [0], [0], [1], [0, 0, 1, 1], [], []>} : vector<8x16xf32>, vector<16x8xf32>, vector<8x8xf32> -> vector<8x8xf32>
    %561 = vector.extract_strided_slice %498 {offsets = [0, 24], sizes = [8, 8], strides = [1, 1]} : vector<8x32xf32> to vector<8x8xf32>
    %562 = vector.extract_strided_slice %504 {offsets = [0, 24], sizes = [16, 8], strides = [1, 1]} : vector<16x32xf32> to vector<16x8xf32>
    %563 = vector.extract_strided_slice %509 {offsets = [0, 24], sizes = [16, 8], strides = [1, 1]} : vector<16x32xf32> to vector<16x8xf32>
    %cst_197 = arith.constant dense<0.000000e+00> : vector<8x16xf32>
    %564 = tpu.matmul %561, %562, %cst_197 {dimension_numbers = #tpu.dot_dimension_numbers<[1], [1], [0], [0], [0, 0, 1, 0], [], []>} : vector<8x8xf32>, vector<16x8xf32>, vector<8x16xf32> -> vector<8x16xf32>
    %cst_198 = arith.constant 0.353553385 : f32
    %565 = vector.broadcast %cst_198 : f32 to vector<8x16xf32>
    %566 = arith.mulf %564, %565 : vector<8x16xf32>
    %cst_199 = arith.constant dense<0xFF800000> : vector<8xf32>
    %567 = vector.multi_reduction <maximumf>, %566, %cst_199 [1] : vector<8x16xf32> to vector<8xf32>
    %568 = vector.shape_cast %567 : vector<8xf32> to vector<8x1xf32>
    %569 = vector.broadcast %568 : vector<8x1xf32> to vector<8x16xf32>
    %570 = arith.subf %566, %569 : vector<8x16xf32>
    %571 = math.exp %570 : vector<8x16xf32>
    %cst_200 = arith.constant dense<0.000000e+00> : vector<8xf32>
    %572 = vector.multi_reduction <add>, %571, %cst_200 [1] : vector<8x16xf32> to vector<8xf32>
    %573 = vector.shape_cast %572 : vector<8xf32> to vector<8x1xf32>
    %574 = tpu.reciprocal %573 {approx = true} : vector<8x1xf32> -> vector<8x1xf32>
    %575 = vector.broadcast %574 : vector<8x1xf32> to vector<8x16xf32>
    %576 = arith.mulf %571, %575 : vector<8x16xf32>
    %cst_201 = arith.constant dense<0.000000e+00> : vector<8x8xf32>
    %577 = tpu.matmul %576, %563, %cst_201 {dimension_numbers = #tpu.dot_dimension_numbers<[1], [0], [0], [1], [0, 0, 1, 1], [], []>} : vector<8x16xf32>, vector<16x8xf32>, vector<8x8xf32> -> vector<8x8xf32>
    %578 = tpu.concatenate %526, %543, %560, %577 in 1 : vector<8x8xf32>, vector<8x8xf32>, vector<8x8xf32>, vector<8x8xf32> -> vector<8x32xf32>
    %c1_202 = arith.constant 1 : index
    %c0_203 = arith.constant 0 : index
    %c0_204 = arith.constant 0 : index
    %579 = vector.load %arg12[%c1_202, %c0_203, %c0_204] : memref<2x32x32xf32, #tpu.memory_space<vmem>>, vector<1x32x32xf32>
    %580 = vector.shape_cast %579 : vector<1x32x32xf32> to vector<32x32xf32>
    %cst_205 = arith.constant dense<0.000000e+00> : vector<8x32xf32>
    %581 = tpu.matmul %578, %580, %cst_205 {dimension_numbers = #tpu.dot_dimension_numbers<[1], [0], [0], [1], [0, 0, 1, 1], [], []>} : vector<8x32xf32>, vector<32x32xf32>, vector<8x32xf32> -> vector<8x32xf32>
    %c1_206 = arith.constant 1 : index
    %c0_207 = arith.constant 0 : index
    %c0_208 = arith.constant 0 : index
    %582 = vector.load %arg13[%c1_206, %c0_207, %c0_208] : memref<2x1x32xf32, #tpu.memory_space<vmem>>, vector<1x1x32xf32>
    %583 = vector.shape_cast %582 : vector<1x1x32xf32> to vector<1x32xf32>
    %584 = vector.broadcast %583 : vector<1x32xf32> to vector<8x32xf32>
    %585 = arith.addf %581, %584 : vector<8x32xf32>
    %586 = arith.addf %440, %585 : vector<8x32xf32>
    %587 = vector.extract_strided_slice %322 {offsets = [6, 0], sizes = [1, 32], strides = [1, 1]} : vector<8x32xf32> to vector<1x32xf32>
    %588 = vector.extract_strided_slice %322 {offsets = [7, 0], sizes = [1, 32], strides = [1, 1]} : vector<8x32xf32> to vector<1x32xf32>
    %cst_209 = arith.constant dense<0.000000e+00> : vector<8xf32>
    %589 = vector.multi_reduction <add>, %586, %cst_209 [1] : vector<8x32xf32> to vector<8xf32>
    %590 = vector.shape_cast %589 : vector<8xf32> to vector<8x1xf32>
    %cst_210 = arith.constant 3.200000e+01 : f32
    %591 = vector.broadcast %cst_210 : f32 to vector<8x1xf32>
    %592 = arith.divf %590, %591 : vector<8x1xf32>
    %593 = vector.broadcast %592 : vector<8x1xf32> to vector<8x32xf32>
    %594 = arith.subf %586, %593 : vector<8x32xf32>
    %595 = arith.mulf %594, %594 : vector<8x32xf32>
    %cst_211 = arith.constant dense<0.000000e+00> : vector<8xf32>
    %596 = vector.multi_reduction <add>, %595, %cst_211 [1] : vector<8x32xf32> to vector<8xf32>
    %597 = vector.shape_cast %596 : vector<8xf32> to vector<8x1xf32>
    %cst_212 = arith.constant 3.200000e+01 : f32
    %598 = vector.broadcast %cst_212 : f32 to vector<8x1xf32>
    %599 = arith.divf %597, %598 : vector<8x1xf32>
    %600 = vector.broadcast %592 : vector<8x1xf32> to vector<8x32xf32>
    %601 = arith.subf %586, %600 : vector<8x32xf32>
    %cst_213 = arith.constant 9.99999974E-6 : f32
    %602 = vector.broadcast %cst_213 : f32 to vector<8x1xf32>
    %603 = arith.addf %599, %602 : vector<8x1xf32>
    %604 = math.rsqrt %603 : vector<8x1xf32>
    %605 = vector.broadcast %604 : vector<8x1xf32> to vector<8x32xf32>
    %606 = arith.mulf %601, %605 : vector<8x32xf32>
    %607 = vector.broadcast %587 : vector<1x32xf32> to vector<8x32xf32>
    %608 = arith.mulf %606, %607 : vector<8x32xf32>
    %609 = vector.broadcast %588 : vector<1x32xf32> to vector<8x32xf32>
    %610 = arith.addf %608, %609 : vector<8x32xf32>
    %c1_214 = arith.constant 1 : index
    %c0_215 = arith.constant 0 : index
    %c0_216 = arith.constant 0 : index
    %611 = vector.load %arg14[%c1_214, %c0_215, %c0_216] : memref<2x32x128xf32, #tpu.memory_space<vmem>>, vector<1x32x128xf32>
    %612 = vector.shape_cast %611 : vector<1x32x128xf32> to vector<32x128xf32>
    %cst_217 = arith.constant dense<0.000000e+00> : vector<8x128xf32>
    %613 = tpu.matmul %610, %612, %cst_217 {dimension_numbers = #tpu.dot_dimension_numbers<[1], [0], [0], [1], [0, 0, 1, 1], [], []>} : vector<8x32xf32>, vector<32x128xf32>, vector<8x128xf32> -> vector<8x128xf32>
    %c1_218 = arith.constant 1 : index
    %c0_219 = arith.constant 0 : index
    %c0_220 = arith.constant 0 : index
    %614 = vector.load %arg15[%c1_218, %c0_219, %c0_220] : memref<2x1x128xf32, #tpu.memory_space<vmem>>, vector<1x1x128xf32>
    %615 = vector.shape_cast %614 : vector<1x1x128xf32> to vector<1x128xf32>
    %616 = vector.broadcast %615 : vector<1x128xf32> to vector<8x128xf32>
    %617 = arith.addf %613, %616 : vector<8x128xf32>
    %cst_221 = arith.constant 5.000000e-01 : f32
    %618 = vector.broadcast %cst_221 : f32 to vector<8x128xf32>
    %619 = arith.mulf %618, %617 : vector<8x128xf32>
    %cst_222 = arith.constant 0.707106769 : f32
    %620 = vector.broadcast %cst_222 : f32 to vector<8x128xf32>
    %621 = arith.mulf %617, %620 : vector<8x128xf32>
    %622 = math.erf %621 : vector<8x128xf32>
    %cst_223 = arith.constant 1.000000e+00 : f32
    %623 = vector.broadcast %cst_223 : f32 to vector<8x128xf32>
    %624 = arith.addf %623, %622 : vector<8x128xf32>
    %625 = arith.mulf %619, %624 : vector<8x128xf32>
    %c1_224 = arith.constant 1 : index
    %c0_225 = arith.constant 0 : index
    %c0_226 = arith.constant 0 : index
    %626 = vector.load %arg16[%c1_224, %c0_225, %c0_226] : memref<2x128x32xf32, #tpu.memory_space<vmem>>, vector<1x128x32xf32>
    %627 = vector.shape_cast %626 : vector<1x128x32xf32> to vector<128x32xf32>
    %cst_227 = arith.constant dense<0.000000e+00> : vector<8x32xf32>
    %628 = tpu.matmul %625, %627, %cst_227 {dimension_numbers = #tpu.dot_dimension_numbers<[1], [0], [0], [1], [0, 0, 1, 1], [], []>} : vector<8x128xf32>, vector<128x32xf32>, vector<8x32xf32> -> vector<8x32xf32>
    %c1_228 = arith.constant 1 : index
    %c0_229 = arith.constant 0 : index
    %c0_230 = arith.constant 0 : index
    %629 = vector.load %arg17[%c1_228, %c0_229, %c0_230] : memref<2x1x32xf32, #tpu.memory_space<vmem>>, vector<1x1x32xf32>
    %630 = vector.shape_cast %629 : vector<1x1x32xf32> to vector<1x32xf32>
    %631 = vector.broadcast %630 : vector<1x32xf32> to vector<8x32xf32>
    %632 = arith.addf %628, %631 : vector<8x32xf32>
    %633 = arith.addf %586, %632 : vector<8x32xf32>
    %c0_231 = arith.constant 0 : index
    %c0_232 = arith.constant 0 : index
    %634 = vector.load %arg18[%c0_231, %c0_232] : memref<2x32xf32, #tpu.memory_space<vmem>>, vector<2x32xf32>
    %635 = vector.extract_strided_slice %634 {offsets = [0, 0], sizes = [1, 32], strides = [1, 1]} : vector<2x32xf32> to vector<1x32xf32>
    %636 = vector.extract_strided_slice %634 {offsets = [1, 0], sizes = [1, 32], strides = [1, 1]} : vector<2x32xf32> to vector<1x32xf32>
    %cst_233 = arith.constant dense<0.000000e+00> : vector<8xf32>
    %637 = vector.multi_reduction <add>, %633, %cst_233 [1] : vector<8x32xf32> to vector<8xf32>
    %638 = vector.shape_cast %637 : vector<8xf32> to vector<8x1xf32>
    %cst_234 = arith.constant 3.200000e+01 : f32
    %639 = vector.broadcast %cst_234 : f32 to vector<8x1xf32>
    %640 = arith.divf %638, %639 : vector<8x1xf32>
    %641 = vector.broadcast %640 : vector<8x1xf32> to vector<8x32xf32>
    %642 = arith.subf %633, %641 : vector<8x32xf32>
    %643 = arith.mulf %642, %642 : vector<8x32xf32>
    %cst_235 = arith.constant dense<0.000000e+00> : vector<8xf32>
    %644 = vector.multi_reduction <add>, %643, %cst_235 [1] : vector<8x32xf32> to vector<8xf32>
    %645 = vector.shape_cast %644 : vector<8xf32> to vector<8x1xf32>
    %cst_236 = arith.constant 3.200000e+01 : f32
    %646 = vector.broadcast %cst_236 : f32 to vector<8x1xf32>
    %647 = arith.divf %645, %646 : vector<8x1xf32>
    %648 = vector.broadcast %640 : vector<8x1xf32> to vector<8x32xf32>
    %649 = arith.subf %633, %648 : vector<8x32xf32>
    %cst_237 = arith.constant 9.99999974E-6 : f32
    %650 = vector.broadcast %cst_237 : f32 to vector<8x1xf32>
    %651 = arith.addf %647, %650 : vector<8x1xf32>
    %652 = math.rsqrt %651 : vector<8x1xf32>
    %653 = vector.broadcast %652 : vector<8x1xf32> to vector<8x32xf32>
    %654 = arith.mulf %649, %653 : vector<8x32xf32>
    %655 = vector.broadcast %635 : vector<1x32xf32> to vector<8x32xf32>
    %656 = arith.mulf %654, %655 : vector<8x32xf32>
    %657 = vector.broadcast %636 : vector<1x32xf32> to vector<8x32xf32>
    %658 = arith.addf %656, %657 : vector<8x32xf32>
    %c0_238 = arith.constant 0 : index
    %c0_239 = arith.constant 0 : index
    %c0_240 = arith.constant 0 : index
    %659 = vector.load %arg19[%c0_238, %c0_239, %c0_240] : memref<1x8x32xf32, #tpu.memory_space<vmem>>, vector<1x8x32xf32>
    %660 = vector.shape_cast %659 : vector<1x8x32xf32> to vector<8x32xf32>
    %661 = vector.shape_cast %658 : vector<8x32xf32> to vector<1x8x32xf32>
    tpu.vector_store %arg19[%c0_238, %c0_239, %c0_240], %661 {strides = array<i32>} : memref<1x8x32xf32, #tpu.memory_space<vmem>>, vector<1x8x32xf32>,
    return
  }
  func.func @transform_0(%arg0: i32) -> (i32, i32, i32) {
    %c0_i32 = arith.constant 0 : i32
    %c0_i32_0 = arith.constant 0 : i32
    %c0_i32_1 = arith.constant 0 : i32
    return %arg0, %c0_i32, %c0_i32_0 : i32, i32, i32
  }
  func.func @transform_1(%arg0: i32) -> (i32, i32, i32) {
    %c0_i32 = arith.constant 0 : i32
    %c0_i32_0 = arith.constant 0 : i32
    %c0_i32_1 = arith.constant 0 : i32
    return %arg0, %c0_i32, %c0_i32_0 : i32, i32, i32
  }
  func.func @transform_2(%arg0: i32) -> (i32, i32, i32) {
    %c0_i32 = arith.constant 0 : i32
    %c0_i32_0 = arith.constant 0 : i32
    %c0_i32_1 = arith.constant 0 : i32
    return %arg0, %c0_i32, %c0_i32_0 : i32, i32, i32
  }
  func.func @transform_3(%arg0: i32) -> (i32, i32, i32) {
    %c0_i32 = arith.constant 0 : i32
    %c0_i32_0 = arith.constant 0 : i32
    %c0_i32_1 = arith.constant 0 : i32
    return %arg0, %c0_i32, %c0_i32_0 : i32, i32, i32
  }
  func.func @transform_4(%arg0: i32) -> (i32, i32, i32) {
    %c0_i32 = arith.constant 0 : i32
    %c0_i32_0 = arith.constant 0 : i32
    %c0_i32_1 = arith.constant 0 : i32
    %c0_i32_2 = arith.constant 0 : i32
    return %c0_i32, %c0_i32_0, %c0_i32_1 : i32, i32, i32
  }
  func.func @transform_5(%arg0: i32) -> (i32, i32, i32) {
    %c0_i32 = arith.constant 0 : i32
    %c0_i32_0 = arith.constant 0 : i32
    %c0_i32_1 = arith.constant 0 : i32
    %c0_i32_2 = arith.constant 0 : i32
    return %c0_i32, %c0_i32_0, %c0_i32_1 : i32, i32, i32
  }
  func.func @transform_6(%arg0: i32) -> (i32, i32, i32) {
    %c0_i32 = arith.constant 0 : i32
    %c0_i32_0 = arith.constant 0 : i32
    %c0_i32_1 = arith.constant 0 : i32
    %c0_i32_2 = arith.constant 0 : i32
    return %c0_i32, %c0_i32_0, %c0_i32_1 : i32, i32, i32
  }
  func.func @transform_7(%arg0: i32) -> (i32, i32, i32) {
    %c0_i32 = arith.constant 0 : i32
    %c0_i32_0 = arith.constant 0 : i32
    %c0_i32_1 = arith.constant 0 : i32
    %c0_i32_2 = arith.constant 0 : i32
    return %c0_i32, %c0_i32_0, %c0_i32_1 : i32, i32, i32
  }
  func.func @transform_8(%arg0: i32) -> (i32, i32, i32) {
    %c0_i32 = arith.constant 0 : i32
    %c0_i32_0 = arith.constant 0 : i32
    %c0_i32_1 = arith.constant 0 : i32
    %c0_i32_2 = arith.constant 0 : i32
    return %c0_i32, %c0_i32_0, %c0_i32_1 : i32, i32, i32
  }
  func.func @transform_9(%arg0: i32) -> (i32, i32, i32) {
    %c0_i32 = arith.constant 0 : i32
    %c0_i32_0 = arith.constant 0 : i32
    %c0_i32_1 = arith.constant 0 : i32
    %c0_i32_2 = arith.constant 0 : i32
    return %c0_i32, %c0_i32_0, %c0_i32_1 : i32, i32, i32
  }
  func.func @transform_10(%arg0: i32) -> (i32, i32, i32) {
    %c0_i32 = arith.constant 0 : i32
    %c0_i32_0 = arith.constant 0 : i32
    %c0_i32_1 = arith.constant 0 : i32
    %c0_i32_2 = arith.constant 0 : i32
    return %c0_i32, %c0_i32_0, %c0_i32_1 : i32, i32, i32
  }
  func.func @transform_11(%arg0: i32) -> (i32, i32, i32) {
    %c0_i32 = arith.constant 0 : i32
    %c0_i32_0 = arith.constant 0 : i32
    %c0_i32_1 = arith.constant 0 : i32
    %c0_i32_2 = arith.constant 0 : i32
    return %c0_i32, %c0_i32_0, %c0_i32_1 : i32, i32, i32
  }
  func.func @transform_12(%arg0: i32) -> (i32, i32, i32) {
    %c0_i32 = arith.constant 0 : i32
    %c0_i32_0 = arith.constant 0 : i32
    %c0_i32_1 = arith.constant 0 : i32
    %c0_i32_2 = arith.constant 0 : i32
    return %c0_i32, %c0_i32_0, %c0_i32_1 : i32, i32, i32
  }
  func.func @transform_13(%arg0: i32) -> (i32, i32, i32) {
    %c0_i32 = arith.constant 0 : i32
    %c0_i32_0 = arith.constant 0 : i32
    %c0_i32_1 = arith.constant 0 : i32
    %c0_i32_2 = arith.constant 0 : i32
    return %c0_i32, %c0_i32_0, %c0_i32_1 : i32, i32, i32
  }
  func.func @transform_14(%arg0: i32) -> (i32, i32, i32) {
    %c0_i32 = arith.constant 0 : i32
    %c0_i32_0 = arith.constant 0 : i32
    %c0_i32_1 = arith.constant 0 : i32
    %c0_i32_2 = arith.constant 0 : i32
    return %c0_i32, %c0_i32_0, %c0_i32_1 : i32, i32, i32
  }
  func.func @transform_15(%arg0: i32) -> (i32, i32, i32) {
    %c0_i32 = arith.constant 0 : i32
    %c0_i32_0 = arith.constant 0 : i32
    %c0_i32_1 = arith.constant 0 : i32
    %c0_i32_2 = arith.constant 0 : i32
    return %c0_i32, %c0_i32_0, %c0_i32_1 : i32, i32, i32
  }
  func.func @transform_16(%arg0: i32) -> (i32, i32, i32) {
    %c0_i32 = arith.constant 0 : i32
    %c0_i32_0 = arith.constant 0 : i32
    %c0_i32_1 = arith.constant 0 : i32
    %c0_i32_2 = arith.constant 0 : i32
    return %c0_i32, %c0_i32_0, %c0_i32_1 : i32, i32, i32
  }
  func.func @transform_17(%arg0: i32) -> (i32, i32) {
    %c0_i32 = arith.constant 0 : i32
    %c0_i32_0 = arith.constant 0 : i32
    %c0_i32_1 = arith.constant 0 : i32
    return %c0_i32, %c0_i32_0 : i32, i32
  }
  func.func @transform_18(%arg0: i32) -> (i32, i32, i32) {
    %c0_i32 = arith.constant 0 : i32
    %c0_i32_0 = arith.constant 0 : i32
    %c0_i32_1 = arith.constant 0 : i32
    return %arg0, %c0_i32, %c0_i32_0 : i32, i32, i32
  }
}

</mosaic_0001>

<llo_original>
// kernel: tpu_custom_call.1
$region0: #{tpu_custom_call.1}
  #allocation0 [shape = 'u32[]', space=smem, size = 0x4, offset = 0x4, fixed_abs, tag = 'smem constant byte address 0x4 - core index']
  #allocation1 [shape = 'u32[72,128]{1,0:T(1,128)}', space=vmem, size = 0x9000, scoped, tag = 'internal scratch']
  %s0 = inlined_call_operand.hbm [shape: f32[2,8,32], index: 0, kind: input, shape index: {}]
  %s1 = inlined_call_operand.hbm [shape: f32[2,16,32], index: 1, kind: input, shape index: {}]
  %s2 = inlined_call_operand.hbm [shape: f32[2,8,32], index: 2, kind: input, shape index: {}]
  %s3 = inlined_call_operand.hbm [shape: f32[2,16,32], index: 3, kind: input, shape index: {}]
  %s4 = inlined_call_operand.hbm [shape: f32[2,8,32], index: 4, kind: input, shape index: {}]
  %s5 = inlined_call_operand.vmem [shape: f32[2,32,96], index: 5, kind: input, shape index: {}]
  %s6 = inlined_call_operand.vmem [shape: f32[2,1,96], index: 6, kind: input, shape index: {}]
  %s7 = inlined_call_operand.vmem [shape: f32[2,32,32], index: 7, kind: input, shape index: {}]
  %s8 = inlined_call_operand.vmem [shape: f32[2,1,32], index: 8, kind: input, shape index: {}]
  %s9 = inlined_call_operand.vmem [shape: f32[2,32,96], index: 9, kind: input, shape index: {}]
  %s10 = inlined_call_operand.vmem [shape: f32[2,1,96], index: 10, kind: input, shape index: {}]
  %s11 = inlined_call_operand.vmem [shape: f32[2,32,32], index: 11, kind: input, shape index: {}]
  %s12 = inlined_call_operand.vmem [shape: f32[2,1,32], index: 12, kind: input, shape index: {}]
  %s13 = inlined_call_operand.vmem [shape: f32[2,32,128], index: 13, kind: input, shape index: {}]
  %s14 = inlined_call_operand.vmem [shape: f32[2,1,128], index: 14, kind: input, shape index: {}]
  %s15 = inlined_call_operand.vmem [shape: f32[2,128,32], index: 15, kind: input, shape index: {}]
  %s16 = inlined_call_operand.vmem [shape: f32[2,1,32], index: 16, kind: input, shape index: {}]
  %s17 = inlined_call_operand.vmem [shape: f32[2,32], index: 17, kind: input, shape index: {}]
  %s18 = inlined_call_operand.hbm [shape: f32[2,8,32], index: 18, kind: output, shape index: {}]
  %s19 = sld [smem:[#allocation0]]
  $region125: #{tpu_custom_call.1} parent=0
    _
  %s21 = ssub.s32 1, %s19
  %s22 = scalar_select 0, %s21, %s19
  $region1: #{tpu_custom_call.1} parent=0
    #allocation2 [shape = 'u8[8192]{0}', space=vmem, size = 0x2000, scoped, tag = 'input window, operand 0']
    #allocation3 [shape = 's32[2]{0}', space=sflag, size = 0x8, scoped, tag = 'scoped memory for tpu_custom_call.1']
    #allocation4 [shape = 's32[2]{0}', space=sflag, size = 0x8, scoped, tag = 'scoped memory for tpu_custom_call.1']
    #allocation5 [shape = 'u8[16384]{0}', space=vmem, size = 0x4000, scoped, tag = 'input window, operand 1']
    #allocation6 [shape = 's32[2]{0}', space=sflag, size = 0x8, scoped, tag = 'scoped memory for tpu_custom_call.1']
    #allocation7 [shape = 'u8[8192]{0}', space=vmem, size = 0x2000, scoped, tag = 'input window, operand 2']
    #allocation8 [shape = 'u8[16384]{0}', space=vmem, size = 0x4000, scoped, tag = 'input window, operand 3']
    #allocation9 [shape = 's32[2]{0}', space=sflag, size = 0x8, scoped, tag = 'scoped memory for tpu_custom_call.1']
    #allocation10 [shape = 'u8[8192]{0}', space=vmem, size = 0x2000, scoped, tag = 'input window, operand 4, single buffered']
    #allocation11 [shape = 'u8[8192]{0}', space=vmem, size = 0x2000, scoped, tag = 'output window, operand 0']
    %23 = vsyncpa [#allocation3], 0
    %s24 = scalar_lea.sflag [#allocation3], 1
    %25 = vsyncpa %s24, 0
    %26 = vsyncpa [#allocation6], 0
    %s27 = scalar_lea.sflag [#allocation6], 1
    %28 = vsyncpa %s27, 0
    %29 = vsyncpa [#allocation9], 0
    %s30 = scalar_lea.sflag [#allocation9], 1
    %31 = vsyncpa %s30, 0
    %32 = vsyncpa [#allocation4], 0
    %s33 = scalar_lea.sflag [#allocation4], 1
    %34 = vsyncpa %s33, 0
    loop: start=0, step=1, limit=4
    $region2: #{tpu_custom_call.1} parent=1 // loop_pre_header
      _
    $region3: #{tpu_custom_call.1} parent=1 // loop_header
      %s36 = sphi 0, %s40
      %p37 = scmp.ge.s32.totalorder %s36, 4
      %s46 = sphi 0, %s48
      %s49 = sphi 0, %s46
      %s50 = sphi 0, %s49
      %s66 = sphi 0, %s50
      %s72 = sphi 0, %s74
      %s75 = sphi 0, %s72
      %s76 = sphi 0, %s75
      %s92 = sphi 0, %s76
      %s98 = sphi 0, %s100
      %s101 = sphi 0, %s98
      %s102 = sphi 0, %s101
      %s118 = sphi 0, %s102
      %s124 = sphi 0, %s126
      %s127 = sphi 0, %s124
      %s128 = sphi 0, %s127
      %s144 = sphi 0, %s128
      %s148 = sphi 0, %s148
      %s150 = sphi 0, %s148
      %s151 = sphi 0, %s150
      %s165 = sphi 0, %s151
      %s169 = sphi 0, %s169
      %s171 = sphi 0, %s169
      %s172 = sphi 0, %s171
      %s186 = sphi 0, %s172
      %s190 = sphi 0, %s190
      %s192 = sphi 0, %s190
      %s193 = sphi 0, %s192
      %s207 = sphi 0, %s193
      %s211 = sphi 0, %s211
      %s213 = sphi 0, %s211
      %s214 = sphi 0, %s213
      %s228 = sphi 0, %s214
      %s232 = sphi 0, %s232
      %s234 = sphi 0, %s232
      %s235 = sphi 0, %s234
      %s249 = sphi 0, %s235
      %s253 = sphi 0, %s253
      %s255 = sphi 0, %s253
      %s256 = sphi 0, %s255
      %s270 = sphi 0, %s256
      %s274 = sphi 0, %s274
      %s276 = sphi 0, %s274
      %s277 = sphi 0, %s276
      %s291 = sphi 0, %s277
      %s295 = sphi 0, %s295
      %s297 = sphi 0, %s295
      %s298 = sphi 0, %s297
      %s312 = sphi 0, %s298
      %s316 = sphi 0, %s316
      %s318 = sphi 0, %s316
      %s319 = sphi 0, %s318
      %s333 = sphi 0, %s319
      %s337 = sphi 0, %s337
      %s339 = sphi 0, %s337
      %s340 = sphi 0, %s339
      %s354 = sphi 0, %s340
      %s358 = sphi 0, %s358
      %s360 = sphi 0, %s358
      %s361 = sphi 0, %s360
      %s375 = sphi 0, %s361
      %s379 = sphi 0, %s379
      %s381 = sphi 0, %s379
      %s382 = sphi 0, %s381
      %s396 = sphi 0, %s382
      %s400 = sphi 0, %s400
      %s402 = sphi 0, %s400
      %s403 = sphi 0, %s402
      %s417 = sphi 0, %s403
      %s421 = sphi 0, %s421
      %s423 = sphi 0, %s421
      %s424 = sphi 0, %s423
      %s438 = sphi 0, %s424
      %s444 = sphi 0, %s446
      %s447 = sphi 0, %s444
      %s448 = sphi 0, %s447
      %s464 = sphi 0, %s448
    $region4: #{tpu_custom_call.1} parent=1 // loop_header_branch
      %39 = sbr.rel (%p37) target = $region8
    $region5: #{tpu_custom_call.1} parent=1 // loop_body
      %s41 = ssub.s32 %s36, 1
      %s42 = ssub.s32 %s36, 2
      %s43 = sadd.s32 %s36, 1
      %s44 = ssub.s32 %s36, %s43
      %p45 = scmp.eq.s32.totalorder %s44, 0
      %s47 = sadd.s32 %s46, 1
      %s48 = scalar_select %p45, %s46, %s47
      %p51 = pneg %p45
      %p52 = scmp.eq.s32.totalorder %s36, 1
      %p53 = por %p51, %p52
      %p54 = scmp.ne.s32.totalorder %s46, %s49
      %p55 = scmp.eq.s32.totalorder %s36, 0
      %p56 = por %p54, %p55
      %p57 = scmp.ne.s32.totalorder %s46, %s49
      %p58 = scmp.eq.s32.totalorder %s41, 1
      %p59 = por %p57, %p58
      %p60 = scmp.ne.s32.totalorder %s49, %s50
      %p61 = scmp.eq.s32.totalorder %s41, 0
      %p62 = por %p60, %p61
      %p63 = scmp.ne.s32.totalorder %s49, %s50
      %p64 = scmp.eq.s32.totalorder %s42, 1
      %p65 = por %p63, %p64
      %p67 = scmp.ne.s32.totalorder %s50, %s66
      %p68 = scmp.eq.s32.totalorder %s42, 0
      %p69 = por %p67, %p68
      %s70 = ssub.s32 %s36, %s43
      %p71 = scmp.eq.s32.totalorder %s70, 0
      %s73 = sadd.s32 %s72, 1
      %s74 = scalar_select %p71, %s72, %s73
      %p77 = pneg %p71
      %p78 = scmp.eq.s32.totalorder %s36, 1
      %p79 = por %p77, %p78
      %p80 = scmp.ne.s32.totalorder %s72, %s75
      %p81 = scmp.eq.s32.totalorder %s36, 0
      %p82 = por %p80, %p81
      %p83 = scmp.ne.s32.totalorder %s72, %s75
      %p84 = scmp.eq.s32.totalorder %s41, 1
      %p85 = por %p83, %p84
      %p86 = scmp.ne.s32.totalorder %s75, %s76
      %p87 = scmp.eq.s32.totalorder %s41, 0
      %p88 = por %p86, %p87
      %p89 = scmp.ne.s32.totalorder %s75, %s76
      %p90 = scmp.eq.s32.totalorder %s42, 1
      %p91 = por %p89, %p90
      %p93 = scmp.ne.s32.totalorder %s76, %s92
      %p94 = scmp.eq.s32.totalorder %s42, 0
      %p95 = por %p93, %p94
      %s96 = ssub.s32 %s36, %s43
      %p97 = scmp.eq.s32.totalorder %s96, 0
      %s99 = sadd.s32 %s98, 1
      %s100 = scalar_select %p97, %s98, %s99
      %p103 = pneg %p97
      %p104 = scmp.eq.s32.totalorder %s36, 1
      %p105 = por %p103, %p104
      %p106 = scmp.ne.s32.totalorder %s98, %s101
      %p107 = scmp.eq.s32.totalorder %s36, 0
      %p108 = por %p106, %p107
      %p109 = scmp.ne.s32.totalorder %s98, %s101
      %p110 = scmp.eq.s32.totalorder %s41, 1
      %p111 = por %p109, %p110
      %p112 = scmp.ne.s32.totalorder %s101, %s102
      %p113 = scmp.eq.s32.totalorder %s41, 0
      %p114 = por %p112, %p113
      %p115 = scmp.ne.s32.totalorder %s101, %s102
      %p116 = scmp.eq.s32.totalorder %s42, 1
      %p117 = por %p115, %p116
      %p119 = scmp.ne.s32.totalorder %s102, %s118
      %p120 = scmp.eq.s32.totalorder %s42, 0
      %p121 = por %p119, %p120
      %s122 = ssub.s32 %s36, %s43
      %p123 = scmp.eq.s32.totalorder %s122, 0
      %s125 = sadd.s32 %s124, 1
      %s126 = scalar_select %p123, %s124, %s125
      %p129 = pneg %p123
      %p130 = scmp.eq.s32.totalorder %s36, 1
      %p131 = por %p129, %p130
      %p132 = scmp.ne.s32.totalorder %s124, %s127
      %p133 = scmp.eq.s32.totalorder %s36, 0
      %p134 = por %p132, %p133
      %p135 = scmp.ne.s32.totalorder %s124, %s127
      %p136 = scmp.eq.s32.totalorder %s41, 1
      %p137 = por %p135, %p136
      %p138 = scmp.ne.s32.totalorder %s127, %s128
      %p139 = scmp.eq.s32.totalorder %s41, 0
      %p140 = por %p138, %p139
      %p141 = scmp.ne.s32.totalorder %s127, %s128
      %p142 = scmp.eq.s32.totalorder %s42, 1
      %p143 = por %p141, %p142
      %p145 = scmp.ne.s32.totalorder %s128, %s144
      %p146 = scmp.eq.s32.totalorder %s42, 0
      %p147 = por %p145, %p146
      %s149 = sadd.s32 %s148, 1
      %p152 = scmp.eq.s32.totalorder %s36, 1
      %p153 = scmp.ne.s32.totalorder %s148, %s150
      %p154 = scmp.eq.s32.totalorder %s36, 0
      %p155 = por %p153, %p154
      %p156 = scmp.ne.s32.totalorder %s148, %s150
      %p157 = scmp.eq.s32.totalorder %s41, 1
      %p158 = por %p156, %p157
      %p159 = scmp.ne.s32.totalorder %s150, %s151
      %p160 = scmp.eq.s32.totalorder %s41, 0
      %p161 = por %p159, %p160
      %p162 = scmp.ne.s32.totalorder %s150, %s151
      %p163 = scmp.eq.s32.totalorder %s42, 1
      %p164 = por %p162, %p163
      %p166 = scmp.ne.s32.totalorder %s151, %s165
      %p167 = scmp.eq.s32.totalorder %s42, 0
      %p168 = por %p166, %p167
      %s170 = sadd.s32 %s169, 1
      %p173 = scmp.eq.s32.totalorder %s36, 1
      %p174 = scmp.ne.s32.totalorder %s169, %s171
      %p175 = scmp.eq.s32.totalorder %s36, 0
      %p176 = por %p174, %p175
      %p177 = scmp.ne.s32.totalorder %s169, %s171
      %p178 = scmp.eq.s32.totalorder %s41, 1
      %p179 = por %p177, %p178
      %p180 = scmp.ne.s32.totalorder %s171, %s172
      %p181 = scmp.eq.s32.totalorder %s41, 0
      %p182 = por %p180, %p181
      %p183 = scmp.ne.s32.totalorder %s171, %s172
      %p184 = scmp.eq.s32.totalorder %s42, 1
      %p185 = por %p183, %p184
      %p187 = scmp.ne.s32.totalorder %s172, %s186
      %p188 = scmp.eq.s32.totalorder %s42, 0
      %p189 = por %p187, %p188
      %s191 = sadd.s32 %s190, 1
      %p194 = scmp.eq.s32.totalorder %s36, 1
      %p195 = scmp.ne.s32.totalorder %s190, %s192
      %p196 = scmp.eq.s32.totalorder %s36, 0
      %p197 = por %p195, %p196
      %p198 = scmp.ne.s32.totalorder %s190, %s192
      %p199 = scmp.eq.s32.totalorder %s41, 1
      %p200 = por %p198, %p199
      %p201 = scmp.ne.s32.totalorder %s192, %s193
      %p202 = scmp.eq.s32.totalorder %s41, 0
      %p203 = por %p201, %p202
      %p204 = scmp.ne.s32.totalorder %s192, %s193
      %p205 = scmp.eq.s32.totalorder %s42, 1
      %p206 = por %p204, %p205
      %p208 = scmp.ne.s32.totalorder %s193, %s207
      %p209 = scmp.eq.s32.totalorder %s42, 0
      %p210 = por %p208, %p209
      %s212 = sadd.s32 %s211, 1
      %p215 = scmp.eq.s32.totalorder %s36, 1
      %p216 = scmp.ne.s32.totalorder %s211, %s213
      %p217 = scmp.eq.s32.totalorder %s36, 0
      %p218 = por %p216, %p217
      %p219 = scmp.ne.s32.totalorder %s211, %s213
      %p220 = scmp.eq.s32.totalorder %s41, 1
      %p221 = por %p219, %p220
      %p222 = scmp.ne.s32.totalorder %s213, %s214
      %p223 = scmp.eq.s32.totalorder %s41, 0
      %p224 = por %p222, %p223
      %p225 = scmp.ne.s32.totalorder %s213, %s214
      %p226 = scmp.eq.s32.totalorder %s42, 1
      %p227 = por %p225, %p226
      %p229 = scmp.ne.s32.totalorder %s214, %s228
      %p230 = scmp.eq.s32.totalorder %s42, 0
      %p231 = por %p229, %p230
      %s233 = sadd.s32 %s232, 1
      %p236 = scmp.eq.s32.totalorder %s36, 1
      %p237 = scmp.ne.s32.totalorder %s232, %s234
      %p238 = scmp.eq.s32.totalorder %s36, 0
      %p239 = por %p237, %p238
      %p240 = scmp.ne.s32.totalorder %s232, %s234
      %p241 = scmp.eq.s32.totalorder %s41, 1
      %p242 = por %p240, %p241
      %p243 = scmp.ne.s32.totalorder %s234, %s235
      %p244 = scmp.eq.s32.totalorder %s41, 0
      %p245 = por %p243, %p244
      %p246 = scmp.ne.s32.totalorder %s234, %s235
      %p247 = scmp.eq.s32.totalorder %s42, 1
      %p248 = por %p246, %p247
      %p250 = scmp.ne.s32.totalorder %s235, %s249
      %p251 = scmp.eq.s32.totalorder %s42, 0
      %p252 = por %p250, %p251
      %s254 = sadd.s32 %s253, 1
      %p257 = scmp.eq.s32.totalorder %s36, 1
      %p258 = scmp.ne.s32.totalorder %s253, %s255
      %p259 = scmp.eq.s32.totalorder %s36, 0
      %p260 = por %p258, %p259
      %p261 = scmp.ne.s32.totalorder %s253, %s255
      %p262 = scmp.eq.s32.totalorder %s41, 1
      %p263 = por %p261, %p262
      %p264 = scmp.ne.s32.totalorder %s255, %s256
      %p265 = scmp.eq.s32.totalorder %s41, 0
      %p266 = por %p264, %p265
      %p267 = scmp.ne.s32.totalorder %s255, %s256
      %p268 = scmp.eq.s32.totalorder %s42, 1
      %p269 = por %p267, %p268
      %p271 = scmp.ne.s32.totalorder %s256, %s270
      %p272 = scmp.eq.s32.totalorder %s42, 0
      %p273 = por %p271, %p272
      %s275 = sadd.s32 %s274, 1
      %p278 = scmp.eq.s32.totalorder %s36, 1
      %p279 = scmp.ne.s32.totalorder %s274, %s276
      %p280 = scmp.eq.s32.totalorder %s36, 0
      %p281 = por %p279, %p280
      %p282 = scmp.ne.s32.totalorder %s274, %s276
      %p283 = scmp.eq.s32.totalorder %s41, 1
      %p284 = por %p282, %p283
      %p285 = scmp.ne.s32.totalorder %s276, %s277
      %p286 = scmp.eq.s32.totalorder %s41, 0
      %p287 = por %p285, %p286
      %p288 = scmp.ne.s32.totalorder %s276, %s277
      %p289 = scmp.eq.s32.totalorder %s42, 1
      %p290 = por %p288, %p289
      %p292 = scmp.ne.s32.totalorder %s277, %s291
      %p293 = scmp.eq.s32.totalorder %s42, 0
      %p294 = por %p292, %p293
      %s296 = sadd.s32 %s295, 1
      %p299 = scmp.eq.s32.totalorder %s36, 1
      %p300 = scmp.ne.s32.totalorder %s295, %s297
      %p301 = scmp.eq.s32.totalorder %s36, 0
      %p302 = por %p300, %p301
      %p303 = scmp.ne.s32.totalorder %s295, %s297
      %p304 = scmp.eq.s32.totalorder %s41, 1
      %p305 = por %p303, %p304
      %p306 = scmp.ne.s32.totalorder %s297, %s298
      %p307 = scmp.eq.s32.totalorder %s41, 0
      %p308 = por %p306, %p307
      %p309 = scmp.ne.s32.totalorder %s297, %s298
      %p310 = scmp.eq.s32.totalorder %s42, 1
      %p311 = por %p309, %p310
      %p313 = scmp.ne.s32.totalorder %s298, %s312
      %p314 = scmp.eq.s32.totalorder %s42, 0
      %p315 = por %p313, %p314
      %s317 = sadd.s32 %s316, 1
      %p320 = scmp.eq.s32.totalorder %s36, 1
      %p321 = scmp.ne.s32.totalorder %s316, %s318
      %p322 = scmp.eq.s32.totalorder %s36, 0
      %p323 = por %p321, %p322
      %p324 = scmp.ne.s32.totalorder %s316, %s318
      %p325 = scmp.eq.s32.totalorder %s41, 1
      %p326 = por %p324, %p325
      %p327 = scmp.ne.s32.totalorder %s318, %s319
      %p328 = scmp.eq.s32.totalorder %s41, 0
      %p329 = por %p327, %p328
      %p330 = scmp.ne.s32.totalorder %s318, %s319
      %p331 = scmp.eq.s32.totalorder %s42, 1
      %p332 = por %p330, %p331
      %p334 = scmp.ne.s32.totalorder %s319, %s333
      %p335 = scmp.eq.s32.totalorder %s42, 0
      %p336 = por %p334, %p335
      %s338 = sadd.s32 %s337, 1
      %p341 = scmp.eq.s32.totalorder %s36, 1
      %p342 = scmp.ne.s32.totalorder %s337, %s339
      %p343 = scmp.eq.s32.totalorder %s36, 0
      %p344 = por %p342, %p343
      %p345 = scmp.ne.s32.totalorder %s337, %s339
      %p346 = scmp.eq.s32.totalorder %s41, 1
      %p347 = por %p345, %p346
      %p348 = scmp.ne.s32.totalorder %s339, %s340
      %p349 = scmp.eq.s32.totalorder %s41, 0
      %p350 = por %p348, %p349
      %p351 = scmp.ne.s32.totalorder %s339, %s340
      %p352 = scmp.eq.s32.totalorder %s42, 1
      %p353 = por %p351, %p352
      %p355 = scmp.ne.s32.totalorder %s340, %s354
      %p356 = scmp.eq.s32.totalorder %s42, 0
      %p357 = por %p355, %p356
      %s359 = sadd.s32 %s358, 1
      %p362 = scmp.eq.s32.totalorder %s36, 1
      %p363 = scmp.ne.s32.totalorder %s358, %s360
      %p364 = scmp.eq.s32.totalorder %s36, 0
      %p365 = por %p363, %p364
      %p366 = scmp.ne.s32.totalorder %s358, %s360
      %p367 = scmp.eq.s32.totalorder %s41, 1
      %p368 = por %p366, %p367
      %p369 = scmp.ne.s32.totalorder %s360, %s361
      %p370 = scmp.eq.s32.totalorder %s41, 0
      %p371 = por %p369, %p370
      %p372 = scmp.ne.s32.totalorder %s360, %s361
      %p373 = scmp.eq.s32.totalorder %s42, 1
      %p374 = por %p372, %p373
      %p376 = scmp.ne.s32.totalorder %s361, %s375
      %p377 = scmp.eq.s32.totalorder %s42, 0
      %p378 = por %p376, %p377
      %s380 = sadd.s32 %s379, 1
      %p383 = scmp.eq.s32.totalorder %s36, 1
      %p384 = scmp.ne.s32.totalorder %s379, %s381
      %p385 = scmp.eq.s32.totalorder %s36, 0
      %p386 = por %p384, %p385
      %p387 = scmp.ne.s32.totalorder %s379, %s381
      %p388 = scmp.eq.s32.totalorder %s41, 1
      %p389 = por %p387, %p388
      %p390 = scmp.ne.s32.totalorder %s381, %s382
      %p391 = scmp.eq.s32.totalorder %s41, 0
      %p392 = por %p390, %p391
      %p393 = scmp.ne.s32.totalorder %s381, %s382
      %p394 = scmp.eq.s32.totalorder %s42, 1
      %p395 = por %p393, %p394
      %p397 = scmp.ne.s32.totalorder %s382, %s396
      %p398 = scmp.eq.s32.totalorder %s42, 0
      %p399 = por %p397, %p398
      %s401 = sadd.s32 %s400, 1
      %p404 = scmp.eq.s32.totalorder %s36, 1
      %p405 = scmp.ne.s32.totalorder %s400, %s402
      %p406 = scmp.eq.s32.totalorder %s36, 0
      %p407 = por %p405, %p406
      %p408 = scmp.ne.s32.totalorder %s400, %s402
      %p409 = scmp.eq.s32.totalorder %s41, 1
      %p410 = por %p408, %p409
      %p411 = scmp.ne.s32.totalorder %s402, %s403
      %p412 = scmp.eq.s32.totalorder %s41, 0
      %p413 = por %p411, %p412
      %p414 = scmp.ne.s32.totalorder %s402, %s403
      %p415 = scmp.eq.s32.totalorder %s42, 1
      %p416 = por %p414, %p415
      %p418 = scmp.ne.s32.totalorder %s403, %s417
      %p419 = scmp.eq.s32.totalorder %s42, 0
      %p420 = por %p418, %p419
      %s422 = sadd.s32 %s421, 1
      %p425 = scmp.eq.s32.totalorder %s36, 1
      %p426 = scmp.ne.s32.totalorder %s421, %s423
      %p427 = scmp.eq.s32.totalorder %s36, 0
      %p428 = por %p426, %p427
      %p429 = scmp.ne.s32.totalorder %s421, %s423
      %p430 = scmp.eq.s32.totalorder %s41, 1
      %p431 = por %p429, %p430
      %p432 = scmp.ne.s32.totalorder %s423, %s424
      %p433 = scmp.eq.s32.totalorder %s41, 0
      %p434 = por %p432, %p433
      %p435 = scmp.ne.s32.totalorder %s423, %s424
      %p436 = scmp.eq.s32.totalorder %s42, 1
      %p437 = por %p435, %p436
      %p439 = scmp.ne.s32.totalorder %s424, %s438
      %p440 = scmp.eq.s32.totalorder %s42, 0
      %p441 = por %p439, %p440
      %s442 = ssub.s32 %s36, %s43
      %p443 = scmp.eq.s32.totalorder %s442, 0
      %s445 = sadd.s32 %s444, 1
      %s446 = scalar_select %p443, %s444, %s445
      %p449 = pneg %p443
      %p450 = scmp.eq.s32.totalorder %s36, 1
      %p451 = por %p449, %p450
      %p452 = scmp.ne.s32.totalorder %s444, %s447
      %p453 = scmp.eq.s32.totalorder %s36, 0
      %p454 = por %p452, %p453
      %p455 = scmp.ne.s32.totalorder %s444, %s447
      %p456 = scmp.eq.s32.totalorder %s41, 1
      %p457 = por %p455, %p456
      %p458 = scmp.ne.s32.totalorder %s447, %s448
      %p459 = scmp.eq.s32.totalorder %s41, 0
      %p460 = por %p458, %p459
      %p461 = scmp.ne.s32.totalorder %s447, %s448
      %p462 = scmp.eq.s32.totalorder %s42, 1
      %p463 = por %p461, %p462
      %p465 = scmp.ne.s32.totalorder %s448, %s464
      %p466 = scmp.eq.s32.totalorder %s42, 0
      %p467 = por %p465, %p466
      %p468 = scmp.le.s32.totalorder 1, %s36
      %p469 = scmp.lt.s32.totalorder %s36, 3
      %p470 = pnand %p468, %p469
      %p471 = pneg %p470
      // Predicated region
      $region9: #{tpu_custom_call.1} parent=5 // pred_check
        _
      $region10: #{tpu_custom_call.1} parent=5 // pred_check_branch
        %473 = sbr.rel (%p470) target = $region12
      $region11: #{tpu_custom_call.1} parent=5 // pred_region
        %s474 = ssub.s32 %s36, 1
        // Predicated region
        $region13: #{tpu_custom_call.1} parent=11 // pred_check
          %p475 = pneg %p161
        $region14: #{tpu_custom_call.1} parent=11 // pred_check_branch
          %477 = sbr.rel (%p475) target = $region16
        $region15: #{tpu_custom_call.1} parent=11 // pred_region
          %479 = vsyncadd [#allocation9], 0
          %s480 = sshll.u32 %s4, 4
          %s481 = int_to_ptr.hbm [resolvable:$true] %s480
          %s482 = sshll.u32 [#allocation10], 4
          %s483 = int_to_ptr.vmem [resolvable:$true] %s482
          %488 = dma.hbm_to_vmem [thread:$0]  %s481, 256, %s483, [#allocation9], 128, 128, 8
        $region16: #{tpu_custom_call.1} parent=11 // pred_fallthru
          _
        // Predicated region
        $region17: #{tpu_custom_call.1} parent=11 // pred_check
          %p489 = pneg %p182
        $region18: #{tpu_custom_call.1} parent=11 // pred_check_branch
          %491 = sbr.rel (%p489) target = $region20
        $region19: #{tpu_custom_call.1} parent=11 // pred_region
          _
        $region20: #{tpu_custom_call.1} parent=11 // pred_fallthru
          _
        // Predicated region
        $region21: #{tpu_custom_call.1} parent=11 // pred_check
          %p492 = pneg %p203
        $region22: #{tpu_custom_call.1} parent=11 // pred_check_branch
          %494 = sbr.rel (%p492) target = $region24
        $region23: #{tpu_custom_call.1} parent=11 // pred_region
          _
        $region24: #{tpu_custom_call.1} parent=11 // pred_fallthru
          _
        // Predicated region
        $region25: #{tpu_custom_call.1} parent=11 // pred_check
          %p495 = pneg %p224
        $region26: #{tpu_custom_call.1} parent=11 // pred_check_branch
          %497 = sbr.rel (%p495) target = $region28
        $region27: #{tpu_custom_call.1} parent=11 // pred_region
          _
        $region28: #{tpu_custom_call.1} parent=11 // pred_fallthru
          _
        // Predicated region
        $region29: #{tpu_custom_call.1} parent=11 // pred_check
          %p498 = pneg %p245
        $region30: #{tpu_custom_call.1} parent=11 // pred_check_branch
          %500 = sbr.rel (%p498) target = $region32
        $region31: #{tpu_custom_call.1} parent=11 // pred_region
          _
        $region32: #{tpu_custom_call.1} parent=11 // pred_fallthru
          _
        // Predicated region
        $region33: #{tpu_custom_call.1} parent=11 // pred_check
          %p501 = pneg %p266
        $region34: #{tpu_custom_call.1} parent=11 // pred_check_branch
          %503 = sbr.rel (%p501) target = $region36
        $region35: #{tpu_custom_call.1} parent=11 // pred_region
          _
        $region36: #{tpu_custom_call.1} parent=11 // pred_fallthru
          _
        // Predicated region
        $region37: #{tpu_custom_call.1} parent=11 // pred_check
          %p504 = pneg %p287
        $region38: #{tpu_custom_call.1} parent=11 // pred_check_branch
          %506 = sbr.rel (%p504) target = $region40
        $region39: #{tpu_custom_call.1} parent=11 // pred_region
          _
        $region40: #{tpu_custom_call.1} parent=11 // pred_fallthru
          _
        // Predicated region
        $region41: #{tpu_custom_call.1} parent=11 // pred_check
          %p507 = pneg %p308
        $region42: #{tpu_custom_call.1} parent=11 // pred_check_branch
          %509 = sbr.rel (%p507) target = $region44
        $region43: #{tpu_custom_call.1} parent=11 // pred_region
          _
        $region44: #{tpu_custom_call.1} parent=11 // pred_fallthru
          _
        // Predicated region
        $region45: #{tpu_custom_call.1} parent=11 // pred_check
          %p510 = pneg %p329
        $region46: #{tpu_custom_call.1} parent=11 // pred_check_branch
          %512 = sbr.rel (%p510) target = $region48
        $region47: #{tpu_custom_call.1} parent=11 // pred_region
          _
        $region48: #{tpu_custom_call.1} parent=11 // pred_fallthru
          _
        // Predicated region
        $region49: #{tpu_custom_call.1} parent=11 // pred_check
          %p513 = pneg %p350
        $region50: #{tpu_custom_call.1} parent=11 // pred_check_branch
          %515 = sbr.rel (%p513) target = $region52
        $region51: #{tpu_custom_call.1} parent=11 // pred_region
          _
        $region52: #{tpu_custom_call.1} parent=11 // pred_fallthru
          _
        // Predicated region
        $region53: #{tpu_custom_call.1} parent=11 // pred_check
          %p516 = pneg %p371
        $region54: #{tpu_custom_call.1} parent=11 // pred_check_branch
          %518 = sbr.rel (%p516) target = $region56
        $region55: #{tpu_custom_call.1} parent=11 // pred_region
          _
        $region56: #{tpu_custom_call.1} parent=11 // pred_fallthru
          _
        // Predicated region
        $region57: #{tpu_custom_call.1} parent=11 // pred_check
          %p519 = pneg %p392
        $region58: #{tpu_custom_call.1} parent=11 // pred_check_branch
          %521 = sbr.rel (%p519) target = $region60
        $region59: #{tpu_custom_call.1} parent=11 // pred_region
          _
        $region60: #{tpu_custom_call.1} parent=11 // pred_fallthru
          _
        // Predicated region
        $region61: #{tpu_custom_call.1} parent=11 // pred_check
          %p522 = pneg %p413
        $region62: #{tpu_custom_call.1} parent=11 // pred_check_branch
          %524 = sbr.rel (%p522) target = $region64
        $region63: #{tpu_custom_call.1} parent=11 // pred_region
          _
        $region64: #{tpu_custom_call.1} parent=11 // pred_fallthru
          _
        // Predicated region
        $region65: #{tpu_custom_call.1} parent=11 // pred_check
          %p525 = pneg %p434
        $region66: #{tpu_custom_call.1} parent=11 // pred_check_branch
          %527 = sbr.rel (%p525) target = $region68
        $region67: #{tpu_custom_call.1} parent=11 // pred_region
          _
        $region68: #{tpu_custom_call.1} parent=11 // pred_fallthru
          _
      $region12: #{tpu_custom_call.1} parent=5 // pred_fallthru
        _
      %p528 = scmp.lt.s32.totalorder %s36, 2
      // Predicated region
      $region69: #{tpu_custom_call.1} parent=5 // pred_check
        %p529 = pneg %p528
      $region70: #{tpu_custom_call.1} parent=5 // pred_check_branch
        %531 = sbr.rel (%p529) target = $region72
      $region71: #{tpu_custom_call.1} parent=5 // pred_region
        // Predicated region
        $region73: #{tpu_custom_call.1} parent=71 // pred_check
          %p532 = pneg %p56
        $region74: #{tpu_custom_call.1} parent=71 // pred_check_branch
          %534 = sbr.rel (%p532) target = $region76
        $region75: #{tpu_custom_call.1} parent=71 // pred_region
          %s535 = sand.u32 %s46, 1
          %s536 = scalar_lea.sflag [#allocation3], %s535
          %s537 = sand.u32 %s46, 1
          %s538 = smul.addr %s537, 8
          %s539 = scalar_lea.vmem [#allocation2], %s538
          %541 = vsyncadd %s536, 0
          %s542 = smul.addr %s36, 8
          %s543 = scalar_lea.hbm %s0, %s542
          %s545 = sshll.u32 %s543, 4
          %s546 = int_to_ptr.hbm [resolvable:$true] %s545
          %s547 = sshll.u32 %s539, 4
          %s548 = int_to_ptr.vmem [resolvable:$true] %s547
          %550 = dma.hbm_to_vmem [thread:$0]  %s546, 128, %s548, %s536
        $region76: #{tpu_custom_call.1} parent=71 // pred_fallthru
          _
        // Predicated region
        $region77: #{tpu_custom_call.1} parent=71 // pred_check
          %p551 = pneg %p82
        $region78: #{tpu_custom_call.1} parent=71 // pred_check_branch
          %553 = sbr.rel (%p551) target = $region80
        $region79: #{tpu_custom_call.1} parent=71 // pred_region
          %s554 = sand.u32 %s36, 1
          %s555 = scalar_lea.sflag [#allocation6], %s554
          %s556 = sand.u32 %s72, 1
          %s557 = smul.addr %s556, 16
          %s558 = scalar_lea.vmem [#allocation5], %s557
          %560 = vsyncadd %s555, 0
          %s561 = smul.addr %s36, 2
          %s562 = smul.addr %s561, 8
          %s563 = scalar_lea.hbm %s1, %s562
          %s564 = sshll.u32 %s563, 4
          %s565 = int_to_ptr.hbm [resolvable:$true] %s564
          %s566 = sshll.u32 %s558, 4
          %s567 = int_to_ptr.vmem [resolvable:$true] %s566
          %572 = dma.hbm_to_vmem [thread:$0]  %s565, 256, %s567, %s555, 128, 128, 8
        $region80: #{tpu_custom_call.1} parent=71 // pred_fallthru
          _
        // Predicated region
        $region81: #{tpu_custom_call.1} parent=71 // pred_check
          %p573 = pneg %p108
        $region82: #{tpu_custom_call.1} parent=71 // pred_check_branch
          %575 = sbr.rel (%p573) target = $region84
        $region83: #{tpu_custom_call.1} parent=71 // pred_region
          %s576 = sand.u32 %s36, 1
          %s577 = scalar_lea.sflag [#allocation6], %s576
          %s578 = sand.u32 %s98, 1
          %s579 = smul.addr %s578, 8
          %s580 = scalar_lea.vmem [#allocation7], %s579
          %582 = vsyncadd %s577, 0
          %s583 = smul.addr %s36, 8
          %s584 = scalar_lea.hbm %s2, %s583
          %s586 = sshll.u32 %s584, 4
          %s587 = int_to_ptr.hbm [resolvable:$true] %s586
          %s588 = sshll.u32 %s580, 4
          %s589 = int_to_ptr.vmem [resolvable:$true] %s588
          %591 = dma.hbm_to_vmem [thread:$0]  %s587, 128, %s589, %s577
        $region84: #{tpu_custom_call.1} parent=71 // pred_fallthru
          _
        // Predicated region
        $region85: #{tpu_custom_call.1} parent=71 // pred_check
          %p592 = pneg %p134
        $region86: #{tpu_custom_call.1} parent=71 // pred_check_branch
          %594 = sbr.rel (%p592) target = $region88
        $region87: #{tpu_custom_call.1} parent=71 // pred_region
          %s595 = sand.u32 %s36, 1
          %s596 = scalar_lea.sflag [#allocation9], %s595
          %s597 = sand.u32 %s124, 1
          %s598 = smul.addr %s597, 16
          %s599 = scalar_lea.vmem [#allocation8], %s598
          %601 = vsyncadd %s596, 0
          %s602 = smul.addr %s36, 2
          %s603 = smul.addr %s602, 8
          %s604 = scalar_lea.hbm %s3, %s603
          %s605 = sshll.u32 %s604, 4
          %s606 = int_to_ptr.hbm [resolvable:$true] %s605
          %s607 = sshll.u32 %s599, 4
          %s608 = int_to_ptr.vmem [resolvable:$true] %s607
          %613 = dma.hbm_to_vmem [thread:$0]  %s606, 256, %s608, %s596, 128, 128, 8
        $region88: #{tpu_custom_call.1} parent=71 // pred_fallthru
          _
      $region72: #{tpu_custom_call.1} parent=5 // pred_fallthru
        _
      %p614 = scmp.le.s32.totalorder 1, %s36
      %p615 = scmp.lt.s32.totalorder %s36, 3
      %p616 = pnand %p614, %p615
      %p617 = pneg %p616
      // Predicated region
      $region89: #{tpu_custom_call.1} parent=5 // pred_check
        _
      $region90: #{tpu_custom_call.1} parent=5 // pred_check_branch
        %619 = sbr.rel (%p616) target = $region92
      $region91: #{tpu_custom_call.1} parent=5 // pred_region
        %s620 = ssub.s32 %s36, 1
        %s621 = sand.u32 %s49, 1
        %s622 = scalar_lea.sflag [#allocation3], %s621
        %s623 = sand.u32 %s49, 1
        %s624 = smul.addr %s623, 8
        %s625 = scalar_lea.vmem [#allocation2], %s624
        // Predicated region
        $region93: #{tpu_custom_call.1} parent=91 // pred_check
          %p626 = pneg %p62
        $region94: #{tpu_custom_call.1} parent=91 // pred_check_branch
          %628 = sbr.rel (%p626) target = $region96
        $region95: #{tpu_custom_call.1} parent=91 // pred_region
          %630 = dma.done %s622, 128
        $region96: #{tpu_custom_call.1} parent=91 // pred_fallthru
          _
        %s631 = sand.u32 %s41, 1
        %s632 = scalar_lea.sflag [#allocation6], %s631
        %s633 = sand.u32 %s75, 1
        %s634 = smul.addr %s633, 16
        %s635 = scalar_lea.vmem [#allocation5], %s634
        // Predicated region
        $region97: #{tpu_custom_call.1} parent=91 // pred_check
          %p636 = pneg %p88
        $region98: #{tpu_custom_call.1} parent=91 // pred_check_branch
          %638 = sbr.rel (%p636) target = $region100
        $region99: #{tpu_custom_call.1} parent=91 // pred_region
          %640 = dma.done %s632, 256
        $region100: #{tpu_custom_call.1} parent=91 // pred_fallthru
          _
        %s641 = sand.u32 %s41, 1
        %s642 = scalar_lea.sflag [#allocation6], %s641
        %s643 = sand.u32 %s101, 1
        %s644 = smul.addr %s643, 8
        %s645 = scalar_lea.vmem [#allocation7], %s644
        // Predicated region
        $region101: #{tpu_custom_call.1} parent=91 // pred_check
          %p646 = pneg %p114
        $region102: #{tpu_custom_call.1} parent=91 // pred_check_branch
          %648 = sbr.rel (%p646) target = $region104
        $region103: #{tpu_custom_call.1} parent=91 // pred_region
          %650 = dma.done %s642, 128
        $region104: #{tpu_custom_call.1} parent=91 // pred_fallthru
          _
        %s651 = sand.u32 %s41, 1
        %s652 = scalar_lea.sflag [#allocation9], %s651
        %s653 = sand.u32 %s127, 1
        %s654 = smul.addr %s653, 16
        %s655 = scalar_lea.vmem [#allocation8], %s654
        // Predicated region
        $region105: #{tpu_custom_call.1} parent=91 // pred_check
          %p656 = pneg %p140
        $region106: #{tpu_custom_call.1} parent=91 // pred_check_branch
          %658 = sbr.rel (%p656) target = $region108
        $region107: #{tpu_custom_call.1} parent=91 // pred_region
          %660 = dma.done %s652, 256
        $region108: #{tpu_custom_call.1} parent=91 // pred_fallthru
          _
        // Predicated region
        $region109: #{tpu_custom_call.1} parent=91 // pred_check
          %p661 = pneg %p161
        $region110: #{tpu_custom_call.1} parent=91 // pred_check_branch
          %663 = sbr.rel (%p661) target = $region112
        $region111: #{tpu_custom_call.1} parent=91 // pred_region
          %665 = dma.done [#allocation9], 256
        $region112: #{tpu_custom_call.1} parent=91 // pred_fallthru
          _
        %s666 = sand.u32 %s49, 1
        %s667 = scalar_lea.sflag [#allocation3], %s666
        %s668 = sand.u32 %s49, 1
        %s669 = smul.addr %s668, 8
        %s670 = scalar_lea.vmem [#allocation2], %s669
        %p671 = pneg %p62
        %p672 = pneg %p59
        %s673 = sand.u32 %s41, 1
        %s674 = scalar_lea.sflag [#allocation6], %s673
        %s675 = sand.u32 %s75, 1
        %s676 = smul.addr %s675, 16
        %s677 = scalar_lea.vmem [#allocation5], %s676
        %p678 = pneg %p88
        %p679 = pneg %p85
        %s680 = sand.u32 %s41, 1
        %s681 = scalar_lea.sflag [#allocation6], %s680
        %s682 = sand.u32 %s101, 1
        %s683 = smul.addr %s682, 8
        %s684 = scalar_lea.vmem [#allocation7], %s683
        %p685 = pneg %p114
        %p686 = pneg %p111
        %s687 = sand.u32 %s41, 1
        %s688 = scalar_lea.sflag [#allocation9], %s687
        %s689 = sand.u32 %s127, 1
        %s690 = smul.addr %s689, 16
        %s691 = scalar_lea.vmem [#allocation8], %s690
        %p692 = pneg %p140
        %p693 = pneg %p137
        %p694 = pneg %p161
        %p695 = pneg %p158
        %p696 = pneg %p182
        %p697 = pneg %p179
        %p698 = pneg %p203
        %p699 = pneg %p200
        %p700 = pneg %p224
        %p701 = pneg %p221
        %p702 = pneg %p245
        %p703 = pneg %p242
        %p704 = pneg %p266
        %p705 = pneg %p263
        %p706 = pneg %p287
        %p707 = pneg %p284
        %p708 = pneg %p308
        %p709 = pneg %p305
        %p710 = pneg %p329
        %p711 = pneg %p326
        %p712 = pneg %p350
        %p713 = pneg %p347
        %p714 = pneg %p371
        %p715 = pneg %p368
        %p716 = pneg %p392
        %p717 = pneg %p389
        %p718 = pneg %p413
        %p719 = pneg %p410
        %p720 = pneg %p434
        %p721 = pneg %p431
        %p722 = pneg %p460
        %p723 = pneg %p457
        %s724 = sand.u32 %s447, 1
        %s725 = scalar_lea.sflag [#allocation4], %s724
        %s726 = sand.u32 %s447, 1
        %s727 = smul.addr %s726, 8
        %s728 = scalar_lea.vmem [#allocation11], %s727
        %v729 = vld [vmem:[%s625] sm:$0xff]
        %v730 = vld [vmem:[%s635] sm:$0xff]
        %v731 = vld [vmem:[%s635 + $0x8] sm:$0xff]
        %v732 = vld [vmem:[%s645] sm:$0xff]
        %v733 = vld [vmem:[%s655] sm:$0xff]
        %v734 = vld [vmem:[%s655 + $0x8] sm:$0xff]
        %v735 = vld [vmem:[#allocation10] sm:$0xff]
        %vm736 = vcmask 261120
        %v737 = vsel %vm736, %v729, 0.0
        %738 = vadd.xlane.f32.xlu0 %v737
        %v739 = vpop.xlane.xlu0 %738
        %v740 = vrcp.pop 32.0
        %v741 = vmul.f32 32.0, %v740
        %v742 = vsub.f32 1.0, %v741
        %v743 = vmul.f32 %v740, %v742
        %v744 = vadd.f32 %v740, %v743
        %vm745 = vweird.f32 %v740
        %v746 = vsel %vm745, %v740, %v744
        %v747 = vmul.f32 %v739, %v746
        %v748 = vsub.f32 %v729, %v747
        %v749 = vmul.f32 %v748, %v748
        %v750 = vsel %vm736, %v749, 0.0
        %751 = vadd.xlane.f32.xlu0 %v750
        %v752 = vpop.xlane.xlu0 %751
        %v753 = vmul.f32 %v752, %v746
        %v754 = vadd.f32 %v753, 1e-05
        %v755 = vrsqrt.pop %v754
        %v756 = vmul.f32 %v755, %v754
        %v757 = vmul.f32 %v756, %v755
        %v758 = vmul.f32 0.5, %v757
        %v759 = vsub.f32 1.5, %v758
        %v760 = vmul.f32 %v755, %v759
        %vm761 = vweird.f32 %v754
        %vm762 = vweird.f32 %v755
        %vm763 = vmor %vm761, %vm762
        %v764 = vsel %vm763, %v755, %v760
        %v765 = vmul.f32 %v748, %v764
        %v766 = vperm.slane %v735, 0
        %v767 = vmul.f32 %v765, %v766
        %v768 = vperm.slane %v735, 1
        %v769 = vadd.f32 %v767, %v768
        %v770 = vadd.f32 %v769, %v732
        %v771 = vld [vmem:[%s5] sm:$0xff]
        %v772 = vld [vmem:[%s5 + $0x8] sm:$0xff]
        %v773 = vld [vmem:[%s5 + $0x10] sm:$0xff]
        %v774 = vld [vmem:[%s5 + $0x18] sm:$0xff]
        %v775 = vld [vmem:[%s6] sm:$0x1]
        %v777 = vperm.slane %v775, 0
        %v780 = vsel %vm736, %v770, 0
        %782 = vmatpush.msra.mxu0 0.0
        %783 = vmatpush.msra.mxu0 0.0
        %784 = vmatpush.msra.mxu0 0.0
        %785 = vmatpush.msra.mxu0 0.0
        %786 = vmatpush.msra.mxu0 0.0
        %787 = vmatpush.msra.mxu0 0.0
        %788 = vmatpush.msra.mxu0 0.0
        %789 = vmatpush.msra.mxu0 0.0
        %790 = vmatpush.msra.mxu0 0.0
        %791 = vmatpush.msra.mxu0 0.0
        %792 = vmatpush.msra.mxu0 0.0
        %793 = vmatpush.msra.mxu0 0.0
        %794 = vmatpush.msra.mxu0 %v774
        %795 = vmatpush.msra.mxu0 %v773
        %796 = vmatpush.msra.mxu0 %v772
        %797 = vmatpush.msra.mxu0 %v771
        %798 = vmatmul.f32.gmra.mxu0 %v780
        %v799 = vpop.f32.mrf.mxu0
        %v800 = vadd.f32 %v777, %v799
        %801 = vdwg.mxu0
        %806 = vrot.lane.b32.xlu0 %v771, 64
        %v807 = vpop.permute.xlu0 %806
        %808 = vrot.lane.b32.xlu0 %v772, 64
        %v809 = vpop.permute.xlu0 %808
        %810 = vrot.lane.b32.xlu0 %v773, 64
        %v811 = vpop.permute.xlu0 %810
        %812 = vrot.lane.b32.xlu0 %v774, 64
        %v813 = vpop.permute.xlu0 %812
        %818 = vrot.lane.b32.xlu0 %v777, 64
        %v819 = vpop.permute.xlu0 %818
        %v822 = vsel %vm736, %v769, 0
        %824 = vmatpush.msra.mxu0 0.0
        %825 = vmatpush.msra.mxu0 0.0
        %826 = vmatpush.msra.mxu0 0.0
        %827 = vmatpush.msra.mxu0 0.0
        %828 = vmatpush.msra.mxu0 0.0
        %829 = vmatpush.msra.mxu0 0.0
        %830 = vmatpush.msra.mxu0 0.0
        %831 = vmatpush.msra.mxu0 0.0
        %832 = vmatpush.msra.mxu0 0.0
        %833 = vmatpush.msra.mxu0 0.0
        %834 = vmatpush.msra.mxu0 0.0
        %835 = vmatpush.msra.mxu0 0.0
        %836 = vmatpush.msra.mxu0 %v813
        %837 = vmatpush.msra.mxu0 %v811
        %838 = vmatpush.msra.mxu0 %v809
        %839 = vmatpush.msra.mxu0 %v807
        %840 = vmatmul.f32.gmra.mxu0 %v822
        %v841 = vpop.f32.mrf.mxu0
        %v842 = vadd.f32 %v819, %v841
        %843 = vdwg.mxu0
        %845 = vrot.lane.b32.xlu0 %v800, 96
        %v846 = vpop.permute.xlu0 %845
        %vm847 = vcmask 64512
        %v848 = vsel %vm847, %v800, 0
        %v850 = vsel %vm847, %v846, 0
        %852 = vmatpush.xpose.msra.mxu0 0.0
        %853 = vmatpush.xpose.msra.mxu0 0.0
        %854 = vmatpush.xpose.msra.mxu0 0.0
        %855 = vmatpush.xpose.msra.mxu0 0.0
        %856 = vmatpush.xpose.msra.mxu0 0.0
        %857 = vmatpush.xpose.msra.mxu0 0.0
        %858 = vmatpush.xpose.msra.mxu0 0.0
        %859 = vmatpush.xpose.msra.mxu0 0.0
        %860 = vmatpush.xpose.msra.mxu0 0.0
        %861 = vmatpush.xpose.msra.mxu0 0.0
        %862 = vmatpush.xpose.msra.mxu0 0.0
        %863 = vmatpush.xpose.msra.mxu0 0.0
        %864 = vmatpush.xpose.msra.mxu0 0.0
        %865 = vmatpush.xpose.msra.mxu0 0.0
        %866 = vmatpush.xpose.msra.mxu0 0.0
        %867 = vmatpush.xpose.msra.mxu0 %v850
        %868 = vmatmul.f32.gmra.mxu0 %v848
        %v869 = vpop.f32.mrf.mxu0
        %v870 = vadd.f32 0.0, %v869
        %871 = vdwg.mxu0
        %v872 = vmul.f32 %v870, 0.35355338
        %v873 = vsel %vm847, %v872, -inf
        %874 = vmax.xlane.f32.xlu0 %v873
        %v875 = vpop.xlane.xlu0 %874
        %v876 = vsub.f32 %v872, %v875
        %v877 = vmul.f32 %v876, 1.442695
        %v878 = vpow.pop %v877
        %v879 = vsel %vm847, %v878, 0.0
        %880 = vadd.xlane.f32.xlu0 %v879
        %v881 = vpop.xlane.xlu0 %880
        %v882 = vrcp.pop %v881
        %v883 = vmul.f32 %v878, %v882
        %v885 = vsel %vm847, %v883, 0
        %887 = vmatpush.msra.mxu0 0.0
        %888 = vmatpush.msra.mxu0 0.0
        %889 = vmatpush.msra.mxu0 0.0
        %890 = vmatpush.msra.mxu0 0.0
        %891 = vmatpush.msra.mxu0 0.0
        %892 = vmatpush.msra.mxu0 0.0
        %893 = vmatpush.msra.mxu0 0.0
        %894 = vmatpush.msra.mxu0 0.0
        %895 = vmatpush.msra.mxu0 0.0
        %896 = vmatpush.msra.mxu0 0.0
        %897 = vmatpush.msra.mxu0 0.0
        %898 = vmatpush.msra.mxu0 0.0
        %899 = vmatpush.msra.mxu0 0.0
        %900 = vmatpush.msra.mxu0 0.0
        %901 = vmatpush.msra.mxu0 0.0
        %902 = vmatpush.msra.mxu0 %v842
        %903 = vmatmul.f32.gmra.mxu0 %v885
        %v904 = vpop.f32.mrf.mxu0
        %v905 = vadd.f32 0.0, %v904
        %906 = vdwg.mxu0
        %907 = vrot.lane.b32.xlu0 %v800, 120
        %v908 = vpop.permute.xlu0 %907
        %909 = vrot.lane.b32.xlu0 %v800, 88
        %v910 = vpop.permute.xlu0 %909
        %v911 = vsel %vm847, %v908, 0
        %v913 = vsel %vm847, %v910, 0
        %915 = vmatpush.xpose.msra.mxu0 0.0
        %916 = vmatpush.xpose.msra.mxu0 0.0
        %917 = vmatpush.xpose.msra.mxu0 0.0
        %918 = vmatpush.xpose.msra.mxu0 0.0
        %919 = vmatpush.xpose.msra.mxu0 0.0
        %920 = vmatpush.xpose.msra.mxu0 0.0
        %921 = vmatpush.xpose.msra.mxu0 0.0
        %922 = vmatpush.xpose.msra.mxu0 0.0
        %923 = vmatpush.xpose.msra.mxu0 0.0
        %924 = vmatpush.xpose.msra.mxu0 0.0
        %925 = vmatpush.xpose.msra.mxu0 0.0
        %926 = vmatpush.xpose.msra.mxu0 0.0
        %927 = vmatpush.xpose.msra.mxu0 0.0
        %928 = vmatpush.xpose.msra.mxu0 0.0
        %929 = vmatpush.xpose.msra.mxu0 0.0
        %930 = vmatpush.xpose.msra.mxu0 %v913
        %931 = vmatmul.f32.gmra.mxu0 %v911
        %v932 = vpop.f32.mrf.mxu0
        %v933 = vadd.f32 0.0, %v932
        %934 = vdwg.mxu0
        %v935 = vmul.f32 %v933, 0.35355338
        %v936 = vsel %vm847, %v935, -inf
        %937 = vmax.xlane.f32.xlu0 %v936
        %v938 = vpop.xlane.xlu0 %937
        %v939 = vsub.f32 %v935, %v938
        %v940 = vmul.f32 %v939, 1.442695
        %v941 = vpow.pop %v940
        %v942 = vsel %vm847, %v941, 0.0
        %943 = vadd.xlane.f32.xlu0 %v942
        %v944 = vpop.xlane.xlu0 %943
        %v945 = vrcp.pop %v944
        %v946 = vmul.f32 %v941, %v945
        %948 = vrot.lane.b32.xlu0 %v842, 120
        %v949 = vpop.permute.xlu0 %948
        %v952 = vsel %vm847, %v946, 0
        %954 = vmatpush.msra.mxu0 0.0
        %955 = vmatpush.msra.mxu0 0.0
        %956 = vmatpush.msra.mxu0 0.0
        %957 = vmatpush.msra.mxu0 0.0
        %958 = vmatpush.msra.mxu0 0.0
        %959 = vmatpush.msra.mxu0 0.0
        %960 = vmatpush.msra.mxu0 0.0
        %961 = vmatpush.msra.mxu0 0.0
        %962 = vmatpush.msra.mxu0 0.0
        %963 = vmatpush.msra.mxu0 0.0
        %964 = vmatpush.msra.mxu0 0.0
        %965 = vmatpush.msra.mxu0 0.0
        %966 = vmatpush.msra.mxu0 0.0
        %967 = vmatpush.msra.mxu0 0.0
        %968 = vmatpush.msra.mxu0 0.0
        %969 = vmatpush.msra.mxu0 %v949
        %970 = vmatmul.f32.gmra.mxu0 %v952
        %v971 = vpop.f32.mrf.mxu0
        %v972 = vadd.f32 0.0, %v971
        %973 = vdwg.mxu0
        %974 = vrot.lane.b32.xlu0 %v800, 112
        %v975 = vpop.permute.xlu0 %974
        %976 = vrot.lane.b32.xlu0 %v800, 80
        %v977 = vpop.permute.xlu0 %976
        %v978 = vsel %vm847, %v975, 0
        %v980 = vsel %vm847, %v977, 0
        %982 = vmatpush.xpose.msra.mxu0 0.0
        %983 = vmatpush.xpose.msra.mxu0 0.0
        %984 = vmatpush.xpose.msra.mxu0 0.0
        %985 = vmatpush.xpose.msra.mxu0 0.0
        %986 = vmatpush.xpose.msra.mxu0 0.0
        %987 = vmatpush.xpose.msra.mxu0 0.0
        %988 = vmatpush.xpose.msra.mxu0 0.0
        %989 = vmatpush.xpose.msra.mxu0 0.0
        %990 = vmatpush.xpose.msra.mxu0 0.0
        %991 = vmatpush.xpose.msra.mxu0 0.0
        %992 = vmatpush.xpose.msra.mxu0 0.0
        %993 = vmatpush.xpose.msra.mxu0 0.0
        %994 = vmatpush.xpose.msra.mxu0 0.0
        %995 = vmatpush.xpose.msra.mxu0 0.0
        %996 = vmatpush.xpose.msra.mxu0 0.0
        %997 = vmatpush.xpose.msra.mxu0 %v980
        %998 = vmatmul.f32.gmra.mxu0 %v978
        %v999 = vpop.f32.mrf.mxu0
        %v1000 = vadd.f32 0.0, %v999
        %1001 = vdwg.mxu0
        %v1002 = vmul.f32 %v1000, 0.35355338
        %v1003 = vsel %vm847, %v1002, -inf
        %1004 = vmax.xlane.f32.xlu0 %v1003
        %v1005 = vpop.xlane.xlu0 %1004
        %v1006 = vsub.f32 %v1002, %v1005
        %v1007 = vmul.f32 %v1006, 1.442695
        %v1008 = vpow.pop %v1007
        %v1009 = vsel %vm847, %v1008, 0.0
        %1010 = vadd.xlane.f32.xlu0 %v1009
        %v1011 = vpop.xlane.xlu0 %1010
        %v1012 = vrcp.pop %v1011
        %v1013 = vmul.f32 %v1008, %v1012
        %1014 = vrot.lane.b32.xlu0 %v842, 112
        %v1015 = vpop.permute.xlu0 %1014
        %v1018 = vsel %vm847, %v1013, 0
        %1020 = vmatpush.msra.mxu0 0.0
        %1021 = vmatpush.msra.mxu0 0.0
        %1022 = vmatpush.msra.mxu0 0.0
        %1023 = vmatpush.msra.mxu0 0.0
        %1024 = vmatpush.msra.mxu0 0.0
        %1025 = vmatpush.msra.mxu0 0.0
        %1026 = vmatpush.msra.mxu0 0.0
        %1027 = vmatpush.msra.mxu0 0.0
        %1028 = vmatpush.msra.mxu0 0.0
        %1029 = vmatpush.msra.mxu0 0.0
        %1030 = vmatpush.msra.mxu0 0.0
        %1031 = vmatpush.msra.mxu0 0.0
        %1032 = vmatpush.msra.mxu0 0.0
        %1033 = vmatpush.msra.mxu0 0.0
        %1034 = vmatpush.msra.mxu0 0.0
        %1035 = vmatpush.msra.mxu0 %v1015
        %1036 = vmatmul.f32.gmra.mxu0 %v1018
        %v1037 = vpop.f32.mrf.mxu0
        %v1038 = vadd.f32 0.0, %v1037
        %1039 = vdwg.mxu0
        %1040 = vrot.lane.b32.xlu0 %v800, 104
        %v1041 = vpop.permute.xlu0 %1040
        %1042 = vrot.lane.b32.xlu0 %v800, 72
        %v1043 = vpop.permute.xlu0 %1042
        %v1044 = vsel %vm847, %v1041, 0
        %v1046 = vsel %vm847, %v1043, 0
        %1048 = vmatpush.xpose.msra.mxu0 0.0
        %1049 = vmatpush.xpose.msra.mxu0 0.0
        %1050 = vmatpush.xpose.msra.mxu0 0.0
        %1051 = vmatpush.xpose.msra.mxu0 0.0
        %1052 = vmatpush.xpose.msra.mxu0 0.0
        %1053 = vmatpush.xpose.msra.mxu0 0.0
        %1054 = vmatpush.xpose.msra.mxu0 0.0
        %1055 = vmatpush.xpose.msra.mxu0 0.0
        %1056 = vmatpush.xpose.msra.mxu0 0.0
        %1057 = vmatpush.xpose.msra.mxu0 0.0
        %1058 = vmatpush.xpose.msra.mxu0 0.0
        %1059 = vmatpush.xpose.msra.mxu0 0.0
        %1060 = vmatpush.xpose.msra.mxu0 0.0
        %1061 = vmatpush.xpose.msra.mxu0 0.0
        %1062 = vmatpush.xpose.msra.mxu0 0.0
        %1063 = vmatpush.xpose.msra.mxu0 %v1046
        %1064 = vmatmul.f32.gmra.mxu0 %v1044
        %v1065 = vpop.f32.mrf.mxu0
        %v1066 = vadd.f32 0.0, %v1065
        %1067 = vdwg.mxu0
        %v1068 = vmul.f32 %v1066, 0.35355338
        %v1069 = vsel %vm847, %v1068, -inf
        %1070 = vmax.xlane.f32.xlu0 %v1069
        %v1071 = vpop.xlane.xlu0 %1070
        %v1072 = vsub.f32 %v1068, %v1071
        %v1073 = vmul.f32 %v1072, 1.442695
        %v1074 = vpow.pop %v1073
        %v1075 = vsel %vm847, %v1074, 0.0
        %1076 = vadd.xlane.f32.xlu0 %v1075
        %v1077 = vpop.xlane.xlu0 %1076
        %v1078 = vrcp.pop %v1077
        %v1079 = vmul.f32 %v1074, %v1078
        %1080 = vrot.lane.b32.xlu0 %v842, 104
        %v1081 = vpop.permute.xlu0 %1080
        %v1084 = vsel %vm847, %v1079, 0
        %1086 = vmatpush.msra.mxu0 0.0
        %1087 = vmatpush.msra.mxu0 0.0
        %1088 = vmatpush.msra.mxu0 0.0
        %1089 = vmatpush.msra.mxu0 0.0
        %1090 = vmatpush.msra.mxu0 0.0
        %1091 = vmatpush.msra.mxu0 0.0
        %1092 = vmatpush.msra.mxu0 0.0
        %1093 = vmatpush.msra.mxu0 0.0
        %1094 = vmatpush.msra.mxu0 0.0
        %1095 = vmatpush.msra.mxu0 0.0
        %1096 = vmatpush.msra.mxu0 0.0
        %1097 = vmatpush.msra.mxu0 0.0
        %1098 = vmatpush.msra.mxu0 0.0
        %1099 = vmatpush.msra.mxu0 0.0
        %1100 = vmatpush.msra.mxu0 0.0
        %1101 = vmatpush.msra.mxu0 %v1081
        %1102 = vmatmul.f32.gmra.mxu0 %v1084
        %v1103 = vpop.f32.mrf.mxu0
        %v1104 = vadd.f32 0.0, %v1103
        %1105 = vdwg.mxu0
        %1107 = vrot.lane.b32.xlu0 %v972, 8
        %v1108 = vpop.permute.xlu0 %1107
        %1111 = vrot.lane.b32.xlu0 %v1038, 16
        %v1112 = vpop.permute.xlu0 %1111
        %1115 = vrot.lane.b32.xlu0 %v1104, 24
        %v1116 = vpop.permute.xlu0 %1115
        %v1118 = vsel %vm847, %v905, %v1108
        %vm1119 = vcmask 130048
        %v1120 = vsel %vm1119, %v1118, %v1112
        %vm1121 = vcmask 195584
        %v1122 = vsel %vm1121, %v1120, %v1116
        %v1123 = vld [vmem:[%s7] sm:$0xff]
        %v1124 = vld [vmem:[%s7 + $0x8] sm:$0xff]
        %v1125 = vld [vmem:[%s7 + $0x10] sm:$0xff]
        %v1126 = vld [vmem:[%s7 + $0x18] sm:$0xff]
        %v1127 = vld [vmem:[%s8] sm:$0x1]
        %v1129 = vperm.slane %v1127, 0
        %v1132 = vsel %vm736, %v1122, 0
        %1134 = vmatpush.msra.mxu0 0.0
        %1135 = vmatpush.msra.mxu0 0.0
        %1136 = vmatpush.msra.mxu0 0.0
        %1137 = vmatpush.msra.mxu0 0.0
        %1138 = vmatpush.msra.mxu0 0.0
        %1139 = vmatpush.msra.mxu0 0.0
        %1140 = vmatpush.msra.mxu0 0.0
        %1141 = vmatpush.msra.mxu0 0.0
        %1142 = vmatpush.msra.mxu0 0.0
        %1143 = vmatpush.msra.mxu0 0.0
        %1144 = vmatpush.msra.mxu0 0.0
        %1145 = vmatpush.msra.mxu0 0.0
        %1146 = vmatpush.msra.mxu0 %v1126
        %1147 = vmatpush.msra.mxu0 %v1125
        %1148 = vmatpush.msra.mxu0 %v1124
        %1149 = vmatpush.msra.mxu0 %v1123
        %1150 = vmatmul.f32.gmra.mxu0 %v1132
        %v1151 = vpop.f32.mrf.mxu0
        %v1152 = vadd.f32 %v1129, %v1151
        %1153 = vdwg.mxu0
        %v1154 = vadd.f32 %v729, %v1152
        %v1155 = vsel %vm736, %v1154, 0.0
        %1156 = vadd.xlane.f32.xlu0 %v1155
        %v1157 = vpop.xlane.xlu0 %1156
        %v1158 = vmul.f32 %v1157, %v746
        %v1159 = vsub.f32 %v1154, %v1158
        %v1160 = vmul.f32 %v1159, %v1159
        %v1161 = vsel %vm736, %v1160, 0.0
        %1162 = vadd.xlane.f32.xlu0 %v1161
        %v1163 = vpop.xlane.xlu0 %1162
        %v1164 = vmul.f32 %v1163, %v746
        %v1165 = vadd.f32 %v1164, 1e-05
        %v1166 = vrsqrt.pop %v1165
        %v1167 = vmul.f32 %v1166, %v1165
        %v1168 = vmul.f32 %v1167, %v1166
        %v1169 = vmul.f32 0.5, %v1168
        %v1170 = vsub.f32 1.5, %v1169
        %v1171 = vmul.f32 %v1166, %v1170
        %vm1172 = vweird.f32 %v1165
        %vm1173 = vweird.f32 %v1166
        %vm1174 = vmor %vm1172, %vm1173
        %v1175 = vsel %vm1174, %v1166, %v1171
        %v1176 = vmul.f32 %v1159, %v1175
        %v1177 = vperm.slane %v735, 2
        %v1178 = vmul.f32 %v1176, %v1177
        %v1179 = vperm.slane %v735, 3
        %v1180 = vadd.f32 %v1178, %v1179
        %v1181 = vsel %vm736, %v730, 0.0
        %1182 = vadd.xlane.f32.xlu0 %v1181
        %v1183 = vpop.xlane.xlu0 %1182
        %v1184 = vsel %vm736, %v731, 0.0
        %1185 = vadd.xlane.f32.xlu0 %v1184
        %v1186 = vpop.xlane.xlu0 %1185
        %v1187 = vmul.f32 %v1183, %v746
        %v1188 = vmul.f32 %v1186, %v746
        %v1189 = vsub.f32 %v730, %v1187
        %v1190 = vsub.f32 %v731, %v1188
        %v1191 = vmul.f32 %v1189, %v1189
        %v1192 = vmul.f32 %v1190, %v1190
        %v1193 = vsel %vm736, %v1191, 0.0
        %1194 = vadd.xlane.f32.xlu0 %v1193
        %v1195 = vpop.xlane.xlu0 %1194
        %v1196 = vsel %vm736, %v1192, 0.0
        %1197 = vadd.xlane.f32.xlu0 %v1196
        %v1198 = vpop.xlane.xlu0 %1197
        %v1199 = vmul.f32 %v1195, %v746
        %v1200 = vmul.f32 %v1198, %v746
        %v1201 = vadd.f32 %v1199, 1e-05
        %v1202 = vadd.f32 %v1200, 1e-05
        %v1203 = vrsqrt.pop %v1201
        %v1204 = vmul.f32 %v1203, %v1201
        %v1205 = vmul.f32 %v1204, %v1203
        %v1206 = vmul.f32 0.5, %v1205
        %v1207 = vsub.f32 1.5, %v1206
        %v1208 = vmul.f32 %v1203, %v1207
        %vm1209 = vweird.f32 %v1201
        %vm1210 = vweird.f32 %v1203
        %vm1211 = vmor %vm1209, %vm1210
        %v1212 = vsel %vm1211, %v1203, %v1208
        %v1213 = vrsqrt.pop %v1202
        %v1214 = vmul.f32 %v1213, %v1202
        %v1215 = vmul.f32 %v1214, %v1213
        %v1216 = vmul.f32 0.5, %v1215
        %v1217 = vsub.f32 1.5, %v1216
        %v1218 = vmul.f32 %v1213, %v1217
        %vm1219 = vweird.f32 %v1202
        %vm1220 = vweird.f32 %v1213
        %vm1221 = vmor %vm1219, %vm1220
        %v1222 = vsel %vm1221, %v1213, %v1218
        %v1223 = vmul.f32 %v1189, %v1212
        %v1224 = vmul.f32 %v1190, %v1222
        %v1225 = vperm.slane %v735, 4
        %v1226 = vmul.f32 %v1223, %v1225
        %v1227 = vmul.f32 %v1224, %v1225
        %v1228 = vperm.slane %v735, 5
        %v1229 = vadd.f32 %v1226, %v1228
        %v1230 = vadd.f32 %v1227, %v1228
        %v1231 = vld [vmem:[%s9] sm:$0xff]
        %v1232 = vld [vmem:[%s9 + $0x8] sm:$0xff]
        %v1233 = vld [vmem:[%s9 + $0x10] sm:$0xff]
        %v1234 = vld [vmem:[%s9 + $0x18] sm:$0xff]
        %v1235 = vld [vmem:[%s10] sm:$0x1]
        %v1236 = vadd.f32 %v1180, %v732
        %v1238 = vperm.slane %v1235, 0
        %v1241 = vsel %vm736, %v1236, 0
        %1243 = vmatpush.msra.mxu0 0.0
        %1244 = vmatpush.msra.mxu0 0.0
        %1245 = vmatpush.msra.mxu0 0.0
        %1246 = vmatpush.msra.mxu0 0.0
        %1247 = vmatpush.msra.mxu0 0.0
        %1248 = vmatpush.msra.mxu0 0.0
        %1249 = vmatpush.msra.mxu0 0.0
        %1250 = vmatpush.msra.mxu0 0.0
        %1251 = vmatpush.msra.mxu0 0.0
        %1252 = vmatpush.msra.mxu0 0.0
        %1253 = vmatpush.msra.mxu0 0.0
        %1254 = vmatpush.msra.mxu0 0.0
        %1255 = vmatpush.msra.mxu0 %v1234
        %1256 = vmatpush.msra.mxu0 %v1233
        %1257 = vmatpush.msra.mxu0 %v1232
        %1258 = vmatpush.msra.mxu0 %v1231
        %1259 = vmatmul.f32.gmra.mxu0 %v1241
        %v1260 = vpop.f32.mrf.mxu0
        %v1261 = vadd.f32 %v1238, %v1260
        %1262 = vdwg.mxu0
        %v1263 = vadd.f32 %v1229, %v733
        %v1264 = vadd.f32 %v1230, %v734
        %1269 = vrot.lane.b32.xlu0 %v1231, 96
        %v1270 = vpop.permute.xlu0 %1269
        %1271 = vrot.lane.b32.xlu0 %v1232, 96
        %v1272 = vpop.permute.xlu0 %1271
        %1273 = vrot.lane.b32.xlu0 %v1233, 96
        %v1274 = vpop.permute.xlu0 %1273
        %1275 = vrot.lane.b32.xlu0 %v1234, 96
        %v1276 = vpop.permute.xlu0 %1275
        %1281 = vrot.lane.b32.xlu0 %v1238, 96
        %v1282 = vpop.permute.xlu0 %1281
        %v1285 = vsel %vm736, %v1263, 0
        %v1288 = vsel %vm736, %v1264, 0
        %1290 = vmatpush.msra.mxu0 0.0
        %1291 = vmatpush.msra.mxu0 0.0
        %1292 = vmatpush.msra.mxu0 0.0
        %1293 = vmatpush.msra.mxu0 0.0
        %1294 = vmatpush.msra.mxu0 0.0
        %1295 = vmatpush.msra.mxu0 0.0
        %1296 = vmatpush.msra.mxu0 0.0
        %1297 = vmatpush.msra.mxu0 0.0
        %1298 = vmatpush.msra.mxu0 0.0
        %1299 = vmatpush.msra.mxu0 0.0
        %1300 = vmatpush.msra.mxu0 0.0
        %1301 = vmatpush.msra.mxu0 0.0
        %1302 = vmatpush.msra.mxu0 %v1276
        %1303 = vmatpush.msra.mxu0 %v1274
        %1304 = vmatpush.msra.mxu0 %v1272
        %1305 = vmatpush.msra.mxu0 %v1270
        %1306 = vmatmul.f32.gmra.mxu0 %v1285
        %v1307 = vpop.f32.mrf.mxu0
        %v1308 = vadd.f32 %v1282, %v1307
        %1309 = vmatmul.f32.gmra.mxu0 %v1288
        %v1310 = vpop.f32.mrf.mxu0
        %v1311 = vadd.f32 %v1282, %v1310
        %1312 = vdwg.mxu0
        %1313 = vrot.lane.b32.xlu0 %v1231, 64
        %v1314 = vpop.permute.xlu0 %1313
        %1315 = vrot.lane.b32.xlu0 %v1232, 64
        %v1316 = vpop.permute.xlu0 %1315
        %1317 = vrot.lane.b32.xlu0 %v1233, 64
        %v1318 = vpop.permute.xlu0 %1317
        %1319 = vrot.lane.b32.xlu0 %v1234, 64
        %v1320 = vpop.permute.xlu0 %1319
        %1325 = vrot.lane.b32.xlu0 %v1238, 64
        %v1326 = vpop.permute.xlu0 %1325
        %v1329 = vsel %vm736, %v1229, 0
        %v1332 = vsel %vm736, %v1230, 0
        %1334 = vmatpush.msra.mxu0 0.0
        %1335 = vmatpush.msra.mxu0 0.0
        %1336 = vmatpush.msra.mxu0 0.0
        %1337 = vmatpush.msra.mxu0 0.0
        %1338 = vmatpush.msra.mxu0 0.0
        %1339 = vmatpush.msra.mxu0 0.0
        %1340 = vmatpush.msra.mxu0 0.0
        %1341 = vmatpush.msra.mxu0 0.0
        %1342 = vmatpush.msra.mxu0 0.0
        %1343 = vmatpush.msra.mxu0 0.0
        %1344 = vmatpush.msra.mxu0 0.0
        %1345 = vmatpush.msra.mxu0 0.0
        %1346 = vmatpush.msra.mxu0 %v1320
        %1347 = vmatpush.msra.mxu0 %v1318
        %1348 = vmatpush.msra.mxu0 %v1316
        %1349 = vmatpush.msra.mxu0 %v1314
        %1350 = vmatmul.f32.gmra.mxu0 %v1329
        %v1351 = vpop.f32.mrf.mxu0
        %v1352 = vadd.f32 %v1326, %v1351
        %1353 = vmatmul.f32.gmra.mxu0 %v1332
        %v1354 = vpop.f32.mrf.mxu0
        %v1355 = vadd.f32 %v1326, %v1354
        %1356 = vdwg.mxu0
        %v1358 = vsel %vm847, %v1261, 0
        %v1361 = vsel %vm847, %v1308, 0
        %v1364 = vsel %vm847, %v1311, 0
        %1366 = vmatpush.xpose.msra.mxu0 0.0
        %1367 = vmatpush.xpose.msra.mxu0 0.0
        %1368 = vmatpush.xpose.msra.mxu0 0.0
        %1369 = vmatpush.xpose.msra.mxu0 0.0
        %1370 = vmatpush.xpose.msra.mxu0 0.0
        %1371 = vmatpush.xpose.msra.mxu0 0.0
        %1372 = vmatpush.xpose.msra.mxu0 0.0
        %1373 = vmatpush.xpose.msra.mxu0 0.0
        %1374 = vmatpush.xpose.msra.mxu0 0.0
        %1375 = vmatpush.xpose.msra.mxu0 0.0
        %1376 = vmatpush.xpose.msra.mxu0 0.0
        %1377 = vmatpush.xpose.msra.mxu0 0.0
        %1378 = vmatpush.xpose.msra.mxu0 0.0
        %1379 = vmatpush.xpose.msra.mxu0 0.0
        %1380 = vmatpush.xpose.msra.mxu0 %v1364
        %1381 = vmatpush.xpose.msra.mxu0 %v1361
        %1382 = vmatmul.f32.gmra.mxu0 %v1358
        %v1383 = vpop.f32.mrf.mxu0
        %v1384 = vadd.f32 0.0, %v1383
        %1385 = vdwg.mxu0
        %v1386 = vmul.f32 %v1384, 0.35355338
        %v1387 = vsel %vm1119, %v1386, -inf
        %1388 = vmax.xlane.f32.xlu0 %v1387
        %v1389 = vpop.xlane.xlu0 %1388
        %v1390 = vsub.f32 %v1386, %v1389
        %v1391 = vmul.f32 %v1390, 1.442695
        %v1392 = vpow.pop %v1391
        %v1393 = vsel %vm1119, %v1392, 0.0
        %1394 = vadd.xlane.f32.xlu0 %v1393
        %v1395 = vpop.xlane.xlu0 %1394
        %v1396 = vrcp.pop %v1395
        %v1397 = vmul.f32 %v1392, %v1396
        %v1399 = vsel %vm1119, %v1397, 0
        %1401 = vmatpush.msra.mxu0 0.0
        %1402 = vmatpush.msra.mxu0 0.0
        %1403 = vmatpush.msra.mxu0 0.0
        %1404 = vmatpush.msra.mxu0 0.0
        %1405 = vmatpush.msra.mxu0 0.0
        %1406 = vmatpush.msra.mxu0 0.0
        %1407 = vmatpush.msra.mxu0 0.0
        %1408 = vmatpush.msra.mxu0 0.0
        %1409 = vmatpush.msra.mxu0 0.0
        %1410 = vmatpush.msra.mxu0 0.0
        %1411 = vmatpush.msra.mxu0 0.0
        %1412 = vmatpush.msra.mxu0 0.0
        %1413 = vmatpush.msra.mxu0 0.0
        %1414 = vmatpush.msra.mxu0 0.0
        %1415 = vmatpush.msra.mxu0 %v1355
        %1416 = vmatpush.msra.mxu0 %v1352
        %1417 = vmatmul.f32.gmra.mxu0 %v1399
        %v1418 = vpop.f32.mrf.mxu0
        %v1419 = vadd.f32 0.0, %v1418
        %1420 = vdwg.mxu0
        %1421 = vrot.lane.b32.xlu0 %v1261, 120
        %v1422 = vpop.permute.xlu0 %1421
        %1423 = vrot.lane.b32.xlu0 %v1308, 120
        %v1424 = vpop.permute.xlu0 %1423
        %1425 = vrot.lane.b32.xlu0 %v1311, 120
        %v1426 = vpop.permute.xlu0 %1425
        %v1427 = vsel %vm847, %v1422, 0
        %v1429 = vsel %vm847, %v1424, 0
        %v1431 = vsel %vm847, %v1426, 0
        %1433 = vmatpush.xpose.msra.mxu0 0.0
        %1434 = vmatpush.xpose.msra.mxu0 0.0
        %1435 = vmatpush.xpose.msra.mxu0 0.0
        %1436 = vmatpush.xpose.msra.mxu0 0.0
        %1437 = vmatpush.xpose.msra.mxu0 0.0
        %1438 = vmatpush.xpose.msra.mxu0 0.0
        %1439 = vmatpush.xpose.msra.mxu0 0.0
        %1440 = vmatpush.xpose.msra.mxu0 0.0
        %1441 = vmatpush.xpose.msra.mxu0 0.0
        %1442 = vmatpush.xpose.msra.mxu0 0.0
        %1443 = vmatpush.xpose.msra.mxu0 0.0
        %1444 = vmatpush.xpose.msra.mxu0 0.0
        %1445 = vmatpush.xpose.msra.mxu0 0.0
        %1446 = vmatpush.xpose.msra.mxu0 0.0
        %1447 = vmatpush.xpose.msra.mxu0 %v1431
        %1448 = vmatpush.xpose.msra.mxu0 %v1429
        %1449 = vmatmul.f32.gmra.mxu0 %v1427
        %v1450 = vpop.f32.mrf.mxu0
        %v1451 = vadd.f32 0.0, %v1450
        %1452 = vdwg.mxu0
        %v1453 = vmul.f32 %v1451, 0.35355338
        %v1454 = vsel %vm1119, %v1453, -inf
        %1455 = vmax.xlane.f32.xlu0 %v1454
        %v1456 = vpop.xlane.xlu0 %1455
        %v1457 = vsub.f32 %v1453, %v1456
        %v1458 = vmul.f32 %v1457, 1.442695
        %v1459 = vpow.pop %v1458
        %v1460 = vsel %vm1119, %v1459, 0.0
        %1461 = vadd.xlane.f32.xlu0 %v1460
        %v1462 = vpop.xlane.xlu0 %1461
        %v1463 = vrcp.pop %v1462
        %v1464 = vmul.f32 %v1459, %v1463
        %1467 = vrot.lane.b32.xlu0 %v1352, 120
        %v1468 = vpop.permute.xlu0 %1467
        %1469 = vrot.lane.b32.xlu0 %v1355, 120
        %v1470 = vpop.permute.xlu0 %1469
        %v1474 = vsel %vm1119, %v1464, 0
        %1476 = vmatpush.msra.mxu0 0.0
        %1477 = vmatpush.msra.mxu0 0.0
        %1478 = vmatpush.msra.mxu0 0.0
        %1479 = vmatpush.msra.mxu0 0.0
        %1480 = vmatpush.msra.mxu0 0.0
        %1481 = vmatpush.msra.mxu0 0.0
        %1482 = vmatpush.msra.mxu0 0.0
        %1483 = vmatpush.msra.mxu0 0.0
        %1484 = vmatpush.msra.mxu0 0.0
        %1485 = vmatpush.msra.mxu0 0.0
        %1486 = vmatpush.msra.mxu0 0.0
        %1487 = vmatpush.msra.mxu0 0.0
        %1488 = vmatpush.msra.mxu0 0.0
        %1489 = vmatpush.msra.mxu0 0.0
        %1490 = vmatpush.msra.mxu0 %v1470
        %1491 = vmatpush.msra.mxu0 %v1468
        %1492 = vmatmul.f32.gmra.mxu0 %v1474
        %v1493 = vpop.f32.mrf.mxu0
        %v1494 = vadd.f32 0.0, %v1493
        %1495 = vdwg.mxu0
        %1496 = vrot.lane.b32.xlu0 %v1261, 112
        %v1497 = vpop.permute.xlu0 %1496
        %1498 = vrot.lane.b32.xlu0 %v1308, 112
        %v1499 = vpop.permute.xlu0 %1498
        %1500 = vrot.lane.b32.xlu0 %v1311, 112
        %v1501 = vpop.permute.xlu0 %1500
        %v1502 = vsel %vm847, %v1497, 0
        %v1504 = vsel %vm847, %v1499, 0
        %v1506 = vsel %vm847, %v1501, 0
        %1508 = vmatpush.xpose.msra.mxu0 0.0
        %1509 = vmatpush.xpose.msra.mxu0 0.0
        %1510 = vmatpush.xpose.msra.mxu0 0.0
        %1511 = vmatpush.xpose.msra.mxu0 0.0
        %1512 = vmatpush.xpose.msra.mxu0 0.0
        %1513 = vmatpush.xpose.msra.mxu0 0.0
        %1514 = vmatpush.xpose.msra.mxu0 0.0
        %1515 = vmatpush.xpose.msra.mxu0 0.0
        %1516 = vmatpush.xpose.msra.mxu0 0.0
        %1517 = vmatpush.xpose.msra.mxu0 0.0
        %1518 = vmatpush.xpose.msra.mxu0 0.0
        %1519 = vmatpush.xpose.msra.mxu0 0.0
        %1520 = vmatpush.xpose.msra.mxu0 0.0
        %1521 = vmatpush.xpose.msra.mxu0 0.0
        %1522 = vmatpush.xpose.msra.mxu0 %v1506
        %1523 = vmatpush.xpose.msra.mxu0 %v1504
        %1524 = vmatmul.f32.gmra.mxu0 %v1502
        %v1525 = vpop.f32.mrf.mxu0
        %v1526 = vadd.f32 0.0, %v1525
        %1527 = vdwg.mxu0
        %v1528 = vmul.f32 %v1526, 0.35355338
        %v1529 = vsel %vm1119, %v1528, -inf
        %1530 = vmax.xlane.f32.xlu0 %v1529
        %v1531 = vpop.xlane.xlu0 %1530
        %v1532 = vsub.f32 %v1528, %v1531
        %v1533 = vmul.f32 %v1532, 1.442695
        %v1534 = vpow.pop %v1533
        %v1535 = vsel %vm1119, %v1534, 0.0
        %1536 = vadd.xlane.f32.xlu0 %v1535
        %v1537 = vpop.xlane.xlu0 %1536
        %v1538 = vrcp.pop %v1537
        %v1539 = vmul.f32 %v1534, %v1538
        %1540 = vrot.lane.b32.xlu0 %v1352, 112
        %v1541 = vpop.permute.xlu0 %1540
        %1542 = vrot.lane.b32.xlu0 %v1355, 112
        %v1543 = vpop.permute.xlu0 %1542
        %v1547 = vsel %vm1119, %v1539, 0
        %1549 = vmatpush.msra.mxu0 0.0
        %1550 = vmatpush.msra.mxu0 0.0
        %1551 = vmatpush.msra.mxu0 0.0
        %1552 = vmatpush.msra.mxu0 0.0
        %1553 = vmatpush.msra.mxu0 0.0
        %1554 = vmatpush.msra.mxu0 0.0
        %1555 = vmatpush.msra.mxu0 0.0
        %1556 = vmatpush.msra.mxu0 0.0
        %1557 = vmatpush.msra.mxu0 0.0
        %1558 = vmatpush.msra.mxu0 0.0
        %1559 = vmatpush.msra.mxu0 0.0
        %1560 = vmatpush.msra.mxu0 0.0
        %1561 = vmatpush.msra.mxu0 0.0
        %1562 = vmatpush.msra.mxu0 0.0
        %1563 = vmatpush.msra.mxu0 %v1543
        %1564 = vmatpush.msra.mxu0 %v1541
        %1565 = vmatmul.f32.gmra.mxu0 %v1547
        %v1566 = vpop.f32.mrf.mxu0
        %v1567 = vadd.f32 0.0, %v1566
        %1568 = vdwg.mxu0
        %1569 = vrot.lane.b32.xlu0 %v1261, 104
        %v1570 = vpop.permute.xlu0 %1569
        %1571 = vrot.lane.b32.xlu0 %v1308, 104
        %v1572 = vpop.permute.xlu0 %1571
        %1573 = vrot.lane.b32.xlu0 %v1311, 104
        %v1574 = vpop.permute.xlu0 %1573
        %v1575 = vsel %vm847, %v1570, 0
        %v1577 = vsel %vm847, %v1572, 0
        %v1579 = vsel %vm847, %v1574, 0
        %1581 = vmatpush.xpose.msra.mxu0 0.0
        %1582 = vmatpush.xpose.msra.mxu0 0.0
        %1583 = vmatpush.xpose.msra.mxu0 0.0
        %1584 = vmatpush.xpose.msra.mxu0 0.0
        %1585 = vmatpush.xpose.msra.mxu0 0.0
        %1586 = vmatpush.xpose.msra.mxu0 0.0
        %1587 = vmatpush.xpose.msra.mxu0 0.0
        %1588 = vmatpush.xpose.msra.mxu0 0.0
        %1589 = vmatpush.xpose.msra.mxu0 0.0
        %1590 = vmatpush.xpose.msra.mxu0 0.0
        %1591 = vmatpush.xpose.msra.mxu0 0.0
        %1592 = vmatpush.xpose.msra.mxu0 0.0
        %1593 = vmatpush.xpose.msra.mxu0 0.0
        %1594 = vmatpush.xpose.msra.mxu0 0.0
        %1595 = vmatpush.xpose.msra.mxu0 %v1579
        %1596 = vmatpush.xpose.msra.mxu0 %v1577
        %1597 = vmatmul.f32.gmra.mxu0 %v1575
        %v1598 = vpop.f32.mrf.mxu0
        %v1599 = vadd.f32 0.0, %v1598
        %1600 = vdwg.mxu0
        %v1601 = vmul.f32 %v1599, 0.35355338
        %v1602 = vsel %vm1119, %v1601, -inf
        %1603 = vmax.xlane.f32.xlu0 %v1602
        %v1604 = vpop.xlane.xlu0 %1603
        %v1605 = vsub.f32 %v1601, %v1604
        %v1606 = vmul.f32 %v1605, 1.442695
        %v1607 = vpow.pop %v1606
        %v1608 = vsel %vm1119, %v1607, 0.0
        %1609 = vadd.xlane.f32.xlu0 %v1608
        %v1610 = vpop.xlane.xlu0 %1609
        %v1611 = vrcp.pop %v1610
        %v1612 = vmul.f32 %v1607, %v1611
        %1613 = vrot.lane.b32.xlu0 %v1352, 104
        %v1614 = vpop.permute.xlu0 %1613
        %1615 = vrot.lane.b32.xlu0 %v1355, 104
        %v1616 = vpop.permute.xlu0 %1615
        %v1620 = vsel %vm1119, %v1612, 0
        %1622 = vmatpush.msra.mxu0 0.0
        %1623 = vmatpush.msra.mxu0 0.0
        %1624 = vmatpush.msra.mxu0 0.0
        %1625 = vmatpush.msra.mxu0 0.0
        %1626 = vmatpush.msra.mxu0 0.0
        %1627 = vmatpush.msra.mxu0 0.0
        %1628 = vmatpush.msra.mxu0 0.0
        %1629 = vmatpush.msra.mxu0 0.0
        %1630 = vmatpush.msra.mxu0 0.0
        %1631 = vmatpush.msra.mxu0 0.0
        %1632 = vmatpush.msra.mxu0 0.0
        %1633 = vmatpush.msra.mxu0 0.0
        %1634 = vmatpush.msra.mxu0 0.0
        %1635 = vmatpush.msra.mxu0 0.0
        %1636 = vmatpush.msra.mxu0 %v1616
        %1637 = vmatpush.msra.mxu0 %v1614
        %1638 = vmatmul.f32.gmra.mxu0 %v1620
        %v1639 = vpop.f32.mrf.mxu0
        %v1640 = vadd.f32 0.0, %v1639
        %1641 = vdwg.mxu0
        %1643 = vrot.lane.b32.xlu0 %v1494, 8
        %v1644 = vpop.permute.xlu0 %1643
        %1647 = vrot.lane.b32.xlu0 %v1567, 16
        %v1648 = vpop.permute.xlu0 %1647
        %1651 = vrot.lane.b32.xlu0 %v1640, 24
        %v1652 = vpop.permute.xlu0 %1651
        %v1654 = vsel %vm847, %v1419, %v1644
        %v1655 = vsel %vm1119, %v1654, %v1648
        %v1656 = vsel %vm1121, %v1655, %v1652
        %v1657 = vld [vmem:[%s11] sm:$0xff]
        %v1658 = vld [vmem:[%s11 + $0x8] sm:$0xff]
        %v1659 = vld [vmem:[%s11 + $0x10] sm:$0xff]
        %v1660 = vld [vmem:[%s11 + $0x18] sm:$0xff]
        %v1661 = vld [vmem:[%s12] sm:$0x1]
        %v1663 = vperm.slane %v1661, 0
        %v1666 = vsel %vm736, %v1656, 0
        %1668 = vmatpush.msra.mxu0 0.0
        %1669 = vmatpush.msra.mxu0 0.0
        %1670 = vmatpush.msra.mxu0 0.0
        %1671 = vmatpush.msra.mxu0 0.0
        %1672 = vmatpush.msra.mxu0 0.0
        %1673 = vmatpush.msra.mxu0 0.0
        %1674 = vmatpush.msra.mxu0 0.0
        %1675 = vmatpush.msra.mxu0 0.0
        %1676 = vmatpush.msra.mxu0 0.0
        %1677 = vmatpush.msra.mxu0 0.0
        %1678 = vmatpush.msra.mxu0 0.0
        %1679 = vmatpush.msra.mxu0 0.0
        %1680 = vmatpush.msra.mxu0 %v1660
        %1681 = vmatpush.msra.mxu0 %v1659
        %1682 = vmatpush.msra.mxu0 %v1658
        %1683 = vmatpush.msra.mxu0 %v1657
        %1684 = vmatmul.f32.gmra.mxu0 %v1666
        %v1685 = vpop.f32.mrf.mxu0
        %v1686 = vadd.f32 %v1663, %v1685
        %1687 = vdwg.mxu0
        %v1688 = vadd.f32 %v1154, %v1686
        %v1689 = vsel %vm736, %v1688, 0.0
        %1690 = vadd.xlane.f32.xlu0 %v1689
        %v1691 = vpop.xlane.xlu0 %1690
        %v1692 = vmul.f32 %v1691, %v746
        %v1693 = vsub.f32 %v1688, %v1692
        %v1694 = vmul.f32 %v1693, %v1693
        %v1695 = vsel %vm736, %v1694, 0.0
        %1696 = vadd.xlane.f32.xlu0 %v1695
        %v1697 = vpop.xlane.xlu0 %1696
        %v1698 = vmul.f32 %v1697, %v746
        %v1699 = vadd.f32 %v1698, 1e-05
        %v1700 = vrsqrt.pop %v1699
        %v1701 = vmul.f32 %v1700, %v1699
        %v1702 = vmul.f32 %v1701, %v1700
        %v1703 = vmul.f32 0.5, %v1702
        %v1704 = vsub.f32 1.5, %v1703
        %v1705 = vmul.f32 %v1700, %v1704
        %vm1706 = vweird.f32 %v1699
        %vm1707 = vweird.f32 %v1700
        %vm1708 = vmor %vm1706, %vm1707
        %v1709 = vsel %vm1708, %v1700, %v1705
        %v1710 = vmul.f32 %v1693, %v1709
        %v1711 = vperm.slane %v735, 6
        %v1712 = vmul.f32 %v1710, %v1711
        %v1713 = vperm.slane %v735, 7
        %v1714 = vadd.f32 %v1712, %v1713
        %v1715 = vld [vmem:[%s13] sm:$0xff]
        %v1716 = vld [vmem:[%s13 + $0x8] sm:$0xff]
        %v1717 = vld [vmem:[%s13 + $0x10] sm:$0xff]
        %v1718 = vld [vmem:[%s13 + $0x18] sm:$0xff]
        %v1719 = vld [vmem:[%s14] sm:$0x1]
        %v1721 = vperm.slane %v1719, 0
        %v1724 = vsel %vm736, %v1714, 0
        %1726 = vmatpush.msra.mxu0 0.0
        %1727 = vmatpush.msra.mxu0 0.0
        %1728 = vmatpush.msra.mxu0 0.0
        %1729 = vmatpush.msra.mxu0 0.0
        %1730 = vmatpush.msra.mxu0 0.0
        %1731 = vmatpush.msra.mxu0 0.0
        %1732 = vmatpush.msra.mxu0 0.0
        %1733 = vmatpush.msra.mxu0 0.0
        %1734 = vmatpush.msra.mxu0 0.0
        %1735 = vmatpush.msra.mxu0 0.0
        %1736 = vmatpush.msra.mxu0 0.0
        %1737 = vmatpush.msra.mxu0 0.0
        %1738 = vmatpush.msra.mxu0 %v1718
        %1739 = vmatpush.msra.mxu0 %v1717
        %1740 = vmatpush.msra.mxu0 %v1716
        %1741 = vmatpush.msra.mxu0 %v1715
        %1742 = vmatmul.f32.gmra.mxu0 %v1724
        %v1743 = vpop.f32.mrf.mxu0
        %v1744 = vadd.f32 %v1721, %v1743
        %1745 = vdwg.mxu0
        %v1746 = vmul.f32 %v1744, 0.5
        %v1747 = vmul.f32 %v1744, 0.70710677
        %v1748 = vmul.f32 %v1747, %v1747
        %v1749 = vmin.f32 16.0, %v1748
        %v1750 = vmul.f32 %v1749, 2.1237322e-06
        %v1751 = vadd.f32 %v1750, 0.00028619796
        %v1752 = vmul.f32 %v1749, %v1751
        %v1753 = vadd.f32 %v1752, 0.0036580483
        %v1754 = vmul.f32 %v1749, %v1753
        %v1755 = vadd.f32 %v1754, 0.05243302
        %v1756 = vmul.f32 %v1749, %v1755
        %v1757 = vadd.f32 %v1756, 0.18741608
        %v1758 = vmul.f32 %v1749, %v1757
        %v1759 = vadd.f32 %v1758, 1.1283791
        %v1760 = vmul.f32 %v1747, %v1759
        %v1761 = vmul.f32 %v1749, 3.8918573e-05
        %v1762 = vadd.f32 %v1761, 0.001143296
        %v1763 = vmul.f32 %v1749, %v1762
        %v1764 = vadd.f32 %v1763, 0.014752088
        %v1765 = vmul.f32 %v1749, %v1764
        %v1766 = vadd.f32 %v1765, 0.112945676
        %v1767 = vmul.f32 %v1749, %v1766
        %v1768 = vadd.f32 %v1767, 0.4994258
        %v1769 = vmul.f32 %v1749, %v1768
        %v1770 = vadd.f32 %v1769, 1.0
        %v1771 = vrcp.pop %v1770
        %v1772 = vmul.f32 %v1770, %v1771
        %v1773 = vsub.f32 1.0, %v1772
        %v1774 = vmul.f32 %v1771, %v1773
        %v1775 = vadd.f32 %v1771, %v1774
        %vm1776 = vweird.f32 %v1770
        %vm1777 = vweird.f32 %v1771
        %vm1778 = vmor %vm1776, %vm1777
        %v1779 = vsel %vm1778, %v1771, %v1775
        %v1780 = vand.u32 2147483647, %v1770
        %vm1781 = vcmp.eq.f32.partialorder %v1780, 8.507059e+37
        %v1782 = vand.u32 %v1770, 2147483648
        %v1783 = vor.u32 1.1754944e-38, %v1782
        %v1784 = vsel %vm1781, %v1783, %v1779
        %v1785 = vmul.f32 %v1760, %v1784
        %v1786 = vmin.f32 %v1785, 1.0
        %v1787 = vmax.f32 %v1786, -1.0
        %v1788 = vadd.f32 %v1787, 1.0
        %v1789 = vmul.f32 %v1746, %v1788
        %v1790 = vld [vmem:[%s15] sm:$0xff]
        %v1791 = vld [vmem:[%s15 + $0x8] sm:$0xff]
        %v1792 = vld [vmem:[%s15 + $0x10] sm:$0xff]
        %v1793 = vld [vmem:[%s15 + $0x18] sm:$0xff]
        %v1794 = vld [vmem:[%s15 + $0x20] sm:$0xff]
        %v1795 = vld [vmem:[%s15 + $0x28] sm:$0xff]
        %v1796 = vld [vmem:[%s15 + $0x30] sm:$0xff]
        %v1797 = vld [vmem:[%s15 + $0x38] sm:$0xff]
        %v1798 = vld [vmem:[%s15 + $0x40] sm:$0xff]
        %v1799 = vld [vmem:[%s15 + $0x48] sm:$0xff]
        %v1800 = vld [vmem:[%s15 + $0x50] sm:$0xff]
        %v1801 = vld [vmem:[%s15 + $0x58] sm:$0xff]
        %v1802 = vld [vmem:[%s15 + $0x60] sm:$0xff]
        %v1803 = vld [vmem:[%s15 + $0x68] sm:$0xff]
        %v1804 = vld [vmem:[%s15 + $0x70] sm:$0xff]
        %v1805 = vld [vmem:[%s15 + $0x78] sm:$0xff]
        %v1806 = vld [vmem:[%s16] sm:$0x1]
        %v1808 = vperm.slane %v1806, 0
        %1810 = vmatpush.msra.mxu0 %v1805
        %1811 = vmatpush.msra.mxu0 %v1804
        %1812 = vmatpush.msra.mxu0 %v1803
        %1813 = vmatpush.msra.mxu0 %v1802
        %1814 = vmatpush.msra.mxu0 %v1801
        %1815 = vmatpush.msra.mxu0 %v1800
        %1816 = vmatpush.msra.mxu0 %v1799
        %1817 = vmatpush.msra.mxu0 %v1798
        %1818 = vmatpush.msra.mxu0 %v1797
        %1819 = vmatpush.msra.mxu0 %v1796
        %1820 = vmatpush.msra.mxu0 %v1795
        %1821 = vmatpush.msra.mxu0 %v1794
        %1822 = vmatpush.msra.mxu0 %v1793
        %1823 = vmatpush.msra.mxu0 %v1792
        %1824 = vmatpush.msra.mxu0 %v1791
        %1825 = vmatpush.msra.mxu0 %v1790
        %1826 = vmatmul.f32.gmra.mxu0 %v1789
        %v1827 = vpop.f32.mrf.mxu0
        %v1828 = vadd.f32 %v1808, %v1827
        %1829 = vdwg.mxu0
        %v1830 = vadd.f32 %v1688, %v1828
        %s1831 = scalar_lea.vmem [#allocation10], 8
        %v1832 = vld [vmem:[%s1831] sm:$0xff]
        %v1833 = vsel %vm736, %v1830, 0.0
        %1834 = vadd.xlane.f32.xlu0 %v1833
        %v1835 = vpop.xlane.xlu0 %1834
        %v1836 = vmul.f32 %v1835, %v746
        %v1837 = vsub.f32 %v1830, %v1836
        %v1838 = vmul.f32 %v1837, %v1837
        %v1839 = vsel %vm736, %v1838, 0.0
        %1840 = vadd.xlane.f32.xlu0 %v1839
        %v1841 = vpop.xlane.xlu0 %1840
        %v1842 = vmul.f32 %v1841, %v746
        %v1843 = vadd.f32 %v1842, 1e-05
        %v1844 = vrsqrt.pop %v1843
        %v1845 = vmul.f32 %v1844, %v1843
        %v1846 = vmul.f32 %v1845, %v1844
        %v1847 = vmul.f32 0.5, %v1846
        %v1848 = vsub.f32 1.5, %v1847
        %v1849 = vmul.f32 %v1844, %v1848
        %vm1850 = vweird.f32 %v1843
        %vm1851 = vweird.f32 %v1844
        %vm1852 = vmor %vm1850, %vm1851
        %v1853 = vsel %vm1852, %v1844, %v1849
        %v1854 = vmul.f32 %v1837, %v1853
        %v1855 = vperm.slane %v1832, 0
        %v1856 = vmul.f32 %v1854, %v1855
        %v1857 = vperm.slane %v1832, 1
        %v1858 = vadd.f32 %v1856, %v1857
        %v1859 = vadd.f32 %v1858, %v732
        %s1860 = scalar_lea.vmem %s5, 32
        %v1861 = vld [vmem:[%s1860] sm:$0xff]
        %v1862 = vld [vmem:[%s1860 + $0x8] sm:$0xff]
        %v1863 = vld [vmem:[%s1860 + $0x10] sm:$0xff]
        %v1864 = vld [vmem:[%s1860 + $0x18] sm:$0xff]
        %s1865 = scalar_lea.vmem %s6, 1
        %v1866 = vld [vmem:[%s1865] sm:$0x1]
        %v1868 = vperm.slane %v1866, 0
        %v1871 = vsel %vm736, %v1859, 0
        %1873 = vmatpush.msra.mxu0 0.0
        %1874 = vmatpush.msra.mxu0 0.0
        %1875 = vmatpush.msra.mxu0 0.0
        %1876 = vmatpush.msra.mxu0 0.0
        %1877 = vmatpush.msra.mxu0 0.0
        %1878 = vmatpush.msra.mxu0 0.0
        %1879 = vmatpush.msra.mxu0 0.0
        %1880 = vmatpush.msra.mxu0 0.0
        %1881 = vmatpush.msra.mxu0 0.0
        %1882 = vmatpush.msra.mxu0 0.0
        %1883 = vmatpush.msra.mxu0 0.0
        %1884 = vmatpush.msra.mxu0 0.0
        %1885 = vmatpush.msra.mxu0 %v1864
        %1886 = vmatpush.msra.mxu0 %v1863
        %1887 = vmatpush.msra.mxu0 %v1862
        %1888 = vmatpush.msra.mxu0 %v1861
        %1889 = vmatmul.f32.gmra.mxu0 %v1871
        %v1890 = vpop.f32.mrf.mxu0
        %v1891 = vadd.f32 %v1868, %v1890
        %1892 = vdwg.mxu0
        %1897 = vrot.lane.b32.xlu0 %v1861, 64
        %v1898 = vpop.permute.xlu0 %1897
        %1899 = vrot.lane.b32.xlu0 %v1862, 64
        %v1900 = vpop.permute.xlu0 %1899
        %1901 = vrot.lane.b32.xlu0 %v1863, 64
        %v1902 = vpop.permute.xlu0 %1901
        %1903 = vrot.lane.b32.xlu0 %v1864, 64
        %v1904 = vpop.permute.xlu0 %1903
        %1909 = vrot.lane.b32.xlu0 %v1868, 64
        %v1910 = vpop.permute.xlu0 %1909
        %v1913 = vsel %vm736, %v1858, 0
        %1915 = vmatpush.msra.mxu0 0.0
        %1916 = vmatpush.msra.mxu0 0.0
        %1917 = vmatpush.msra.mxu0 0.0
        %1918 = vmatpush.msra.mxu0 0.0
        %1919 = vmatpush.msra.mxu0 0.0
        %1920 = vmatpush.msra.mxu0 0.0
        %1921 = vmatpush.msra.mxu0 0.0
        %1922 = vmatpush.msra.mxu0 0.0
        %1923 = vmatpush.msra.mxu0 0.0
        %1924 = vmatpush.msra.mxu0 0.0
        %1925 = vmatpush.msra.mxu0 0.0
        %1926 = vmatpush.msra.mxu0 0.0
        %1927 = vmatpush.msra.mxu0 %v1904
        %1928 = vmatpush.msra.mxu0 %v1902
        %1929 = vmatpush.msra.mxu0 %v1900
        %1930 = vmatpush.msra.mxu0 %v1898
        %1931 = vmatmul.f32.gmra.mxu0 %v1913
        %v1932 = vpop.f32.mrf.mxu0
        %v1933 = vadd.f32 %v1910, %v1932
        %1934 = vdwg.mxu0
        %1936 = vrot.lane.b32.xlu0 %v1891, 96
        %v1937 = vpop.permute.xlu0 %1936
        %v1938 = vsel %vm847, %v1891, 0
        %v1940 = vsel %vm847, %v1937, 0
        %1942 = vmatpush.xpose.msra.mxu0 0.0
        %1943 = vmatpush.xpose.msra.mxu0 0.0
        %1944 = vmatpush.xpose.msra.mxu0 0.0
        %1945 = vmatpush.xpose.msra.mxu0 0.0
        %1946 = vmatpush.xpose.msra.mxu0 0.0
        %1947 = vmatpush.xpose.msra.mxu0 0.0
        %1948 = vmatpush.xpose.msra.mxu0 0.0
        %1949 = vmatpush.xpose.msra.mxu0 0.0
        %1950 = vmatpush.xpose.msra.mxu0 0.0
        %1951 = vmatpush.xpose.msra.mxu0 0.0
        %1952 = vmatpush.xpose.msra.mxu0 0.0
        %1953 = vmatpush.xpose.msra.mxu0 0.0
        %1954 = vmatpush.xpose.msra.mxu0 0.0
        %1955 = vmatpush.xpose.msra.mxu0 0.0
        %1956 = vmatpush.xpose.msra.mxu0 0.0
        %1957 = vmatpush.xpose.msra.mxu0 %v1940
        %1958 = vmatmul.f32.gmra.mxu0 %v1938
        %v1959 = vpop.f32.mrf.mxu0
        %v1960 = vadd.f32 0.0, %v1959
        %1961 = vdwg.mxu0
        %v1962 = vmul.f32 %v1960, 0.35355338
        %v1963 = vsel %vm847, %v1962, -inf
        %1964 = vmax.xlane.f32.xlu0 %v1963
        %v1965 = vpop.xlane.xlu0 %1964
        %v1966 = vsub.f32 %v1962, %v1965
        %v1967 = vmul.f32 %v1966, 1.442695
        %v1968 = vpow.pop %v1967
        %v1969 = vsel %vm847, %v1968, 0.0
        %1970 = vadd.xlane.f32.xlu0 %v1969
        %v1971 = vpop.xlane.xlu0 %1970
        %v1972 = vrcp.pop %v1971
        %v1973 = vmul.f32 %v1968, %v1972
        %v1975 = vsel %vm847, %v1973, 0
        %1977 = vmatpush.msra.mxu0 0.0
        %1978 = vmatpush.msra.mxu0 0.0
        %1979 = vmatpush.msra.mxu0 0.0
        %1980 = vmatpush.msra.mxu0 0.0
        %1981 = vmatpush.msra.mxu0 0.0
        %1982 = vmatpush.msra.mxu0 0.0
        %1983 = vmatpush.msra.mxu0 0.0
        %1984 = vmatpush.msra.mxu0 0.0
        %1985 = vmatpush.msra.mxu0 0.0
        %1986 = vmatpush.msra.mxu0 0.0
        %1987 = vmatpush.msra.mxu0 0.0
        %1988 = vmatpush.msra.mxu0 0.0
        %1989 = vmatpush.msra.mxu0 0.0
        %1990 = vmatpush.msra.mxu0 0.0
        %1991 = vmatpush.msra.mxu0 0.0
        %1992 = vmatpush.msra.mxu0 %v1933
        %1993 = vmatmul.f32.gmra.mxu0 %v1975
        %v1994 = vpop.f32.mrf.mxu0
        %v1995 = vadd.f32 0.0, %v1994
        %1996 = vdwg.mxu0
        %1997 = vrot.lane.b32.xlu0 %v1891, 120
        %v1998 = vpop.permute.xlu0 %1997
        %1999 = vrot.lane.b32.xlu0 %v1891, 88
        %v2000 = vpop.permute.xlu0 %1999
        %v2001 = vsel %vm847, %v1998, 0
        %v2003 = vsel %vm847, %v2000, 0
        %2005 = vmatpush.xpose.msra.mxu0 0.0
        %2006 = vmatpush.xpose.msra.mxu0 0.0
        %2007 = vmatpush.xpose.msra.mxu0 0.0
        %2008 = vmatpush.xpose.msra.mxu0 0.0
        %2009 = vmatpush.xpose.msra.mxu0 0.0
        %2010 = vmatpush.xpose.msra.mxu0 0.0
        %2011 = vmatpush.xpose.msra.mxu0 0.0
        %2012 = vmatpush.xpose.msra.mxu0 0.0
        %2013 = vmatpush.xpose.msra.mxu0 0.0
        %2014 = vmatpush.xpose.msra.mxu0 0.0
        %2015 = vmatpush.xpose.msra.mxu0 0.0
        %2016 = vmatpush.xpose.msra.mxu0 0.0
        %2017 = vmatpush.xpose.msra.mxu0 0.0
        %2018 = vmatpush.xpose.msra.mxu0 0.0
        %2019 = vmatpush.xpose.msra.mxu0 0.0
        %2020 = vmatpush.xpose.msra.mxu0 %v2003
        %2021 = vmatmul.f32.gmra.mxu0 %v2001
        %v2022 = vpop.f32.mrf.mxu0
        %v2023 = vadd.f32 0.0, %v2022
        %2024 = vdwg.mxu0
        %v2025 = vmul.f32 %v2023, 0.35355338
        %v2026 = vsel %vm847, %v2025, -inf
        %2027 = vmax.xlane.f32.xlu0 %v2026
        %v2028 = vpop.xlane.xlu0 %2027
        %v2029 = vsub.f32 %v2025, %v2028
        %v2030 = vmul.f32 %v2029, 1.442695
        %v2031 = vpow.pop %v2030
        %v2032 = vsel %vm847, %v2031, 0.0
        %2033 = vadd.xlane.f32.xlu0 %v2032
        %v2034 = vpop.xlane.xlu0 %2033
        %v2035 = vrcp.pop %v2034
        %v2036 = vmul.f32 %v2031, %v2035
        %2038 = vrot.lane.b32.xlu0 %v1933, 120
        %v2039 = vpop.permute.xlu0 %2038
        %v2042 = vsel %vm847, %v2036, 0
        %2044 = vmatpush.msra.mxu0 0.0
        %2045 = vmatpush.msra.mxu0 0.0
        %2046 = vmatpush.msra.mxu0 0.0
        %2047 = vmatpush.msra.mxu0 0.0
        %2048 = vmatpush.msra.mxu0 0.0
        %2049 = vmatpush.msra.mxu0 0.0
        %2050 = vmatpush.msra.mxu0 0.0
        %2051 = vmatpush.msra.mxu0 0.0
        %2052 = vmatpush.msra.mxu0 0.0
        %2053 = vmatpush.msra.mxu0 0.0
        %2054 = vmatpush.msra.mxu0 0.0
        %2055 = vmatpush.msra.mxu0 0.0
        %2056 = vmatpush.msra.mxu0 0.0
        %2057 = vmatpush.msra.mxu0 0.0
        %2058 = vmatpush.msra.mxu0 0.0
        %2059 = vmatpush.msra.mxu0 %v2039
        %2060 = vmatmul.f32.gmra.mxu0 %v2042
        %v2061 = vpop.f32.mrf.mxu0
        %v2062 = vadd.f32 0.0, %v2061
        %2063 = vdwg.mxu0
        %2064 = vrot.lane.b32.xlu0 %v1891, 112
        %v2065 = vpop.permute.xlu0 %2064
        %2066 = vrot.lane.b32.xlu0 %v1891, 80
        %v2067 = vpop.permute.xlu0 %2066
        %v2068 = vsel %vm847, %v2065, 0
        %v2070 = vsel %vm847, %v2067, 0
        %2072 = vmatpush.xpose.msra.mxu0 0.0
        %2073 = vmatpush.xpose.msra.mxu0 0.0
        %2074 = vmatpush.xpose.msra.mxu0 0.0
        %2075 = vmatpush.xpose.msra.mxu0 0.0
        %2076 = vmatpush.xpose.msra.mxu0 0.0
        %2077 = vmatpush.xpose.msra.mxu0 0.0
        %2078 = vmatpush.xpose.msra.mxu0 0.0
        %2079 = vmatpush.xpose.msra.mxu0 0.0
        %2080 = vmatpush.xpose.msra.mxu0 0.0
        %2081 = vmatpush.xpose.msra.mxu0 0.0
        %2082 = vmatpush.xpose.msra.mxu0 0.0
        %2083 = vmatpush.xpose.msra.mxu0 0.0
        %2084 = vmatpush.xpose.msra.mxu0 0.0
        %2085 = vmatpush.xpose.msra.mxu0 0.0
        %2086 = vmatpush.xpose.msra.mxu0 0.0
        %2087 = vmatpush.xpose.msra.mxu0 %v2070
        %2088 = vmatmul.f32.gmra.mxu0 %v2068
        %v2089 = vpop.f32.mrf.mxu0
        %v2090 = vadd.f32 0.0, %v2089
        %2091 = vdwg.mxu0
        %v2092 = vmul.f32 %v2090, 0.35355338
        %v2093 = vsel %vm847, %v2092, -inf
        %2094 = vmax.xlane.f32.xlu0 %v2093
        %v2095 = vpop.xlane.xlu0 %2094
        %v2096 = vsub.f32 %v2092, %v2095
        %v2097 = vmul.f32 %v2096, 1.442695
        %v2098 = vpow.pop %v2097
        %v2099 = vsel %vm847, %v2098, 0.0
        %2100 = vadd.xlane.f32.xlu0 %v2099
        %v2101 = vpop.xlane.xlu0 %2100
        %v2102 = vrcp.pop %v2101
        %v2103 = vmul.f32 %v2098, %v2102
        %2104 = vrot.lane.b32.xlu0 %v1933, 112
        %v2105 = vpop.permute.xlu0 %2104
        %v2108 = vsel %vm847, %v2103, 0
        %2110 = vmatpush.msra.mxu0 0.0
        %2111 = vmatpush.msra.mxu0 0.0
        %2112 = vmatpush.msra.mxu0 0.0
        %2113 = vmatpush.msra.mxu0 0.0
        %2114 = vmatpush.msra.mxu0 0.0
        %2115 = vmatpush.msra.mxu0 0.0
        %2116 = vmatpush.msra.mxu0 0.0
        %2117 = vmatpush.msra.mxu0 0.0
        %2118 = vmatpush.msra.mxu0 0.0
        %2119 = vmatpush.msra.mxu0 0.0
        %2120 = vmatpush.msra.mxu0 0.0
        %2121 = vmatpush.msra.mxu0 0.0
        %2122 = vmatpush.msra.mxu0 0.0
        %2123 = vmatpush.msra.mxu0 0.0
        %2124 = vmatpush.msra.mxu0 0.0
        %2125 = vmatpush.msra.mxu0 %v2105
        %2126 = vmatmul.f32.gmra.mxu0 %v2108
        %v2127 = vpop.f32.mrf.mxu0
        %v2128 = vadd.f32 0.0, %v2127
        %2129 = vdwg.mxu0
        %2130 = vrot.lane.b32.xlu0 %v1891, 104
        %v2131 = vpop.permute.xlu0 %2130
        %2132 = vrot.lane.b32.xlu0 %v1891, 72
        %v2133 = vpop.permute.xlu0 %2132
        %v2134 = vsel %vm847, %v2131, 0
        %v2136 = vsel %vm847, %v2133, 0
        %2138 = vmatpush.xpose.msra.mxu0 0.0
        %2139 = vmatpush.xpose.msra.mxu0 0.0
        %2140 = vmatpush.xpose.msra.mxu0 0.0
        %2141 = vmatpush.xpose.msra.mxu0 0.0
        %2142 = vmatpush.xpose.msra.mxu0 0.0
        %2143 = vmatpush.xpose.msra.mxu0 0.0
        %2144 = vmatpush.xpose.msra.mxu0 0.0
        %2145 = vmatpush.xpose.msra.mxu0 0.0
        %2146 = vmatpush.xpose.msra.mxu0 0.0
        %2147 = vmatpush.xpose.msra.mxu0 0.0
        %2148 = vmatpush.xpose.msra.mxu0 0.0
        %2149 = vmatpush.xpose.msra.mxu0 0.0
        %2150 = vmatpush.xpose.msra.mxu0 0.0
        %2151 = vmatpush.xpose.msra.mxu0 0.0
        %2152 = vmatpush.xpose.msra.mxu0 0.0
        %2153 = vmatpush.xpose.msra.mxu0 %v2136
        %2154 = vmatmul.f32.gmra.mxu0 %v2134
        %v2155 = vpop.f32.mrf.mxu0
        %v2156 = vadd.f32 0.0, %v2155
        %2157 = vdwg.mxu0
        %v2158 = vmul.f32 %v2156, 0.35355338
        %v2159 = vsel %vm847, %v2158, -inf
        %2160 = vmax.xlane.f32.xlu0 %v2159
        %v2161 = vpop.xlane.xlu0 %2160
        %v2162 = vsub.f32 %v2158, %v2161
        %v2163 = vmul.f32 %v2162, 1.442695
        %v2164 = vpow.pop %v2163
        %v2165 = vsel %vm847, %v2164, 0.0
        %2166 = vadd.xlane.f32.xlu0 %v2165
        %v2167 = vpop.xlane.xlu0 %2166
        %v2168 = vrcp.pop %v2167
        %v2169 = vmul.f32 %v2164, %v2168
        %2170 = vrot.lane.b32.xlu0 %v1933, 104
        %v2171 = vpop.permute.xlu0 %2170
        %v2174 = vsel %vm847, %v2169, 0
        %2176 = vmatpush.msra.mxu0 0.0
        %2177 = vmatpush.msra.mxu0 0.0
        %2178 = vmatpush.msra.mxu0 0.0
        %2179 = vmatpush.msra.mxu0 0.0
        %2180 = vmatpush.msra.mxu0 0.0
        %2181 = vmatpush.msra.mxu0 0.0
        %2182 = vmatpush.msra.mxu0 0.0
        %2183 = vmatpush.msra.mxu0 0.0
        %2184 = vmatpush.msra.mxu0 0.0
        %2185 = vmatpush.msra.mxu0 0.0
        %2186 = vmatpush.msra.mxu0 0.0
        %2187 = vmatpush.msra.mxu0 0.0
        %2188 = vmatpush.msra.mxu0 0.0
        %2189 = vmatpush.msra.mxu0 0.0
        %2190 = vmatpush.msra.mxu0 0.0
        %2191 = vmatpush.msra.mxu0 %v2171
        %2192 = vmatmul.f32.gmra.mxu0 %v2174
        %v2193 = vpop.f32.mrf.mxu0
        %v2194 = vadd.f32 0.0, %v2193
        %2195 = vdwg.mxu0
        %2197 = vrot.lane.b32.xlu0 %v2062, 8
        %v2198 = vpop.permute.xlu0 %2197
        %2201 = vrot.lane.b32.xlu0 %v2128, 16
        %v2202 = vpop.permute.xlu0 %2201
        %2205 = vrot.lane.b32.xlu0 %v2194, 24
        %v2206 = vpop.permute.xlu0 %2205
        %v2208 = vsel %vm847, %v1995, %v2198
        %v2209 = vsel %vm1119, %v2208, %v2202
        %v2210 = vsel %vm1121, %v2209, %v2206
        %s2211 = scalar_lea.vmem %s7, 32
        %v2212 = vld [vmem:[%s2211] sm:$0xff]
        %v2213 = vld [vmem:[%s2211 + $0x8] sm:$0xff]
        %v2214 = vld [vmem:[%s2211 + $0x10] sm:$0xff]
        %v2215 = vld [vmem:[%s2211 + $0x18] sm:$0xff]
        %s2216 = scalar_lea.vmem %s8, 1
        %v2217 = vld [vmem:[%s2216] sm:$0x1]
        %v2219 = vperm.slane %v2217, 0
        %v2222 = vsel %vm736, %v2210, 0
        %2224 = vmatpush.msra.mxu0 0.0
        %2225 = vmatpush.msra.mxu0 0.0
        %2226 = vmatpush.msra.mxu0 0.0
        %2227 = vmatpush.msra.mxu0 0.0
        %2228 = vmatpush.msra.mxu0 0.0
        %2229 = vmatpush.msra.mxu0 0.0
        %2230 = vmatpush.msra.mxu0 0.0
        %2231 = vmatpush.msra.mxu0 0.0
        %2232 = vmatpush.msra.mxu0 0.0
        %2233 = vmatpush.msra.mxu0 0.0
        %2234 = vmatpush.msra.mxu0 0.0
        %2235 = vmatpush.msra.mxu0 0.0
        %2236 = vmatpush.msra.mxu0 %v2215
        %2237 = vmatpush.msra.mxu0 %v2214
        %2238 = vmatpush.msra.mxu0 %v2213
        %2239 = vmatpush.msra.mxu0 %v2212
        %2240 = vmatmul.f32.gmra.mxu0 %v2222
        %v2241 = vpop.f32.mrf.mxu0
        %v2242 = vadd.f32 %v2219, %v2241
        %2243 = vdwg.mxu0
        %v2244 = vadd.f32 %v1830, %v2242
        %v2245 = vsel %vm736, %v2244, 0.0
        %2246 = vadd.xlane.f32.xlu0 %v2245
        %v2247 = vpop.xlane.xlu0 %2246
        %v2248 = vmul.f32 %v2247, %v746
        %v2249 = vsub.f32 %v2244, %v2248
        %v2250 = vmul.f32 %v2249, %v2249
        %v2251 = vsel %vm736, %v2250, 0.0
        %2252 = vadd.xlane.f32.xlu0 %v2251
        %v2253 = vpop.xlane.xlu0 %2252
        %v2254 = vmul.f32 %v2253, %v746
        %v2255 = vadd.f32 %v2254, 1e-05
        %v2256 = vrsqrt.pop %v2255
        %v2257 = vmul.f32 %v2256, %v2255
        %v2258 = vmul.f32 %v2257, %v2256
        %v2259 = vmul.f32 0.5, %v2258
        %v2260 = vsub.f32 1.5, %v2259
        %v2261 = vmul.f32 %v2256, %v2260
        %vm2262 = vweird.f32 %v2255
        %vm2263 = vweird.f32 %v2256
        %vm2264 = vmor %vm2262, %vm2263
        %v2265 = vsel %vm2264, %v2256, %v2261
        %v2266 = vmul.f32 %v2249, %v2265
        %v2267 = vperm.slane %v1832, 2
        %v2268 = vmul.f32 %v2266, %v2267
        %v2269 = vperm.slane %v1832, 3
        %v2270 = vadd.f32 %v2268, %v2269
        %v2271 = vperm.slane %v1832, 4
        %v2272 = vmul.f32 %v1223, %v2271
        %v2273 = vmul.f32 %v1224, %v2271
        %v2274 = vperm.slane %v1832, 5
        %v2275 = vadd.f32 %v2272, %v2274
        %v2276 = vadd.f32 %v2273, %v2274
        %s2277 = scalar_lea.vmem %s9, 32
        %v2278 = vld [vmem:[%s2277] sm:$0xff]
        %v2279 = vld [vmem:[%s2277 + $0x8] sm:$0xff]
        %v2280 = vld [vmem:[%s2277 + $0x10] sm:$0xff]
        %v2281 = vld [vmem:[%s2277 + $0x18] sm:$0xff]
        %s2282 = scalar_lea.vmem %s10, 1
        %v2283 = vld [vmem:[%s2282] sm:$0x1]
        %v2284 = vadd.f32 %v2270, %v732
        %v2286 = vperm.slane %v2283, 0
        %v2289 = vsel %vm736, %v2284, 0
        %2291 = vmatpush.msra.mxu0 0.0
        %2292 = vmatpush.msra.mxu0 0.0
        %2293 = vmatpush.msra.mxu0 0.0
        %2294 = vmatpush.msra.mxu0 0.0
        %2295 = vmatpush.msra.mxu0 0.0
        %2296 = vmatpush.msra.mxu0 0.0
        %2297 = vmatpush.msra.mxu0 0.0
        %2298 = vmatpush.msra.mxu0 0.0
        %2299 = vmatpush.msra.mxu0 0.0
        %2300 = vmatpush.msra.mxu0 0.0
        %2301 = vmatpush.msra.mxu0 0.0
        %2302 = vmatpush.msra.mxu0 0.0
        %2303 = vmatpush.msra.mxu0 %v2281
        %2304 = vmatpush.msra.mxu0 %v2280
        %2305 = vmatpush.msra.mxu0 %v2279
        %2306 = vmatpush.msra.mxu0 %v2278
        %2307 = vmatmul.f32.gmra.mxu0 %v2289
        %v2308 = vpop.f32.mrf.mxu0
        %v2309 = vadd.f32 %v2286, %v2308
        %2310 = vdwg.mxu0
        %v2311 = vadd.f32 %v2275, %v733
        %v2312 = vadd.f32 %v2276, %v734
        %2317 = vrot.lane.b32.xlu0 %v2278, 96
        %v2318 = vpop.permute.xlu0 %2317
        %2319 = vrot.lane.b32.xlu0 %v2279, 96
        %v2320 = vpop.permute.xlu0 %2319
        %2321 = vrot.lane.b32.xlu0 %v2280, 96
        %v2322 = vpop.permute.xlu0 %2321
        %2323 = vrot.lane.b32.xlu0 %v2281, 96
        %v2324 = vpop.permute.xlu0 %2323
        %2329 = vrot.lane.b32.xlu0 %v2286, 96
        %v2330 = vpop.permute.xlu0 %2329
        %v2333 = vsel %vm736, %v2311, 0
        %v2336 = vsel %vm736, %v2312, 0
        %2338 = vmatpush.msra.mxu0 0.0
        %2339 = vmatpush.msra.mxu0 0.0
        %2340 = vmatpush.msra.mxu0 0.0
        %2341 = vmatpush.msra.mxu0 0.0
        %2342 = vmatpush.msra.mxu0 0.0
        %2343 = vmatpush.msra.mxu0 0.0
        %2344 = vmatpush.msra.mxu0 0.0
        %2345 = vmatpush.msra.mxu0 0.0
        %2346 = vmatpush.msra.mxu0 0.0
        %2347 = vmatpush.msra.mxu0 0.0
        %2348 = vmatpush.msra.mxu0 0.0
        %2349 = vmatpush.msra.mxu0 0.0
        %2350 = vmatpush.msra.mxu0 %v2324
        %2351 = vmatpush.msra.mxu0 %v2322
        %2352 = vmatpush.msra.mxu0 %v2320
        %2353 = vmatpush.msra.mxu0 %v2318
        %2354 = vmatmul.f32.gmra.mxu0 %v2333
        %v2355 = vpop.f32.mrf.mxu0
        %v2356 = vadd.f32 %v2330, %v2355
        %2357 = vmatmul.f32.gmra.mxu0 %v2336
        %v2358 = vpop.f32.mrf.mxu0
        %v2359 = vadd.f32 %v2330, %v2358
        %2360 = vdwg.mxu0
        %2361 = vrot.lane.b32.xlu0 %v2278, 64
        %v2362 = vpop.permute.xlu0 %2361
        %2363 = vrot.lane.b32.xlu0 %v2279, 64
        %v2364 = vpop.permute.xlu0 %2363
        %2365 = vrot.lane.b32.xlu0 %v2280, 64
        %v2366 = vpop.permute.xlu0 %2365
        %2367 = vrot.lane.b32.xlu0 %v2281, 64
        %v2368 = vpop.permute.xlu0 %2367
        %2373 = vrot.lane.b32.xlu0 %v2286, 64
        %v2374 = vpop.permute.xlu0 %2373
        %v2377 = vsel %vm736, %v2275, 0
        %v2380 = vsel %vm736, %v2276, 0
        %2382 = vmatpush.msra.mxu0 0.0
        %2383 = vmatpush.msra.mxu0 0.0
        %2384 = vmatpush.msra.mxu0 0.0
        %2385 = vmatpush.msra.mxu0 0.0
        %2386 = vmatpush.msra.mxu0 0.0
        %2387 = vmatpush.msra.mxu0 0.0
        %2388 = vmatpush.msra.mxu0 0.0
        %2389 = vmatpush.msra.mxu0 0.0
        %2390 = vmatpush.msra.mxu0 0.0
        %2391 = vmatpush.msra.mxu0 0.0
        %2392 = vmatpush.msra.mxu0 0.0
        %2393 = vmatpush.msra.mxu0 0.0
        %2394 = vmatpush.msra.mxu0 %v2368
        %2395 = vmatpush.msra.mxu0 %v2366
        %2396 = vmatpush.msra.mxu0 %v2364
        %2397 = vmatpush.msra.mxu0 %v2362
        %2398 = vmatmul.f32.gmra.mxu0 %v2377
        %v2399 = vpop.f32.mrf.mxu0
        %v2400 = vadd.f32 %v2374, %v2399
        %2401 = vmatmul.f32.gmra.mxu0 %v2380
        %v2402 = vpop.f32.mrf.mxu0
        %v2403 = vadd.f32 %v2374, %v2402
        %2404 = vdwg.mxu0
        %v2406 = vsel %vm847, %v2309, 0
        %v2409 = vsel %vm847, %v2356, 0
        %v2412 = vsel %vm847, %v2359, 0
        %2414 = vmatpush.xpose.msra.mxu0 0.0
        %2415 = vmatpush.xpose.msra.mxu0 0.0
        %2416 = vmatpush.xpose.msra.mxu0 0.0
        %2417 = vmatpush.xpose.msra.mxu0 0.0
        %2418 = vmatpush.xpose.msra.mxu0 0.0
        %2419 = vmatpush.xpose.msra.mxu0 0.0
        %2420 = vmatpush.xpose.msra.mxu0 0.0
        %2421 = vmatpush.xpose.msra.mxu0 0.0
        %2422 = vmatpush.xpose.msra.mxu0 0.0
        %2423 = vmatpush.xpose.msra.mxu0 0.0
        %2424 = vmatpush.xpose.msra.mxu0 0.0
        %2425 = vmatpush.xpose.msra.mxu0 0.0
        %2426 = vmatpush.xpose.msra.mxu0 0.0
        %2427 = vmatpush.xpose.msra.mxu0 0.0
        %2428 = vmatpush.xpose.msra.mxu0 %v2412
        %2429 = vmatpush.xpose.msra.mxu0 %v2409
        %2430 = vmatmul.f32.gmra.mxu0 %v2406
        %v2431 = vpop.f32.mrf.mxu0
        %v2432 = vadd.f32 0.0, %v2431
        %2433 = vdwg.mxu0
        %v2434 = vmul.f32 %v2432, 0.35355338
        %v2435 = vsel %vm1119, %v2434, -inf
        %2436 = vmax.xlane.f32.xlu0 %v2435
        %v2437 = vpop.xlane.xlu0 %2436
        %v2438 = vsub.f32 %v2434, %v2437
        %v2439 = vmul.f32 %v2438, 1.442695
        %v2440 = vpow.pop %v2439
        %v2441 = vsel %vm1119, %v2440, 0.0
        %2442 = vadd.xlane.f32.xlu0 %v2441
        %v2443 = vpop.xlane.xlu0 %2442
        %v2444 = vrcp.pop %v2443
        %v2445 = vmul.f32 %v2440, %v2444
        %v2447 = vsel %vm1119, %v2445, 0
        %2449 = vmatpush.msra.mxu0 0.0
        %2450 = vmatpush.msra.mxu0 0.0
        %2451 = vmatpush.msra.mxu0 0.0
        %2452 = vmatpush.msra.mxu0 0.0
        %2453 = vmatpush.msra.mxu0 0.0
        %2454 = vmatpush.msra.mxu0 0.0
        %2455 = vmatpush.msra.mxu0 0.0
        %2456 = vmatpush.msra.mxu0 0.0
        %2457 = vmatpush.msra.mxu0 0.0
        %2458 = vmatpush.msra.mxu0 0.0
        %2459 = vmatpush.msra.mxu0 0.0
        %2460 = vmatpush.msra.mxu0 0.0
        %2461 = vmatpush.msra.mxu0 0.0
        %2462 = vmatpush.msra.mxu0 0.0
        %2463 = vmatpush.msra.mxu0 %v2403
        %2464 = vmatpush.msra.mxu0 %v2400
        %2465 = vmatmul.f32.gmra.mxu0 %v2447
        %v2466 = vpop.f32.mrf.mxu0
        %v2467 = vadd.f32 0.0, %v2466
        %2468 = vdwg.mxu0
        %2469 = vrot.lane.b32.xlu0 %v2309, 120
        %v2470 = vpop.permute.xlu0 %2469
        %2471 = vrot.lane.b32.xlu0 %v2356, 120
        %v2472 = vpop.permute.xlu0 %2471
        %2473 = vrot.lane.b32.xlu0 %v2359, 120
        %v2474 = vpop.permute.xlu0 %2473
        %v2475 = vsel %vm847, %v2470, 0
        %v2477 = vsel %vm847, %v2472, 0
        %v2479 = vsel %vm847, %v2474, 0
        %2481 = vmatpush.xpose.msra.mxu0 0.0
        %2482 = vmatpush.xpose.msra.mxu0 0.0
        %2483 = vmatpush.xpose.msra.mxu0 0.0
        %2484 = vmatpush.xpose.msra.mxu0 0.0
        %2485 = vmatpush.xpose.msra.mxu0 0.0
        %2486 = vmatpush.xpose.msra.mxu0 0.0
        %2487 = vmatpush.xpose.msra.mxu0 0.0
        %2488 = vmatpush.xpose.msra.mxu0 0.0
        %2489 = vmatpush.xpose.msra.mxu0 0.0
        %2490 = vmatpush.xpose.msra.mxu0 0.0
        %2491 = vmatpush.xpose.msra.mxu0 0.0
        %2492 = vmatpush.xpose.msra.mxu0 0.0
        %2493 = vmatpush.xpose.msra.mxu0 0.0
        %2494 = vmatpush.xpose.msra.mxu0 0.0
        %2495 = vmatpush.xpose.msra.mxu0 %v2479
        %2496 = vmatpush.xpose.msra.mxu0 %v2477
        %2497 = vmatmul.f32.gmra.mxu0 %v2475
        %v2498 = vpop.f32.mrf.mxu0
        %v2499 = vadd.f32 0.0, %v2498
        %2500 = vdwg.mxu0
        %v2501 = vmul.f32 %v2499, 0.35355338
        %v2502 = vsel %vm1119, %v2501, -inf
        %2503 = vmax.xlane.f32.xlu0 %v2502
        %v2504 = vpop.xlane.xlu0 %2503
        %v2505 = vsub.f32 %v2501, %v2504
        %v2506 = vmul.f32 %v2505, 1.442695
        %v2507 = vpow.pop %v2506
        %v2508 = vsel %vm1119, %v2507, 0.0
        %2509 = vadd.xlane.f32.xlu0 %v2508
        %v2510 = vpop.xlane.xlu0 %2509
        %v2511 = vrcp.pop %v2510
        %v2512 = vmul.f32 %v2507, %v2511
        %2515 = vrot.lane.b32.xlu0 %v2400, 120
        %v2516 = vpop.permute.xlu0 %2515
        %2517 = vrot.lane.b32.xlu0 %v2403, 120
        %v2518 = vpop.permute.xlu0 %2517
        %v2522 = vsel %vm1119, %v2512, 0
        %2524 = vmatpush.msra.mxu0 0.0
        %2525 = vmatpush.msra.mxu0 0.0
        %2526 = vmatpush.msra.mxu0 0.0
        %2527 = vmatpush.msra.mxu0 0.0
        %2528 = vmatpush.msra.mxu0 0.0
        %2529 = vmatpush.msra.mxu0 0.0
        %2530 = vmatpush.msra.mxu0 0.0
        %2531 = vmatpush.msra.mxu0 0.0
        %2532 = vmatpush.msra.mxu0 0.0
        %2533 = vmatpush.msra.mxu0 0.0
        %2534 = vmatpush.msra.mxu0 0.0
        %2535 = vmatpush.msra.mxu0 0.0
        %2536 = vmatpush.msra.mxu0 0.0
        %2537 = vmatpush.msra.mxu0 0.0
        %2538 = vmatpush.msra.mxu0 %v2518
        %2539 = vmatpush.msra.mxu0 %v2516
        %2540 = vmatmul.f32.gmra.mxu0 %v2522
        %v2541 = vpop.f32.mrf.mxu0
        %v2542 = vadd.f32 0.0, %v2541
        %2543 = vdwg.mxu0
        %2544 = vrot.lane.b32.xlu0 %v2309, 112
        %v2545 = vpop.permute.xlu0 %2544
        %2546 = vrot.lane.b32.xlu0 %v2356, 112
        %v2547 = vpop.permute.xlu0 %2546
        %2548 = vrot.lane.b32.xlu0 %v2359, 112
        %v2549 = vpop.permute.xlu0 %2548
        %v2550 = vsel %vm847, %v2545, 0
        %v2552 = vsel %vm847, %v2547, 0
        %v2554 = vsel %vm847, %v2549, 0
        %2556 = vmatpush.xpose.msra.mxu0 0.0
        %2557 = vmatpush.xpose.msra.mxu0 0.0
        %2558 = vmatpush.xpose.msra.mxu0 0.0
        %2559 = vmatpush.xpose.msra.mxu0 0.0
        %2560 = vmatpush.xpose.msra.mxu0 0.0
        %2561 = vmatpush.xpose.msra.mxu0 0.0
        %2562 = vmatpush.xpose.msra.mxu0 0.0
        %2563 = vmatpush.xpose.msra.mxu0 0.0
        %2564 = vmatpush.xpose.msra.mxu0 0.0
        %2565 = vmatpush.xpose.msra.mxu0 0.0
        %2566 = vmatpush.xpose.msra.mxu0 0.0
        %2567 = vmatpush.xpose.msra.mxu0 0.0
        %2568 = vmatpush.xpose.msra.mxu0 0.0
        %2569 = vmatpush.xpose.msra.mxu0 0.0
        %2570 = vmatpush.xpose.msra.mxu0 %v2554
        %2571 = vmatpush.xpose.msra.mxu0 %v2552
        %2572 = vmatmul.f32.gmra.mxu0 %v2550
        %v2573 = vpop.f32.mrf.mxu0
        %v2574 = vadd.f32 0.0, %v2573
        %2575 = vdwg.mxu0
        %v2576 = vmul.f32 %v2574, 0.35355338
        %v2577 = vsel %vm1119, %v2576, -inf
        %2578 = vmax.xlane.f32.xlu0 %v2577
        %v2579 = vpop.xlane.xlu0 %2578
        %v2580 = vsub.f32 %v2576, %v2579
        %v2581 = vmul.f32 %v2580, 1.442695
        %v2582 = vpow.pop %v2581
        %v2583 = vsel %vm1119, %v2582, 0.0
        %2584 = vadd.xlane.f32.xlu0 %v2583
        %v2585 = vpop.xlane.xlu0 %2584
        %v2586 = vrcp.pop %v2585
        %v2587 = vmul.f32 %v2582, %v2586
        %2588 = vrot.lane.b32.xlu0 %v2400, 112
        %v2589 = vpop.permute.xlu0 %2588
        %2590 = vrot.lane.b32.xlu0 %v2403, 112
        %v2591 = vpop.permute.xlu0 %2590
        %v2595 = vsel %vm1119, %v2587, 0
        %2597 = vmatpush.msra.mxu0 0.0
        %2598 = vmatpush.msra.mxu0 0.0
        %2599 = vmatpush.msra.mxu0 0.0
        %2600 = vmatpush.msra.mxu0 0.0
        %2601 = vmatpush.msra.mxu0 0.0
        %2602 = vmatpush.msra.mxu0 0.0
        %2603 = vmatpush.msra.mxu0 0.0
        %2604 = vmatpush.msra.mxu0 0.0
        %2605 = vmatpush.msra.mxu0 0.0
        %2606 = vmatpush.msra.mxu0 0.0
        %2607 = vmatpush.msra.mxu0 0.0
        %2608 = vmatpush.msra.mxu0 0.0
        %2609 = vmatpush.msra.mxu0 0.0
        %2610 = vmatpush.msra.mxu0 0.0
        %2611 = vmatpush.msra.mxu0 %v2591
        %2612 = vmatpush.msra.mxu0 %v2589
        %2613 = vmatmul.f32.gmra.mxu0 %v2595
        %v2614 = vpop.f32.mrf.mxu0
        %v2615 = vadd.f32 0.0, %v2614
        %2616 = vdwg.mxu0
        %2617 = vrot.lane.b32.xlu0 %v2309, 104
        %v2618 = vpop.permute.xlu0 %2617
        %2619 = vrot.lane.b32.xlu0 %v2356, 104
        %v2620 = vpop.permute.xlu0 %2619
        %2621 = vrot.lane.b32.xlu0 %v2359, 104
        %v2622 = vpop.permute.xlu0 %2621
        %v2623 = vsel %vm847, %v2618, 0
        %v2625 = vsel %vm847, %v2620, 0
        %v2627 = vsel %vm847, %v2622, 0
        %2629 = vmatpush.xpose.msra.mxu0 0.0
        %2630 = vmatpush.xpose.msra.mxu0 0.0
        %2631 = vmatpush.xpose.msra.mxu0 0.0
        %2632 = vmatpush.xpose.msra.mxu0 0.0
        %2633 = vmatpush.xpose.msra.mxu0 0.0
        %2634 = vmatpush.xpose.msra.mxu0 0.0
        %2635 = vmatpush.xpose.msra.mxu0 0.0
        %2636 = vmatpush.xpose.msra.mxu0 0.0
        %2637 = vmatpush.xpose.msra.mxu0 0.0
        %2638 = vmatpush.xpose.msra.mxu0 0.0
        %2639 = vmatpush.xpose.msra.mxu0 0.0
        %2640 = vmatpush.xpose.msra.mxu0 0.0
        %2641 = vmatpush.xpose.msra.mxu0 0.0
        %2642 = vmatpush.xpose.msra.mxu0 0.0
        %2643 = vmatpush.xpose.msra.mxu0 %v2627
        %2644 = vmatpush.xpose.msra.mxu0 %v2625
        %2645 = vmatmul.f32.gmra.mxu0 %v2623
        %v2646 = vpop.f32.mrf.mxu0
        %v2647 = vadd.f32 0.0, %v2646
        %2648 = vdwg.mxu0
        %v2649 = vmul.f32 %v2647, 0.35355338
        %v2650 = vsel %vm1119, %v2649, -inf
        %2651 = vmax.xlane.f32.xlu0 %v2650
        %v2652 = vpop.xlane.xlu0 %2651
        %v2653 = vsub.f32 %v2649, %v2652
        %v2654 = vmul.f32 %v2653, 1.442695
        %v2655 = vpow.pop %v2654
        %v2656 = vsel %vm1119, %v2655, 0.0
        %2657 = vadd.xlane.f32.xlu0 %v2656
        %v2658 = vpop.xlane.xlu0 %2657
        %v2659 = vrcp.pop %v2658
        %v2660 = vmul.f32 %v2655, %v2659
        %2661 = vrot.lane.b32.xlu0 %v2400, 104
        %v2662 = vpop.permute.xlu0 %2661
        %2663 = vrot.lane.b32.xlu0 %v2403, 104
        %v2664 = vpop.permute.xlu0 %2663
        %v2668 = vsel %vm1119, %v2660, 0
        %2670 = vmatpush.msra.mxu0 0.0
        %2671 = vmatpush.msra.mxu0 0.0
        %2672 = vmatpush.msra.mxu0 0.0
        %2673 = vmatpush.msra.mxu0 0.0
        %2674 = vmatpush.msra.mxu0 0.0
        %2675 = vmatpush.msra.mxu0 0.0
        %2676 = vmatpush.msra.mxu0 0.0
        %2677 = vmatpush.msra.mxu0 0.0
        %2678 = vmatpush.msra.mxu0 0.0
        %2679 = vmatpush.msra.mxu0 0.0
        %2680 = vmatpush.msra.mxu0 0.0
        %2681 = vmatpush.msra.mxu0 0.0
        %2682 = vmatpush.msra.mxu0 0.0
        %2683 = vmatpush.msra.mxu0 0.0
        %2684 = vmatpush.msra.mxu0 %v2664
        %2685 = vmatpush.msra.mxu0 %v2662
        %2686 = vmatmul.f32.gmra.mxu0 %v2668
        %v2687 = vpop.f32.mrf.mxu0
        %v2688 = vadd.f32 0.0, %v2687
        %2689 = vdwg.mxu0
        %2691 = vrot.lane.b32.xlu0 %v2542, 8
        %v2692 = vpop.permute.xlu0 %2691
        %2695 = vrot.lane.b32.xlu0 %v2615, 16
        %v2696 = vpop.permute.xlu0 %2695
        %2699 = vrot.lane.b32.xlu0 %v2688, 24
        %v2700 = vpop.permute.xlu0 %2699
        %v2702 = vsel %vm847, %v2467, %v2692
        %v2703 = vsel %vm1119, %v2702, %v2696
        %v2704 = vsel %vm1121, %v2703, %v2700
        %s2705 = scalar_lea.vmem %s11, 32
        %v2706 = vld [vmem:[%s2705] sm:$0xff]
        %v2707 = vld [vmem:[%s2705 + $0x8] sm:$0xff]
        %v2708 = vld [vmem:[%s2705 + $0x10] sm:$0xff]
        %v2709 = vld [vmem:[%s2705 + $0x18] sm:$0xff]
        %s2710 = scalar_lea.vmem %s12, 1
        %v2711 = vld [vmem:[%s2710] sm:$0x1]
        %v2713 = vperm.slane %v2711, 0
        %v2716 = vsel %vm736, %v2704, 0
        %2718 = vmatpush.msra.mxu0 0.0
        %2719 = vmatpush.msra.mxu0 0.0
        %2720 = vmatpush.msra.mxu0 0.0
        %2721 = vmatpush.msra.mxu0 0.0
        %2722 = vmatpush.msra.mxu0 0.0
        %2723 = vmatpush.msra.mxu0 0.0
        %2724 = vmatpush.msra.mxu0 0.0
        %2725 = vmatpush.msra.mxu0 0.0
        %2726 = vmatpush.msra.mxu0 0.0
        %2727 = vmatpush.msra.mxu0 0.0
        %2728 = vmatpush.msra.mxu0 0.0
        %2729 = vmatpush.msra.mxu0 0.0
        %2730 = vmatpush.msra.mxu0 %v2709
        %2731 = vmatpush.msra.mxu0 %v2708
        %2732 = vmatpush.msra.mxu0 %v2707
        %2733 = vmatpush.msra.mxu0 %v2706
        %2734 = vmatmul.f32.gmra.mxu0 %v2716
        %v2735 = vpop.f32.mrf.mxu0
        %v2736 = vadd.f32 %v2713, %v2735
        %2737 = vdwg.mxu0
        %v2738 = vadd.f32 %v2244, %v2736
        %v2739 = vsel %vm736, %v2738, 0.0
        %2740 = vadd.xlane.f32.xlu0 %v2739
        %v2741 = vpop.xlane.xlu0 %2740
        %v2742 = vmul.f32 %v2741, %v746
        %v2743 = vsub.f32 %v2738, %v2742
        %v2744 = vmul.f32 %v2743, %v2743
        %v2745 = vsel %vm736, %v2744, 0.0
        %2746 = vadd.xlane.f32.xlu0 %v2745
        %v2747 = vpop.xlane.xlu0 %2746
        %v2748 = vmul.f32 %v2747, %v746
        %v2749 = vadd.f32 %v2748, 1e-05
        %v2750 = vrsqrt.pop %v2749
        %v2751 = vmul.f32 %v2750, %v2749
        %v2752 = vmul.f32 %v2751, %v2750
        %v2753 = vmul.f32 0.5, %v2752
        %v2754 = vsub.f32 1.5, %v2753
        %v2755 = vmul.f32 %v2750, %v2754
        %vm2756 = vweird.f32 %v2749
        %vm2757 = vweird.f32 %v2750
        %vm2758 = vmor %vm2756, %vm2757
        %v2759 = vsel %vm2758, %v2750, %v2755
        %v2760 = vmul.f32 %v2743, %v2759
        %v2761 = vperm.slane %v1832, 6
        %v2762 = vmul.f32 %v2760, %v2761
        %v2763 = vperm.slane %v1832, 7
        %v2764 = vadd.f32 %v2762, %v2763
        %s2765 = scalar_lea.vmem %s13, 32
        %v2766 = vld [vmem:[%s2765] sm:$0xff]
        %v2767 = vld [vmem:[%s2765 + $0x8] sm:$0xff]
        %v2768 = vld [vmem:[%s2765 + $0x10] sm:$0xff]
        %v2769 = vld [vmem:[%s2765 + $0x18] sm:$0xff]
        %s2770 = scalar_lea.vmem %s14, 1
        %v2771 = vld [vmem:[%s2770] sm:$0x1]
        %v2773 = vperm.slane %v2771, 0
        %v2776 = vsel %vm736, %v2764, 0
        %2778 = vmatpush.msra.mxu0 0.0
        %2779 = vmatpush.msra.mxu0 0.0
        %2780 = vmatpush.msra.mxu0 0.0
        %2781 = vmatpush.msra.mxu0 0.0
        %2782 = vmatpush.msra.mxu0 0.0
        %2783 = vmatpush.msra.mxu0 0.0
        %2784 = vmatpush.msra.mxu0 0.0
        %2785 = vmatpush.msra.mxu0 0.0
        %2786 = vmatpush.msra.mxu0 0.0
        %2787 = vmatpush.msra.mxu0 0.0
        %2788 = vmatpush.msra.mxu0 0.0
        %2789 = vmatpush.msra.mxu0 0.0
        %2790 = vmatpush.msra.mxu0 %v2769
        %2791 = vmatpush.msra.mxu0 %v2768
        %2792 = vmatpush.msra.mxu0 %v2767
        %2793 = vmatpush.msra.mxu0 %v2766
        %2794 = vmatmul.f32.gmra.mxu0 %v2776
        %v2795 = vpop.f32.mrf.mxu0
        %v2796 = vadd.f32 %v2773, %v2795
        %2797 = vdwg.mxu0
        %v2798 = vmul.f32 %v2796, 0.5
        %v2799 = vmul.f32 %v2796, 0.70710677
        %v2800 = vmul.f32 %v2799, %v2799
        %v2801 = vmin.f32 16.0, %v2800
        %v2802 = vmul.f32 %v2801, 2.1237322e-06
        %v2803 = vadd.f32 %v2802, 0.00028619796
        %v2804 = vmul.f32 %v2801, %v2803
        %v2805 = vadd.f32 %v2804, 0.0036580483
        %v2806 = vmul.f32 %v2801, %v2805
        %v2807 = vadd.f32 %v2806, 0.05243302
        %v2808 = vmul.f32 %v2801, %v2807
        %v2809 = vadd.f32 %v2808, 0.18741608
        %v2810 = vmul.f32 %v2801, %v2809
        %v2811 = vadd.f32 %v2810, 1.1283791
        %v2812 = vmul.f32 %v2799, %v2811
        %v2813 = vmul.f32 %v2801, 3.8918573e-05
        %v2814 = vadd.f32 %v2813, 0.001143296
        %v2815 = vmul.f32 %v2801, %v2814
        %v2816 = vadd.f32 %v2815, 0.014752088
        %v2817 = vmul.f32 %v2801, %v2816
        %v2818 = vadd.f32 %v2817, 0.112945676
        %v2819 = vmul.f32 %v2801, %v2818
        %v2820 = vadd.f32 %v2819, 0.4994258
        %v2821 = vmul.f32 %v2801, %v2820
        %v2822 = vadd.f32 %v2821, 1.0
        %v2823 = vrcp.pop %v2822
        %v2824 = vmul.f32 %v2822, %v2823
        %v2825 = vsub.f32 1.0, %v2824
        %v2826 = vmul.f32 %v2823, %v2825
        %v2827 = vadd.f32 %v2823, %v2826
        %vm2828 = vweird.f32 %v2822
        %vm2829 = vweird.f32 %v2823
        %vm2830 = vmor %vm2828, %vm2829
        %v2831 = vsel %vm2830, %v2823, %v2827
        %v2832 = vand.u32 2147483647, %v2822
        %vm2833 = vcmp.eq.f32.partialorder %v2832, 8.507059e+37
        %v2834 = vand.u32 %v2822, 2147483648
        %v2835 = vor.u32 1.1754944e-38, %v2834
        %v2836 = vsel %vm2833, %v2835, %v2831
        %v2837 = vmul.f32 %v2812, %v2836
        %v2838 = vmin.f32 %v2837, 1.0
        %v2839 = vmax.f32 %v2838, -1.0
        %v2840 = vadd.f32 %v2839, 1.0
        %v2841 = vmul.f32 %v2798, %v2840
        %s2842 = scalar_lea.vmem %s15, 128
        %v2843 = vld [vmem:[%s2842] sm:$0xff]
        %v2844 = vld [vmem:[%s2842 + $0x8] sm:$0xff]
        %v2845 = vld [vmem:[%s2842 + $0x10] sm:$0xff]
        %v2846 = vld [vmem:[%s2842 + $0x18] sm:$0xff]
        %v2847 = vld [vmem:[%s2842 + $0x20] sm:$0xff]
        %v2848 = vld [vmem:[%s2842 + $0x28] sm:$0xff]
        %v2849 = vld [vmem:[%s2842 + $0x30] sm:$0xff]
        %v2850 = vld [vmem:[%s2842 + $0x38] sm:$0xff]
        %v2851 = vld [vmem:[%s2842 + $0x40] sm:$0xff]
        %v2852 = vld [vmem:[%s2842 + $0x48] sm:$0xff]
        %v2853 = vld [vmem:[%s2842 + $0x50] sm:$0xff]
        %v2854 = vld [vmem:[%s2842 + $0x58] sm:$0xff]
        %v2855 = vld [vmem:[%s2842 + $0x60] sm:$0xff]
        %v2856 = vld [vmem:[%s2842 + $0x68] sm:$0xff]
        %v2857 = vld [vmem:[%s2842 + $0x70] sm:$0xff]
        %v2858 = vld [vmem:[%s2842 + $0x78] sm:$0xff]
        %s2859 = scalar_lea.vmem %s16, 1
        %v2860 = vld [vmem:[%s2859] sm:$0x1]
        %v2862 = vperm.slane %v2860, 0
        %2864 = vmatpush.msra.mxu0 %v2858
        %2865 = vmatpush.msra.mxu0 %v2857
        %2866 = vmatpush.msra.mxu0 %v2856
        %2867 = vmatpush.msra.mxu0 %v2855
        %2868 = vmatpush.msra.mxu0 %v2854
        %2869 = vmatpush.msra.mxu0 %v2853
        %2870 = vmatpush.msra.mxu0 %v2852
        %2871 = vmatpush.msra.mxu0 %v2851
        %2872 = vmatpush.msra.mxu0 %v2850
        %2873 = vmatpush.msra.mxu0 %v2849
        %2874 = vmatpush.msra.mxu0 %v2848
        %2875 = vmatpush.msra.mxu0 %v2847
        %2876 = vmatpush.msra.mxu0 %v2846
        %2877 = vmatpush.msra.mxu0 %v2845
        %2878 = vmatpush.msra.mxu0 %v2844
        %2879 = vmatpush.msra.mxu0 %v2843
        %2880 = vmatmul.f32.gmra.mxu0 %v2841
        %v2881 = vpop.f32.mrf.mxu0
        %v2882 = vadd.f32 %v2862, %v2881
        %2883 = vdwg.mxu0
        %v2884 = vadd.f32 %v2738, %v2882
        %v2885 = vld [vmem:[%s17] sm:$0x3]
        %v2886 = vsel %vm736, %v2884, 0.0
        %2887 = vadd.xlane.f32.xlu0 %v2886
        %v2888 = vpop.xlane.xlu0 %2887
        %v2889 = vmul.f32 %v2888, %v746
        %v2890 = vsub.f32 %v2884, %v2889
        %v2891 = vmul.f32 %v2890, %v2890
        %v2892 = vsel %vm736, %v2891, 0.0
        %2893 = vadd.xlane.f32.xlu0 %v2892
        %v2894 = vpop.xlane.xlu0 %2893
        %v2895 = vmul.f32 %v2894, %v746
        %v2896 = vadd.f32 %v2895, 1e-05
        %v2897 = vrsqrt.pop %v2896
        %v2898 = vmul.f32 %v2897, %v2896
        %v2899 = vmul.f32 %v2898, %v2897
        %v2900 = vmul.f32 0.5, %v2899
        %v2901 = vsub.f32 1.5, %v2900
        %v2902 = vmul.f32 %v2897, %v2901
        %vm2903 = vweird.f32 %v2896
        %vm2904 = vweird.f32 %v2897
        %vm2905 = vmor %vm2903, %vm2904
        %v2906 = vsel %vm2905, %v2897, %v2902
        %v2907 = vmul.f32 %v2890, %v2906
        %v2908 = vperm.slane %v2885, 0
        %v2909 = vmul.f32 %v2907, %v2908
        %v2910 = vperm.slane %v2885, 1
        %v2911 = vadd.f32 %v2909, %v2910
        %2912 = vst.msk [vmem:[%s728] sm:$0xff] %vm736, %v2911
        %s2913 = sand.u32 %s447, 1
        %s2914 = scalar_lea.sflag [#allocation4], %s2913
        %s2915 = sand.u32 %s447, 1
        %s2916 = smul.addr %s2915, 8
        %s2917 = scalar_lea.vmem [#allocation11], %s2916
        // Predicated region
        $region113: #{tpu_custom_call.1} parent=91 // pred_check
          %p2918 = pneg %p457
        $region114: #{tpu_custom_call.1} parent=91 // pred_check_branch
          %2920 = sbr.rel (%p2918) target = $region116
        $region115: #{tpu_custom_call.1} parent=91 // pred_region
          %2922 = vsyncadd %s2914, 0
          %s2923 = smul.addr %s41, 8
          %s2924 = scalar_lea.hbm %s18, %s2923
          %s2926 = sshll.u32 %s2917, 4
          %s2927 = int_to_ptr.vmem [resolvable:$true] %s2926
          %s2928 = sshll.u32 %s2924, 4
          %s2929 = int_to_ptr.hbm [resolvable:$true] %s2928
          %2931 = dma.vmem_to_hbm [thread:$0]  %s2927, 128, %s2929, %s2914
        $region116: #{tpu_custom_call.1} parent=91 // pred_fallthru
          _
      $region92: #{tpu_custom_call.1} parent=5 // pred_fallthru
        _
      %p2932 = scmp.le.s32.totalorder 2, %s36
      // Predicated region
      $region117: #{tpu_custom_call.1} parent=5 // pred_check
        %p2933 = pneg %p2932
      $region118: #{tpu_custom_call.1} parent=5 // pred_check_branch
        %2935 = sbr.rel (%p2933) target = $region120
      $region119: #{tpu_custom_call.1} parent=5 // pred_region
        %s2936 = ssub.s32 %s36, 2
        // Predicated region
        $region121: #{tpu_custom_call.1} parent=119 // pred_check
          %p2937 = pneg %p463
        $region122: #{tpu_custom_call.1} parent=119 // pred_check_branch
          %2939 = sbr.rel (%p2937) target = $region124
        $region123: #{tpu_custom_call.1} parent=119 // pred_region
          %s2940 = sand.u32 %s448, 1
          %s2941 = scalar_lea.sflag [#allocation4], %s2940
          %s2942 = sand.u32 %s448, 1
          %s2943 = smul.addr %s2942, 8
          %s2944 = scalar_lea.vmem [#allocation11], %s2943
          %2946 = dma.done %s2941, 128
        $region124: #{tpu_custom_call.1} parent=119 // pred_fallthru
          _
      $region120: #{tpu_custom_call.1} parent=5 // pred_fallthru
        _
    $region6: #{tpu_custom_call.1} parent=1 // loop_footer
      %s40 = sadd.s32 1, %s36
    $region7: #{tpu_custom_call.1} parent=1 // loop_footer_branch
      %35 = sbr.rel target = $region3
    $region8: #{tpu_custom_call.1} parent=1 // loop_exit
      _
    %2947 = vsyncpa [#allocation3], 1
    %s2948 = scalar_lea.sflag [#allocation3], 1
    %2949 = vsyncpa %s2948, 1
    %2950 = vsyncpa [#allocation6], 1
    %s2951 = scalar_lea.sflag [#allocation6], 1
    %2952 = vsyncpa %s2951, 1
    %2953 = vsyncpa [#allocation9], 1
    %s2954 = scalar_lea.sflag [#allocation9], 1
    %2955 = vsyncpa %s2954, 1
    %2956 = vsyncpa [#allocation4], 1
    %s2957 = scalar_lea.sflag [#allocation4], 1
    %2958 = vsyncpa %s2957, 1

</llo_original>
